<compile_context>
chip_gen: v7x
topology: tpu7x:2x2x1
jax: 0.10.0
libtpu: 0.0.40
codegen_flags: <defaults>
</compile_context>

<pallas_src>
import functools
from math import log

import jax
import jax.numpy as jnp
from jax.experimental import pallas as pl
from jax.experimental.pallas import tpu as pltpu


# ----------------------------------------------------------------------------
# helpers
# ----------------------------------------------------------------------------

def _cdiv(a, b):
    return -(-a // b)


def _round_up(a, m):
    return _cdiv(a, m) * m


@functools.lru_cache(maxsize=None)
def _vmem_limit():
    """Per-generation VMEM budget, leaving headroom for compiler scratch."""
    try:
        info = pltpu.get_tpu_info()
        for name in ("vmem_capacity_bytes", "vmem_size_bytes", "vmem_bytes"):
            cap = getattr(info, name, None)
            if cap:
                # ~48 MiB on v7x (64 MiB/TC), ~96 MiB on v5e/v6e (128 MiB/TC).
                return int(min(int(cap) * 3 // 4, 100 * 1024 * 1024))
    except Exception:
        pass
    return 64 * 1024 * 1024  # conservative fallback, safe on every generation


def _apply_act(y, act):
    if act == "relu":
        return jnp.maximum(y, 0.0)
    if act == "sigmoid":
        return jax.nn.sigmoid(y)
    return y


# ----------------------------------------------------------------------------
# Pallas kernels
# ----------------------------------------------------------------------------

def _mm_kernel(x_ref, w_ref, sh_ref, o_ref, *, act):
    """(tm,K)@(K,tn) with the full-K weight resident in VMEM; +shift -> act."""
    y = jnp.dot(x_ref[...], w_ref[...], preferred_element_type=jnp.float32)
    o_ref[...] = _apply_act(y + sh_ref[...], act).astype(o_ref.dtype)


def _mm_acc_kernel(x_ref, w_ref, sh_ref, o_ref, acc_ref, *, act):
    """Fallback K-tiled matmul (only when the (K,tn) weight block is too big
    for a comfortable resident slab); f32 VMEM accumulator + epilogue."""
    @pl.when(pl.program_id(2) == 0)
    def _init():
        acc_ref[...] = jnp.zeros_like(acc_ref)

    acc_ref[...] += jnp.dot(x_ref[...], w_ref[...],
                            preferred_element_type=jnp.float32)

    @pl.when(pl.program_id(2) == pl.num_programs(2) - 1)
    def _fin():
        o_ref[...] = _apply_act(acc_ref[...] + sh_ref[...],
                                act).astype(o_ref.dtype)


def _convk_kernel(x_ref, w_ref, sh_ref, o_ref, *, k, R, Lt, act):
    """kxk 'same' conv, one output row tile per grid step.

    x_ref : (1, Xrows, Cin)  zero-padded image flattened with row stride R
                             (resident across the j/t grid axes).
    w_ref : (k*k, Cin, tn)   per-tap weight slabs (bf16, BN scale folded).
    sh_ref: (1, tn)          folded shift (f32).
    o_ref : (1, Lt, tn)      output row tile (flat, same row stride R).

    Identity: out_flat[p] = sum_{dh,dw} x_flat[p + dh*R + dw] @ W[dh, dw].
    The dh*R offset is an 8-aligned dynamic ref slice; the +dw offset is
    applied by slicing the f32 dot result by dw rows (32-bit sublane shift),
    so no im2col copy of the input is materialized anywhere.
    """
    t = pl.program_id(2)
    base = pl.multiple_of(t * Lt, 8)
    acc = None
    for dh in range(k):
        start = pl.multiple_of(base + dh * R, 8)
        xs = x_ref[0, pl.ds(start, Lt + 8), :]                  # (Lt+8, Cin)
        for dw in range(k):
            y = jnp.dot(xs, w_ref[dh * k + dw],
                        preferred_element_type=jnp.float32)     # (Lt+8, tn)
            contrib = y[dw:dw + Lt, :]
            acc = contrib if acc is None else acc + contrib
    out = _apply_act(acc + sh_ref[...], act)
    o_ref[...] = out[None].astype(o_ref.dtype)


# ----------------------------------------------------------------------------
# Kernel wrappers
# ----------------------------------------------------------------------------

def _matmul_jnp(x, w, shift, act, out_dtype):
    y = jnp.dot(x.astype(jnp.bfloat16), w.astype(jnp.bfloat16),
                preferred_element_type=jnp.float32)
    y = _apply_act(y + shift.reshape(1, -1).astype(jnp.float32), act)
    return y.astype(out_dtype)


def matmul_affine(x, w, shift, act="none", out_dtype=jnp.bfloat16):
    """y = act(x @ w + shift). x:(M,K), w:(K,N) bf16 with BN scale pre-folded."""
    M, K = x.shape
    N = w.shape[1]

    # Small problems (deep decoder stages, tiny heads) are launch/overhead
    # bound: let XLA fuse them with the surrounding elementwise glue.
    if M < 128 or N < 32:
        return _matmul_jnp(x, w, shift, act, out_dtype)

    if N <= 512:
        tn = N
    elif N % 256 == 0:
        tn = 256
    elif N % 128 == 0:
        tn = 128
    else:  # irregular wide N: do not silently build a giant block
        return _matmul_jnp(x, w, shift, act, out_dtype)

    x = x.astype(jnp.bfloat16)
    w = w.astype(jnp.bfloat16)
    shift = shift.reshape(1, N).astype(jnp.float32)
    tm = 512 if M >= 1024 else (256 if M >= 256 else M)
    gm, gn = _cdiv(M, tm), N // tn

    # Default: whole (K, tn) weight slab resident in VMEM (fetched once per
    # output-column block; never re-streamed over an M/K grid).
    if K * tn * 2 <= 6 * 1024 * 1024:
        return pl.pallas_call(
            functools.partial(_mm_kernel, act=act),
            out_shape=jax.ShapeDtypeStruct((M, N), out_dtype),
            grid=(gm, gn),
            in_specs=[
                pl.BlockSpec((tm, K), lambda i, j: (i, 0)),
                pl.BlockSpec((K, tn), lambda i, j: (0, j)),
                pl.BlockSpec((1, tn), lambda i, j: (0, j)),
            ],
            out_specs=pl.BlockSpec((tm, tn), lambda i, j: (i, j)),
            compiler_params=pltpu.CompilerParams(
                dimension_semantics=("parallel", "parallel"),
                vmem_limit_bytes=_vmem_limit()),
        )(x, w, shift)

    # Fallback for very large K*N: K-tiled accumulator path.
    tk = next((t for t in (1024, 512, 256, 128) if K % t == 0), K)
    gk = K // tk
    return pl.pallas_call(
        functools.partial(_mm_acc_kernel, act=act),
        out_shape=jax.ShapeDtypeStruct((M, N), out_dtype),
        grid=(gm, gn, gk),
        in_specs=[
            pl.BlockSpec((tm, tk), lambda i, j, kk: (i, kk)),
            pl.BlockSpec((tk, tn), lambda i, j, kk: (kk, j)),
            pl.BlockSpec((1, tn), lambda i, j, kk: (0, j)),
        ],
        out_specs=pl.BlockSpec((tm, tn), lambda i, j, kk: (i, j)),
        scratch_shapes=[pltpu.VMEM((tm, tn), jnp.float32)],
        compiler_params=pltpu.CompilerParams(
            dimension_semantics=("parallel", "parallel", "arbitrary"),
            vmem_limit_bytes=_vmem_limit()),
    )(x, w, shift)


def _conv_jnp(x, w_taps, shift, k, act):
    """Direct kxk 'same' conv in plain jnp (tiny layers / gate heads)."""
    N, H, W, Cin = x.shape
    pad = (k - 1) // 2
    xp = jnp.pad(x.astype(jnp.float32),
                 ((0, 0), (pad, pad), (pad, pad), (0, 0)))
    cols = [xp[:, dh:dh + H, dw:dw + W, :]
            for dh in range(k) for dw in range(k)]
    patches = jnp.concatenate(cols, axis=-1)
    wt = w_taps.reshape(k * k * Cin, -1).astype(jnp.float32)
    y = jnp.einsum('nhwc,co->nhwo', patches, wt) + shift.reshape(1, 1, 1, -1)
    return _apply_act(y, act)


def conv_kxk(x_nhwc, w_taps, shift, k, act="relu", out_dtype=jnp.bfloat16):
    """kxk stride-1 'same' conv. w_taps: (k*k, Cin, Cout), BN scale folded."""
    N, H, W, Cin = x_nhwc.shape
    Cout = w_taps.shape[2]
    pad = (k - 1) // 2

    # Tiny spatial extents (stride-16/32 stages) or tiny Cout (gate heads):
    # overhead-bound / <1% MXU utilization -> keep on the jnp/VPU path.
    if H * W < 100 or Cout < 32:
        return _conv_jnp(x_nhwc, w_taps, shift, k, act).astype(out_dtype)

    x = x_nhwc.astype(jnp.bfloat16)

    # Flatten the zero-padded image with an 8-aligned row stride R; no kxk
    # im2col copy is materialized in HBM.
    R = _round_up(W + 2 * pad, 8)
    Hp = H + 2 * pad
    xp = jnp.pad(x, ((0, 0), (pad, pad), (pad, R - W - pad), (0, 0)))
    xf = xp.reshape(N, Hp * R, Cin)

    # Output-column / output-row tiling: row tiles keep the f32 accumulator
    # <= ~128 KiB so it stays in vregs instead of spilling to VMEM.
    tn = 256 if Cout % 256 == 0 else (128 if Cout % 128 == 0 else Cout)
    gn = Cout // tn
    Lm = H * R
    Lt = min(_round_up(Lm, 8), max(8, (32768 // tn) // 8 * 8))
    gm = _cdiv(Lm, Lt)
    Lm_pad = gm * Lt

    # Extra zero rows so the last row tile's dh = k-1 slice stays in bounds.
    Xrows = Lm_pad + (k - 1) * R + 8
    xf = jnp.pad(xf, ((0, 0), (0, Xrows - Hp * R), (0, 0)))

    out = pl.pallas_call(
        functools.partial(_convk_kernel, k=k, R=R, Lt=Lt, act=act),
        out_shape=jax.ShapeDtypeStruct((N, Lm_pad, Cout), out_dtype),
        grid=(N, gn, gm),
        in_specs=[
            pl.BlockSpec((1, Xrows, Cin), lambda n, j, t: (n, 0, 0)),
            pl.BlockSpec((k * k, Cin, tn), lambda n, j, t: (0, 0, j)),
            pl.BlockSpec((1, tn), lambda n, j, t: (0, j)),
        ],
        out_specs=pl.BlockSpec((1, Lt, tn), lambda n, j, t: (n, t, j)),
        compiler_params=pltpu.CompilerParams(
            dimension_semantics=("parallel", "parallel", "parallel"),
            vmem_limit_bytes=_vmem_limit()),
    )(xf, w_taps.astype(jnp.bfloat16),
      shift.reshape(1, Cout).astype(jnp.float32))

    # Drop the padded rows / junk columns introduced by the row-stride padding.
    return out[:, :Lm, :].reshape(N, H, R, Cout)[:, :, :W, :]


# ----------------------------------------------------------------------------
# jnp glue (left to XLA per perf review)
# ----------------------------------------------------------------------------

def _resize_mat(o, i):
    c = (jnp.arange(o, dtype=jnp.float32) + 0.5) * (i / o) - 0.5
    c = jnp.clip(c, 0.0, i - 1.0)
    lo = jnp.floor(c).astype(jnp.int32)
    hi = jnp.minimum(lo + 1, i - 1)
    f = c - lo.astype(jnp.float32)
    return (jax.nn.one_hot(lo, i, dtype=jnp.float32) * (1.0 - f)[:, None]
            + jax.nn.one_hot(hi, i, dtype=jnp.float32) * f[:, None])


def bilinear_resize(x, oh, ow):
    """F.interpolate(mode='bilinear', align_corners=False) as two matmuls."""
    N, H, W, C = x.shape
    if (H, W) == (oh, ow):
        return x
    dtype = x.dtype
    y = jnp.einsum('oh,nhwc->nowc', _resize_mat(oh, H), x.astype(jnp.float32))
    y = jnp.einsum('pw,nowc->nopc', _resize_mat(ow, W), y)
    return y.astype(dtype)


def conv1d_channels(v, w):
    """nn.Conv1d(1,1,k,padding=(k-1)//2,bias=False) over the channel axis."""
    k = w.shape[0]
    p = (k - 1) // 2
    C = v.shape[1]
    vp = jnp.pad(v, ((0, 0), (p, p)))
    out = jnp.zeros_like(v)
    for i in range(k):
        out = out + w[i] * vp[:, i:i + C]
    return out


def head1x1(p, x):
    """nn.Conv2d(C, 1, 1) prediction head kept off the MXU (lane reduce)."""
    return (jnp.einsum('nhwc,c->nhw', x.astype(jnp.float32),
                       p["w"][:, 0])[..., None] + p["b"])


def sa_conv7(x1, w49):
    """SpatialAttention: 7x7 conv (1->1 channel, no bias) + sigmoid."""
    N, H, W, _ = x1.shape
    xp = jnp.pad(x1.astype(jnp.float32), ((0, 0), (3, 3), (3, 3), (0, 0)))
    acc = jnp.zeros((N, H, W, 1), jnp.float32)
    i = 0
    for dh in range(7):
        for dw in range(7):
            acc = acc + w49[i] * xp[:, dh:dh + H, dw:dw + W, :]
            i += 1
    return jax.nn.sigmoid(acc)


# ----------------------------------------------------------------------------
# Parameters (deterministic synthetic init; BatchNorm folded at init time)
# ----------------------------------------------------------------------------

class PG:
    def __init__(self, key):
        self.key = key
        self.i = 0

    def take(self, shape, scale=0.05):
        self.i += 1
        return scale * jax.random.normal(
            jax.random.fold_in(self.key, self.i), shape, jnp.float32)


def init_fused_conv(pg, cin, cout, k, conv_bias, with_bn):
    """conv(+bias)(+BN) folded into bf16 weights + f32 shift."""
    fan = k * k * cin
    w = pg.take((fan, cout), (1.0 / fan) ** 0.5)
    b = pg.take((cout,), 0.05) if conv_bias else jnp.zeros((cout,), jnp.float32)
    if with_bn:
        gamma = 1.0 + pg.take((cout,), 0.1)
        beta = pg.take((cout,), 0.1)
        mean = pg.take((cout,), 0.1)
        var = 1.0 + jnp.abs(pg.take((cout,), 0.1))
        scale = gamma / jnp.sqrt(var + 1e-5)
        w = w * scale[None, :]
        shift = beta + (b - mean) * scale
    else:
        shift = b
    if k > 1:
        w = w.reshape(k * k, cin, cout)   # tap-major: (dh*k + dw, cin, cout)
    return dict(w=w.astype(jnp.bfloat16), shift=shift.astype(jnp.float32))


def init_head(pg, cin):
    return dict(w=pg.take((cin, 1), (1.0 / cin) ** 0.5), b=pg.take((1,), 0.05))


def conv1x1(p, x, act="relu"):
    N, H, W, C = x.shape
    y = matmul_affine(x.reshape(N * H * W, C), p["w"], p["shift"], act=act)
    return y.reshape(N, H, W, -1)


def conv3x3(p, x, act="relu"):
    return conv_kxk(x, p["w"], p["shift"], k=3, act=act)


# ----------------------------------------------------------------------------
# Modules
# ----------------------------------------------------------------------------

def init_bam(pg):
    return dict(
        reduce1=init_fused_conv(pg, 256, 64, 1, True, True),
        reduce2=init_fused_conv(pg, 512, 256, 1, True, True),
        conv=init_fused_conv(pg, 256, 256, 3, False, True),
        conv_out=init_head(pg, 256),
        block0=init_fused_conv(pg, 256 + 64, 256, 3, False, True),
        block1=init_fused_conv(pg, 256, 256, 3, False, True),
        sa_w=pg.take((49,), (1.0 / 49.0) ** 0.5),
    )


def bam_forward(p, x1, t4):
    H, W = x1.shape[1:3]
    x1r = conv1x1(p["reduce1"], x1)
    t4r = conv1x1(p["reduce2"], t4)
    t4r = bilinear_resize(t4r, H, W)
    x_t = jnp.concatenate([t4r, x1r], axis=-1)
    xe = conv3x3(p["block0"], x_t)
    xe = conv3x3(p["block1"], xe)
    mx = jnp.max(xe, axis=-1, keepdims=True)
    sa = sa_conv7(mx, p["sa_w"])                       # (N,H,W,1) f32
    xe_sa = (sa * xe).astype(jnp.bfloat16)
    xe_conv = conv3x3(p["conv"], xe_sa)
    out = xe_conv + xe
    return head1x1(p["conv_out"], out)                  # (N,H,W,1) f32


def cdfm_kernel_size(c2):
    t = int(abs((log(c2, 2) + 1) / 2))
    return t if t % 2 else t + 1


def init_cdfm(pg, c1, c2):
    k = cdfm_kernel_size(c2)
    ch = c2 // 4
    conv3 = init_fused_conv(pg, c1, c2, 1, True, True)
    conv5 = init_fused_conv(pg, c1, c2, 1, True, True)
    # conv3 and conv5 read the same (wide) input -> fuse their weight columns
    # into one matmul; split the result in the forward pass.
    conv35 = dict(w=jnp.concatenate([conv3["w"], conv5["w"]], axis=1),
                  shift=jnp.concatenate([conv3["shift"], conv5["shift"]]))
    return dict(
        conv35=conv35,
        conv4=init_fused_conv(pg, 2 * c2, c2, 1, True, True),
        conv6=init_fused_conv(pg, c2, c2, 1, True, True),
        conv7=init_fused_conv(pg, c1 + c2, c2, 1, True, True),
        conv1d_w=pg.take((k,), (1.0 / k) ** 0.5),
        la0=init_fused_conv(pg, c2, ch, 1, True, True),
        la1=init_fused_conv(pg, ch, c2, 1, True, True),
    )


def cdfm_forward(p, x, t):
    N, H, W, c2 = t.shape
    t32 = t.astype(jnp.float32)
    wg = jnp.mean(t32, axis=(1, 2)) + jnp.max(t32, axis=(1, 2))   # (N,c2)
    wg = jax.nn.sigmoid(conv1d_channels(wg, p["conv1d_w"]))
    xg_wl = conv1x1(p["conv35"], x)                    # fused conv3 + conv5
    x_g, wl = xg_wl[..., :c2], xg_wl[..., c2:]
    x_g = (x_g * wg[:, None, None, :]).astype(jnp.bfloat16)
    x_g = jnp.concatenate([x_g, t], axis=-1)
    x_g = conv1x1(p["conv4"], x_g)
    wl = conv1x1(p["la0"], wl, act="relu")
    wl = conv1x1(p["la1"], wl, act="sigmoid")
    t_l = conv1x1(p["conv6"], t)
    t_l = (wl * t_l).astype(jnp.bfloat16)
    t_l = jnp.concatenate([t_l, x], axis=-1)
    t_l = conv1x1(p["conv7"], t_l)
    return x_g + t_l


def init_fem(pg, hch, ch, och):
    return dict(
        conv1=init_fused_conv(pg, hch + ch, 2, 3, True, False),
        conv2=init_fused_conv(pg, hch + ch, och, 3, False, True),
    )


def fem_forward(p, lf, hf, et, pr):
    H, W = lf.shape[1:3]
    hf = bilinear_resize(hf, H, W)
    et = bilinear_resize(et, H, W)
    pr = bilinear_resize(pr, H, W)
    att = et + pr
    hf_a = hf * att
    lf_a = lf * att
    cat = jnp.concatenate([hf_a, lf_a], axis=-1)
    # 2-channel gate conv: <1-2% MXU utilization + masked lane stores -> keep
    # on the jnp/VPU path so XLA fuses it with the surrounding elementwise ops.
    sg = _conv_jnp(cat, p["conv1"]["w"], p["conv1"]["shift"], 3, "sigmoid")
    gi = jnp.mean(sg, axis=(1, 2))                                # (N,2)
    gi_l = gi[:, 0][:, None, None, None]
    gi_h = gi[:, 1][:, None, None, None]
    out = jnp.concatenate([(hf_a * gi_h).astype(jnp.bfloat16),
                           (lf_a * gi_l).astype(jnp.bfloat16)], axis=-1)
    return conv3x3(p["conv2"], out)


# --- backbone stand-ins (see TODO(synk) at top) ------------------------------

_RES_SPECS = [(4, 256), (8, 512), (16, 1024), (32, 2048)]
_PVT_SPECS = [(4, 64), (8, 128), (16, 320), (32, 512)]


def init_backbone(pg, specs):
    return [init_fused_conv(pg, 3, c, 1, True, False) for _, c in specs]


def backbone_forward(params, specs, x_nhwc):
    N, H, W, C = x_nhwc.shape
    feats = []
    for (s, _), p in zip(specs, params):
        xs = x_nhwc.reshape(N, H // s, s, W // s, s, C).mean(axis=(2, 4))
        feats.append(conv1x1(p, xs, act="relu"))
    return feats


# ----------------------------------------------------------------------------
# Net
# ----------------------------------------------------------------------------

def init_net(key):
    pg = PG(key)
    return dict(
        res=init_backbone(pg, _RES_SPECS),
        pvt=init_backbone(pg, _PVT_SPECS),
        bam=init_bam(pg),
        cdfm1=init_cdfm(pg, 256, 64),
        cdfm2=init_cdfm(pg, 512, 128),
        cdfm3=init_cdfm(pg, 1024, 320),
        cdfm4=init_cdfm(pg, 2048, 512),
        reduce1=init_fused_conv(pg, 64, 64, 1, True, True),
        reduce2=init_fused_conv(pg, 128, 128, 1, True, True),
        reduce3=init_fused_conv(pg, 320, 256, 1, True, True),
        reduce4=init_fused_conv(pg, 512, 256, 1, True, True),
        fem3=init_fem(pg, 256, 256, 256),
        fem2=init_fem(pg, 256, 128, 128),
        fem1=init_fem(pg, 128, 64, 64),
        pred1=init_head(pg, 64),
        pred2=init_head(pg, 128),
        pred3=init_head(pg, 256),
        block0=init_fused_conv(pg, 512 + 320 + 128 + 64, 256, 3, False, True),
        block1=init_fused_conv(pg, 256, 256, 3, False, True),
        block2=init_head(pg, 256),
    )


def net_forward(P, x_nchw):
    x = jnp.transpose(x_nchw, (0, 2, 3, 1)).astype(jnp.float32)    # -> NHWC
    x1, x2, x3, x4 = backbone_forward(P["res"], _RES_SPECS, x)
    t1, t2, t3, t4 = backbone_forward(P["pvt"], _PVT_SPECS, x)

    edge = bam_forward(P["bam"], x1, t4)
    edge_att = jax.nn.sigmoid(edge)

    c1 = cdfm_forward(P["cdfm1"], x1, t1)
    c2 = cdfm_forward(P["cdfm2"], x2, t2)
    c3 = cdfm_forward(P["cdfm3"], x3, t3)
    c4 = cdfm_forward(P["cdfm4"], x4, t4)

    H4, W4 = c4.shape[1:3]
    c1_4 = bilinear_resize(c1, H4, W4)
    c2_4 = bilinear_resize(c2, H4, W4)
    c3_4 = bilinear_resize(c3, H4, W4)
    xb = jnp.concatenate([c4, c1_4, c2_4, c3_4], axis=-1)
    xb = conv3x3(P["block0"], xb)
    xb = conv3x3(P["block1"], xb)
    o4 = head1x1(P["block2"], xb)
    o4_r = jax.nn.sigmoid(o4)
    o4_up = bilinear_resize(o4, H4 * 32, W4 * 32)

    c1f = conv1x1(P["reduce1"], c1)
    c2f = conv1x1(P["reduce2"], c2)
    c3f = conv1x1(P["reduce3"], c3)
    c4f = conv1x1(P["reduce4"], c4)

    f3 = fem_forward(P["fem3"], c3f, c4f, edge_att, o4_r)
    o3 = head1x1(P["pred3"], f3)
    o3_r = jax.nn.sigmoid(o3)
    o3_up = bilinear_resize(o3, o3.shape[1] * 16, o3.shape[2] * 16)

    f2 = fem_forward(P["fem2"], c2f, f3, edge_att, o3_r)
    o2 = head1x1(P["pred2"], f2)
    o2_r = jax.nn.sigmoid(o2)
    o2_up = bilinear_resize(o2, o2.shape[1] * 8, o2.shape[2] * 8)

    f1 = fem_forward(P["fem1"], c1f, f2, edge_att, o2_r)
    o1 = head1x1(P["pred1"], f1)
    o1_up = bilinear_resize(o1, o1.shape[1] * 4, o1.shape[2] * 4)

    oe = bilinear_resize(edge_att, edge_att.shape[1] * 4, edge_att.shape[2] * 4)

    to_nchw = lambda a: jnp.transpose(a, (0, 3, 1, 2)).astype(jnp.float32)
    return (to_nchw(o4_up), to_nchw(o3_up), to_nchw(o2_up),
            to_nchw(o1_up), to_nchw(oe))


# ----------------------------------------------------------------------------

if __name__ == "__main__":
    key = jax.random.PRNGKey(0)

    # --- correctness self-checks of the two Pallas kernels -------------------
    kc = jax.random.fold_in(key, 999)
    xt = jax.random.normal(kc, (1, 16, 16, 128), jnp.float32).astype(jnp.bfloat16)
    wt = (0.05 * jax.random.normal(jax.random.fold_in(kc, 1),
                                   (9, 128, 256))).astype(jnp.bfloat16)
    st = 0.1 * jax.random.normal(jax.random.fold_in(kc, 2), (256,))
    got = conv_kxk(xt, wt, st, k=3, act="relu", out_dtype=jnp.float32)
    ref = _conv_jnp(xt, wt, st, 3, "relu")
    assert bool(jnp.allclose(got, ref, atol=2e-2, rtol=2e-2)), \
        float(jnp.max(jnp.abs(got - ref)))

    xm = jax.random.normal(jax.random.fold_in(kc, 3),
                           (256, 512), jnp.float32).astype(jnp.bfloat16)
    wm = (0.05 * jax.random.normal(jax.random.fold_in(kc, 4),
                                   (512, 128))).astype(jnp.bfloat16)
    sm = 0.1 * jax.random.normal(jax.random.fold_in(kc, 5), (128,))
    gotm = matmul_affine(xm, wm, sm, act="sigmoid", out_dtype=jnp.float32)
    refm = jax.nn.sigmoid(xm.astype(jnp.float32) @ wm.astype(jnp.float32) + sm)
    assert bool(jnp.allclose(gotm, refm, atol=2e-2, rtol=2e-2)), \
        float(jnp.max(jnp.abs(gotm - refm)))

    # --- full forward pass ----------------------------------------------------
    params = init_net(key)
    # Small input: batch=1, RGB, 64x64 (decoder channel widths are fixed by
    # the module itself: 256/512/1024/2048 and 64/128/320/512).
    x = jax.random.normal(jax.random.fold_in(key, 12345), (1, 3, 64, 64),
                          jnp.float32)

    fwd = jax.jit(net_forward)
    outs = fwd(params, x)
    for o in outs:
        jax.block_until_ready(o)

    expected = (1, 1, 64, 64)
    assert all(o.shape == expected for o in outs), [o.shape for o in outs]
    assert all(bool(jnp.all(jnp.isfinite(o))) for o in outs)
    print("KERNEL_OK")
</pallas_src>

<mosaic_0001>
module attributes {stable_mosaic.version = 11 : i64} {
  func.func @_convk_kernel(%arg0: i32, %arg1: i32, %arg2: i32, %arg3: memref<1x440x128xbf16, #tpu.memory_space<vmem>>, %arg4: memref<9x128x256xbf16, #tpu.memory_space<vmem>>, %arg5: memref<1x256xf32, #tpu.memory_space<vmem>>, %arg6: memref<1x128x256xf32, #tpu.memory_space<vmem>>) attributes {dimension_semantics = [#tpu.dimension_semantics<parallel>, #tpu.dimension_semantics<parallel>, #tpu.dimension_semantics<parallel>], iteration_bounds = array<i64: 1, 1, 3>, scalar_prefetch = 0 : i64, scratch_operands = 0 : i64, tpu.core_type = #tpu.core_type<tc>, window_params = [{transform_indices = @transform_0, window_bounds = array<i64: 1, 440, 128>}, {transform_indices = @transform_1, window_bounds = array<i64: 9, 128, 256>}, {transform_indices = @transform_2, window_bounds = array<i64: 1, 256>}, {transform_indices = @transform_3, window_bounds = array<i64: 1, 128, 256>}]} {
    %c128_i32 = arith.constant 128 : i32
    %0 = arith.muli %arg2, %c128_i32 : i32
    %1 = tpu.assume_multiple %0, 8 : i32
    %c0_i32 = arith.constant 0 : i32
    %2 = arith.addi %1, %c0_i32 : i32
    %3 = tpu.assume_multiple %2, 8 : i32
    %c0 = arith.constant 0 : index
    %4 = arith.index_cast %3 : i32 to index
    %c0_0 = arith.constant 0 : index
    %5 = vector.load %arg3[%c0, %4, %c0_0] : memref<1x440x128xbf16, #tpu.memory_space<vmem>>, vector<1x136x128xbf16>
    %6 = vector.shape_cast %5 : vector<1x136x128xbf16> to vector<136x128xbf16>
    %c0_1 = arith.constant 0 : index
    %c0_2 = arith.constant 0 : index
    %c0_3 = arith.constant 0 : index
    %7 = vector.load %arg4[%c0_1, %c0_2, %c0_3] : memref<9x128x256xbf16, #tpu.memory_space<vmem>>, vector<1x128x256xbf16>
    %8 = vector.shape_cast %7 : vector<1x128x256xbf16> to vector<128x256xbf16>
    %cst = arith.constant dense<0.000000e+00> : vector<136x256xf32>
    %9 = tpu.matmul %6, %8, %cst {dimension_numbers = #tpu.dot_dimension_numbers<[1], [0], [0], [1], [0, 0, 1, 1], [], []>} : vector<136x128xbf16>, vector<128x256xbf16>, vector<136x256xf32> -> vector<136x256xf32>
    %10 = vector.extract_strided_slice %9 {offsets = [0, 0], sizes = [128, 256], strides = [1, 1]} : vector<136x256xf32> to vector<128x256xf32>
    %c1 = arith.constant 1 : index
    %c0_4 = arith.constant 0 : index
    %c0_5 = arith.constant 0 : index
    %11 = vector.load %arg4[%c1, %c0_4, %c0_5] : memref<9x128x256xbf16, #tpu.memory_space<vmem>>, vector<1x128x256xbf16>
    %12 = vector.shape_cast %11 : vector<1x128x256xbf16> to vector<128x256xbf16>
    %cst_6 = arith.constant dense<0.000000e+00> : vector<136x256xf32>
    %13 = tpu.matmul %6, %12, %cst_6 {dimension_numbers = #tpu.dot_dimension_numbers<[1], [0], [0], [1], [0, 0, 1, 1], [], []>} : vector<136x128xbf16>, vector<128x256xbf16>, vector<136x256xf32> -> vector<136x256xf32>
    %14 = vector.extract_strided_slice %13 {offsets = [1, 0], sizes = [128, 256], strides = [1, 1]} : vector<136x256xf32> to vector<128x256xf32>
    %15 = arith.addf %10, %14 : vector<128x256xf32>
    %c2 = arith.constant 2 : index
    %c0_7 = arith.constant 0 : index
    %c0_8 = arith.constant 0 : index
    %16 = vector.load %arg4[%c2, %c0_7, %c0_8] : memref<9x128x256xbf16, #tpu.memory_space<vmem>>, vector<1x128x256xbf16>
    %17 = vector.shape_cast %16 : vector<1x128x256xbf16> to vector<128x256xbf16>
    %cst_9 = arith.constant dense<0.000000e+00> : vector<136x256xf32>
    %18 = tpu.matmul %6, %17, %cst_9 {dimension_numbers = #tpu.dot_dimension_numbers<[1], [0], [0], [1], [0, 0, 1, 1], [], []>} : vector<136x128xbf16>, vector<128x256xbf16>, vector<136x256xf32> -> vector<136x256xf32>
    %19 = vector.extract_strided_slice %18 {offsets = [2, 0], sizes = [128, 256], strides = [1, 1]} : vector<136x256xf32> to vector<128x256xf32>
    %20 = arith.addf %15, %19 : vector<128x256xf32>
    %c24_i32 = arith.constant 24 : i32
    %21 = arith.addi %1, %c24_i32 : i32
    %22 = tpu.assume_multiple %21, 8 : i32
    %c0_10 = arith.constant 0 : index
    %23 = arith.index_cast %22 : i32 to index
    %c0_11 = arith.constant 0 : index
    %24 = vector.load %arg3[%c0_10, %23, %c0_11] : memref<1x440x128xbf16, #tpu.memory_space<vmem>>, vector<1x136x128xbf16>
    %25 = vector.shape_cast %24 : vector<1x136x128xbf16> to vector<136x128xbf16>
    %c3 = arith.constant 3 : index
    %c0_12 = arith.constant 0 : index
    %c0_13 = arith.constant 0 : index
    %26 = vector.load %arg4[%c3, %c0_12, %c0_13] : memref<9x128x256xbf16, #tpu.memory_space<vmem>>, vector<1x128x256xbf16>
    %27 = vector.shape_cast %26 : vector<1x128x256xbf16> to vector<128x256xbf16>
    %cst_14 = arith.constant dense<0.000000e+00> : vector<136x256xf32>
    %28 = tpu.matmul %25, %27, %cst_14 {dimension_numbers = #tpu.dot_dimension_numbers<[1], [0], [0], [1], [0, 0, 1, 1], [], []>} : vector<136x128xbf16>, vector<128x256xbf16>, vector<136x256xf32> -> vector<136x256xf32>
    %29 = vector.extract_strided_slice %28 {offsets = [0, 0], sizes = [128, 256], strides = [1, 1]} : vector<136x256xf32> to vector<128x256xf32>
    %30 = arith.addf %20, %29 : vector<128x256xf32>
    %c4 = arith.constant 4 : index
    %c0_15 = arith.constant 0 : index
    %c0_16 = arith.constant 0 : index
    %31 = vector.load %arg4[%c4, %c0_15, %c0_16] : memref<9x128x256xbf16, #tpu.memory_space<vmem>>, vector<1x128x256xbf16>
    %32 = vector.shape_cast %31 : vector<1x128x256xbf16> to vector<128x256xbf16>
    %cst_17 = arith.constant dense<0.000000e+00> : vector<136x256xf32>
    %33 = tpu.matmul %25, %32, %cst_17 {dimension_numbers = #tpu.dot_dimension_numbers<[1], [0], [0], [1], [0, 0, 1, 1], [], []>} : vector<136x128xbf16>, vector<128x256xbf16>, vector<136x256xf32> -> vector<136x256xf32>
    %34 = vector.extract_strided_slice %33 {offsets = [1, 0], sizes = [128, 256], strides = [1, 1]} : vector<136x256xf32> to vector<128x256xf32>
    %35 = arith.addf %30, %34 : vector<128x256xf32>
    %c5 = arith.constant 5 : index
    %c0_18 = arith.constant 0 : index
    %c0_19 = arith.constant 0 : index
    %36 = vector.load %arg4[%c5, %c0_18, %c0_19] : memref<9x128x256xbf16, #tpu.memory_space<vmem>>, vector<1x128x256xbf16>
    %37 = vector.shape_cast %36 : vector<1x128x256xbf16> to vector<128x256xbf16>
    %cst_20 = arith.constant dense<0.000000e+00> : vector<136x256xf32>
    %38 = tpu.matmul %25, %37, %cst_20 {dimension_numbers = #tpu.dot_dimension_numbers<[1], [0], [0], [1], [0, 0, 1, 1], [], []>} : vector<136x128xbf16>, vector<128x256xbf16>, vector<136x256xf32> -> vector<136x256xf32>
    %39 = vector.extract_strided_slice %38 {offsets = [2, 0], sizes = [128, 256], strides = [1, 1]} : vector<136x256xf32> to vector<128x256xf32>
    %40 = arith.addf %35, %39 : vector<128x256xf32>
    %c48_i32 = arith.constant 48 : i32
    %41 = arith.addi %1, %c48_i32 : i32
    %42 = tpu.assume_multiple %41, 8 : i32
    %c0_21 = arith.constant 0 : index
    %43 = arith.index_cast %42 : i32 to index
    %c0_22 = arith.constant 0 : index
    %44 = vector.load %arg3[%c0_21, %43, %c0_22] : memref<1x440x128xbf16, #tpu.memory_space<vmem>>, vector<1x136x128xbf16>
    %45 = vector.shape_cast %44 : vector<1x136x128xbf16> to vector<136x128xbf16>
    %c6 = arith.constant 6 : index
    %c0_23 = arith.constant 0 : index
    %c0_24 = arith.constant 0 : index
    %46 = vector.load %arg4[%c6, %c0_23, %c0_24] : memref<9x128x256xbf16, #tpu.memory_space<vmem>>, vector<1x128x256xbf16>
    %47 = vector.shape_cast %46 : vector<1x128x256xbf16> to vector<128x256xbf16>
    %cst_25 = arith.constant dense<0.000000e+00> : vector<136x256xf32>
    %48 = tpu.matmul %45, %47, %cst_25 {dimension_numbers = #tpu.dot_dimension_numbers<[1], [0], [0], [1], [0, 0, 1, 1], [], []>} : vector<136x128xbf16>, vector<128x256xbf16>, vector<136x256xf32> -> vector<136x256xf32>
    %49 = vector.extract_strided_slice %48 {offsets = [0, 0], sizes = [128, 256], strides = [1, 1]} : vector<136x256xf32> to vector<128x256xf32>
    %50 = arith.addf %40, %49 : vector<128x256xf32>
    %c7 = arith.constant 7 : index
    %c0_26 = arith.constant 0 : index
    %c0_27 = arith.constant 0 : index
    %51 = vector.load %arg4[%c7, %c0_26, %c0_27] : memref<9x128x256xbf16, #tpu.memory_space<vmem>>, vector<1x128x256xbf16>
    %52 = vector.shape_cast %51 : vector<1x128x256xbf16> to vector<128x256xbf16>
    %cst_28 = arith.constant dense<0.000000e+00> : vector<136x256xf32>
    %53 = tpu.matmul %45, %52, %cst_28 {dimension_numbers = #tpu.dot_dimension_numbers<[1], [0], [0], [1], [0, 0, 1, 1], [], []>} : vector<136x128xbf16>, vector<128x256xbf16>, vector<136x256xf32> -> vector<136x256xf32>
    %54 = vector.extract_strided_slice %53 {offsets = [1, 0], sizes = [128, 256], strides = [1, 1]} : vector<136x256xf32> to vector<128x256xf32>
    %55 = arith.addf %50, %54 : vector<128x256xf32>
    %c8 = arith.constant 8 : index
    %c0_29 = arith.constant 0 : index
    %c0_30 = arith.constant 0 : index
    %56 = vector.load %arg4[%c8, %c0_29, %c0_30] : memref<9x128x256xbf16, #tpu.memory_space<vmem>>, vector<1x128x256xbf16>
    %57 = vector.shape_cast %56 : vector<1x128x256xbf16> to vector<128x256xbf16>
    %cst_31 = arith.constant dense<0.000000e+00> : vector<136x256xf32>
    %58 = tpu.matmul %45, %57, %cst_31 {dimension_numbers = #tpu.dot_dimension_numbers<[1], [0], [0], [1], [0, 0, 1, 1], [], []>} : vector<136x128xbf16>, vector<128x256xbf16>, vector<136x256xf32> -> vector<136x256xf32>
    %59 = vector.extract_strided_slice %58 {offsets = [2, 0], sizes = [128, 256], strides = [1, 1]} : vector<136x256xf32> to vector<128x256xf32>
    %60 = arith.addf %55, %59 : vector<128x256xf32>
    %c0_32 = arith.constant 0 : index
    %c0_33 = arith.constant 0 : index
    %61 = vector.load %arg5[%c0_32, %c0_33] : memref<1x256xf32, #tpu.memory_space<vmem>>, vector<1x256xf32>
    %62 = vector.broadcast %61 : vector<1x256xf32> to vector<128x256xf32>
    %63 = arith.addf %60, %62 : vector<128x256xf32>
    %cst_34 = arith.constant 0.000000e+00 : f32
    %64 = vector.broadcast %cst_34 : f32 to vector<128x256xf32>
    %65 = arith.maximumf %63, %64 : vector<128x256xf32>
    %66 = vector.shape_cast %65 : vector<128x256xf32> to vector<1x128x256xf32>
    %c0_35 = arith.constant 0 : index
    %c0_36 = arith.constant 0 : index
    %c0_37 = arith.constant 0 : index
    %67 = vector.load %arg6[%c0_35, %c0_36, %c0_37] : memref<1x128x256xf32, #tpu.memory_space<vmem>>, vector<1x128x256xf32>
    tpu.vector_store %arg6[%c0_35, %c0_36, %c0_37], %66 {strides = array<i32>} : memref<1x128x256xf32, #tpu.memory_space<vmem>>, vector<1x128x256xf32>,
    return
  }
  func.func @transform_0(%arg0: i32, %arg1: i32, %arg2: i32) -> (i32, i32, i32) {
    %c0_i32 = arith.constant 0 : i32
    %c0_i32_0 = arith.constant 0 : i32
    %c0_i32_1 = arith.constant 0 : i32
    return %arg0, %c0_i32, %c0_i32_0 : i32, i32, i32
  }
  func.func @transform_1(%arg0: i32, %arg1: i32, %arg2: i32) -> (i32, i32, i32) {
    %c0_i32 = arith.constant 0 : i32
    %c0_i32_0 = arith.constant 0 : i32
    %c0_i32_1 = arith.constant 0 : i32
    return %c0_i32, %c0_i32_0, %arg1 : i32, i32, i32
  }
  func.func @transform_2(%arg0: i32, %arg1: i32, %arg2: i32) -> (i32, i32) {
    %c0_i32 = arith.constant 0 : i32
    %c0_i32_0 = arith.constant 0 : i32
    return %c0_i32, %arg1 : i32, i32
  }
  func.func @transform_3(%arg0: i32, %arg1: i32, %arg2: i32) -> (i32, i32, i32) {
    %c0_i32 = arith.constant 0 : i32
    return %arg0, %arg2, %arg1 : i32, i32, i32
  }
}

</mosaic_0001>

<llo_original>
// kernel: tpu_custom_call.1
$region0: #{tpu_custom_call.1}
  #allocation0 [shape = 'u32[]', space=smem, size = 0x4, offset = 0x4, fixed_abs, tag = 'smem constant byte address 0x4 - core index']
  #allocation1 [shape = 'u32[144,128]{1,0:T(1,128)}', space=vmem, size = 0x12000, scoped, tag = 'internal scratch']
  %s0 = inlined_call_operand.hbm [shape: bf16[1,440,128], index: 0, kind: input, shape index: {}]
  %s1 = inlined_call_operand.hbm [shape: bf16[9,128,256], index: 1, kind: input, shape index: {}]
  %s2 = inlined_call_operand.hbm [shape: f32[1,256], index: 2, kind: input, shape index: {}]
  %s3 = inlined_call_operand.hbm [shape: f32[1,384,256], index: 3, kind: output, shape index: {}]
  %s4 = sld [smem:[#allocation0]]
  $region57: #{tpu_custom_call.1} parent=0
    _
  %s6 = ssub.s32 1, %s4
  %s7 = scalar_select 0, %s6, %s4
  $region1: #{tpu_custom_call.1} parent=0
    #allocation2 [shape = 'u8[112640]{0}', space=vmem, size = 0x1b800, scoped, tag = 'input window, operand 0, single buffered']
    #allocation3 [shape = 's32[2]{0}', space=sflag, size = 0x8, scoped, tag = 'scoped memory for tpu_custom_call.1']
    #allocation4 [shape = 's32[2]{0}', space=sflag, size = 0x8, scoped, tag = 'scoped memory for tpu_custom_call.1']
    #allocation5 [shape = 'u8[589824]{0}', space=vmem, size = 0x90000, scoped, tag = 'input window, operand 1, single buffered']
    #allocation6 [shape = 's32[1]{0}', space=sflag, size = 0x4, scoped, tag = 'scoped memory for tpu_custom_call.1']
    #allocation7 [shape = 'u8[1024]{0}', space=vmem, size = 0x400, scoped, tag = 'input window, operand 2, single buffered']
    #allocation8 [shape = 'u8[262144]{0}', space=vmem, size = 0x40000, scoped, tag = 'output window, operand 0']
    %8 = vsyncpa [#allocation3], 0
    %9 = vsyncpa [#allocation6], 0
    %10 = vsyncpa [#allocation4], 0
    %s11 = scalar_lea.sflag [#allocation4], 1
    %12 = vsyncpa %s11, 0
    loop: start=0, step=1, limit=5
    $region2: #{tpu_custom_call.1} parent=1 // loop_pre_header
      _
    $region3: #{tpu_custom_call.1} parent=1 // loop_header
      %s14 = sphi 0, %s18
      %p15 = scmp.ge.s32.totalorder %s14, 5
      %s21 = sphi 0, %s40
      %s22 = sphi 0, %s36
      %s23 = sphi 0, %s32
      %s24 = sphi 0, %s21
      %s25 = sphi 0, %s22
      %s26 = sphi 0, %s23
      %s27 = sphi 0, %s24
      %s28 = sphi 0, %s25
      %s29 = sphi 0, %s26
      %s43 = sphi 0, %s45
      %s46 = sphi 0, %s43
      %s47 = sphi 0, %s46
      %s63 = sphi 0, %s47
      %s69 = sphi 0, %s71
      %s72 = sphi 0, %s69
      %s73 = sphi 0, %s72
      %s89 = sphi 0, %s73
      %s95 = sphi 0, %s97
      %s98 = sphi 0, %s95
      %s99 = sphi 0, %s98
      %s115 = sphi 0, %s99
      %s125 = sphi 0, %s127
      %s128 = sphi 0, %s125
      %s129 = sphi 0, %s128
      %s145 = sphi 0, %s129
    $region4: #{tpu_custom_call.1} parent=1 // loop_header_branch
      %17 = sbr.rel (%p15) target = $region8
    $region5: #{tpu_custom_call.1} parent=1 // loop_body
      %s19 = ssub.s32 %s14, 1
      %s20 = ssub.s32 %s14, 2
      %s30 = sadd.s32 1, %s23
      %p31 = scmp.ge.s32.totalorder %s30, 3
      %s32 = scalar_select %p31, 0, %s30
      %s33 = sadd.s32 1, %s22
      %s34 = scalar_select %p31, %s33, %s22
      %p35 = scmp.ge.s32.totalorder %s34, 1
      %s36 = scalar_select %p35, 0, %s34
      %s37 = sadd.s32 1, %s21
      %s38 = scalar_select %p35, %s37, %s21
      %p39 = scmp.ge.s32.totalorder %s38, 1
      %s40 = scalar_select %p39, 0, %s38
      %s41 = ssub.s32 %s21, %s40
      %p42 = scmp.eq.s32.totalorder %s41, 0
      %s44 = sadd.s32 %s43, 1
      %s45 = scalar_select %p42, %s43, %s44
      %p48 = pneg %p42
      %p49 = scmp.eq.s32.totalorder %s14, 2
      %p50 = por %p48, %p49
      %p51 = scmp.ne.s32.totalorder %s43, %s46
      %p52 = scmp.eq.s32.totalorder %s14, 0
      %p53 = por %p51, %p52
      %p54 = scmp.ne.s32.totalorder %s43, %s46
      %p55 = scmp.eq.s32.totalorder %s19, 2
      %p56 = por %p54, %p55
      %p57 = scmp.ne.s32.totalorder %s46, %s47
      %p58 = scmp.eq.s32.totalorder %s19, 0
      %p59 = por %p57, %p58
      %p60 = scmp.ne.s32.totalorder %s46, %s47
      %p61 = scmp.eq.s32.totalorder %s20, 2
      %p62 = por %p60, %p61
      %p64 = scmp.ne.s32.totalorder %s47, %s63
      %p65 = scmp.eq.s32.totalorder %s20, 0
      %p66 = por %p64, %p65
      %s67 = ssub.s32 %s22, %s36
      %p68 = scmp.eq.s32.totalorder %s67, 0
      %s70 = sadd.s32 %s69, 1
      %s71 = scalar_select %p68, %s69, %s70
      %p74 = pneg %p68
      %p75 = scmp.eq.s32.totalorder %s14, 2
      %p76 = por %p74, %p75
      %p77 = scmp.ne.s32.totalorder %s69, %s72
      %p78 = scmp.eq.s32.totalorder %s14, 0
      %p79 = por %p77, %p78
      %p80 = scmp.ne.s32.totalorder %s69, %s72
      %p81 = scmp.eq.s32.totalorder %s19, 2
      %p82 = por %p80, %p81
      %p83 = scmp.ne.s32.totalorder %s72, %s73
      %p84 = scmp.eq.s32.totalorder %s19, 0
      %p85 = por %p83, %p84
      %p86 = scmp.ne.s32.totalorder %s72, %s73
      %p87 = scmp.eq.s32.totalorder %s20, 2
      %p88 = por %p86, %p87
      %p90 = scmp.ne.s32.totalorder %s73, %s89
      %p91 = scmp.eq.s32.totalorder %s20, 0
      %p92 = por %p90, %p91
      %s93 = ssub.s32 %s22, %s36
      %p94 = scmp.eq.s32.totalorder %s93, 0
      %s96 = sadd.s32 %s95, 1
      %s97 = scalar_select %p94, %s95, %s96
      %p100 = pneg %p94
      %p101 = scmp.eq.s32.totalorder %s14, 2
      %p102 = por %p100, %p101
      %p103 = scmp.ne.s32.totalorder %s95, %s98
      %p104 = scmp.eq.s32.totalorder %s14, 0
      %p105 = por %p103, %p104
      %p106 = scmp.ne.s32.totalorder %s95, %s98
      %p107 = scmp.eq.s32.totalorder %s19, 2
      %p108 = por %p106, %p107
      %p109 = scmp.ne.s32.totalorder %s98, %s99
      %p110 = scmp.eq.s32.totalorder %s19, 0
      %p111 = por %p109, %p110
      %p112 = scmp.ne.s32.totalorder %s98, %s99
      %p113 = scmp.eq.s32.totalorder %s20, 2
      %p114 = por %p112, %p113
      %p116 = scmp.ne.s32.totalorder %s99, %s115
      %p117 = scmp.eq.s32.totalorder %s20, 0
      %p118 = por %p116, %p117
      %s119 = ssub.s32 %s21, %s40
      %s120 = ssub.s32 %s23, %s32
      %s121 = sor.u32 %s119, %s120
      %s122 = ssub.s32 %s22, %s36
      %s123 = sor.u32 %s121, %s122
      %p124 = scmp.eq.s32.totalorder %s123, 0
      %s126 = sadd.s32 %s125, 1
      %s127 = scalar_select %p124, %s125, %s126
      %p130 = pneg %p124
      %p131 = scmp.eq.s32.totalorder %s14, 2
      %p132 = por %p130, %p131
      %p133 = scmp.ne.s32.totalorder %s125, %s128
      %p134 = scmp.eq.s32.totalorder %s14, 0
      %p135 = por %p133, %p134
      %p136 = scmp.ne.s32.totalorder %s125, %s128
      %p137 = scmp.eq.s32.totalorder %s19, 2
      %p138 = por %p136, %p137
      %p139 = scmp.ne.s32.totalorder %s128, %s129
      %p140 = scmp.eq.s32.totalorder %s19, 0
      %p141 = por %p139, %p140
      %p142 = scmp.ne.s32.totalorder %s128, %s129
      %p143 = scmp.eq.s32.totalorder %s20, 2
      %p144 = por %p142, %p143
      %p146 = scmp.ne.s32.totalorder %s129, %s145
      %p147 = scmp.eq.s32.totalorder %s20, 0
      %p148 = por %p146, %p147
      %p149 = scmp.le.s32.totalorder 1, %s14
      %p150 = scmp.lt.s32.totalorder %s14, 4
      %p151 = pnand %p149, %p150
      %p152 = pneg %p151
      // Predicated region
      $region9: #{tpu_custom_call.1} parent=5 // pred_check
        _
      $region10: #{tpu_custom_call.1} parent=5 // pred_check_branch
        %154 = sbr.rel (%p151) target = $region12
      $region11: #{tpu_custom_call.1} parent=5 // pred_region
        %s155 = ssub.s32 %s14, 1
        // Predicated region
        $region13: #{tpu_custom_call.1} parent=11 // pred_check
          %p156 = pneg %p59
        $region14: #{tpu_custom_call.1} parent=11 // pred_check_branch
          %158 = sbr.rel (%p156) target = $region16
        $region15: #{tpu_custom_call.1} parent=11 // pred_region
          %s160 = ssub.s32 3520, 3520
          %161 = vsyncadd [#allocation3], %s160
          %s162 = smul.addr %s24, 55
          %s163 = smul.addr %s162, 64
          %s164 = scalar_lea.hbm %s0, %s163
          %s165 = sshll.u32 [#allocation2], 4
          %s166 = int_to_ptr.vmem [resolvable:$true] %s165
          %171 = dma.hbm_to_vmem [thread:$0]  %s164, 3520, %s166, [#allocation3], 64, 64, 4
        $region16: #{tpu_custom_call.1} parent=11 // pred_fallthru
          _
        // Predicated region
        $region17: #{tpu_custom_call.1} parent=11 // pred_check
          %p172 = pneg %p85
        $region18: #{tpu_custom_call.1} parent=11 // pred_check_branch
          %174 = sbr.rel (%p172) target = $region20
        $region19: #{tpu_custom_call.1} parent=11 // pred_region
          %s175 = smul.u32 2, %s25
          %s177 = ssub.s32 18432, 18432
          %178 = vsyncadd [#allocation6], %s177
          %s179 = smul.addr %s175, 64
          %s180 = scalar_lea.hbm %s1, %s179
          %s181 = sshll.u32 [#allocation5], 4
          %s182 = int_to_ptr.vmem [resolvable:$true] %s181
          %187 = dma.hbm_to_vmem [thread:$0]  %s180, 18432, %s182, [#allocation6], 128, 128, 8
        $region20: #{tpu_custom_call.1} parent=11 // pred_fallthru
          _
        // Predicated region
        $region21: #{tpu_custom_call.1} parent=11 // pred_check
          %p188 = pneg %p111
        $region22: #{tpu_custom_call.1} parent=11 // pred_check_branch
          %190 = sbr.rel (%p188) target = $region24
        $region23: #{tpu_custom_call.1} parent=11 // pred_region
          %s191 = smul.u32 2, %s25
          %s193 = ssub.s32 32, 32
          %194 = vsyncadd [#allocation6], %s193
          %s195 = smul.addr %s191, 16
          %s196 = scalar_lea.hbm %s2, %s195
          %s198 = sshll.u32 [#allocation7], 4
          %s199 = int_to_ptr.vmem [resolvable:$true] %s198
          %201 = dma.hbm_to_vmem [thread:$0]  %s196, 32, %s199, [#allocation6]
        $region24: #{tpu_custom_call.1} parent=11 // pred_fallthru
          _
      $region12: #{tpu_custom_call.1} parent=5 // pred_fallthru
        _
      %p202 = scmp.lt.s32.totalorder %s14, 3
      // Predicated region
      $region25: #{tpu_custom_call.1} parent=5 // pred_check
        %p203 = pneg %p202
      $region26: #{tpu_custom_call.1} parent=5 // pred_check_branch
        %205 = sbr.rel (%p203) target = $region28
      $region27: #{tpu_custom_call.1} parent=5 // pred_region
        _
      $region28: #{tpu_custom_call.1} parent=5 // pred_fallthru
        _
      %p206 = scmp.le.s32.totalorder 1, %s14
      %p207 = scmp.lt.s32.totalorder %s14, 4
      %p208 = pnand %p206, %p207
      %p209 = pneg %p208
      // Predicated region
      $region29: #{tpu_custom_call.1} parent=5 // pred_check
        _
      $region30: #{tpu_custom_call.1} parent=5 // pred_check_branch
        %211 = sbr.rel (%p208) target = $region32
      $region31: #{tpu_custom_call.1} parent=5 // pred_region
        %s212 = ssub.s32 %s14, 1
        // Predicated region
        $region33: #{tpu_custom_call.1} parent=31 // pred_check
          %p213 = pneg %p59
        $region34: #{tpu_custom_call.1} parent=31 // pred_check_branch
          %215 = sbr.rel (%p213) target = $region36
        $region35: #{tpu_custom_call.1} parent=31 // pred_region
          %216 = dma.done [#allocation3], 3520
        $region36: #{tpu_custom_call.1} parent=31 // pred_fallthru
          _
        // Predicated region
        $region37: #{tpu_custom_call.1} parent=31 // pred_check
          %p217 = pneg %p85
        $region38: #{tpu_custom_call.1} parent=31 // pred_check_branch
          %219 = sbr.rel (%p217) target = $region40
        $region39: #{tpu_custom_call.1} parent=31 // pred_region
          %220 = dma.done [#allocation6], 18432
        $region40: #{tpu_custom_call.1} parent=31 // pred_fallthru
          _
        // Predicated region
        $region41: #{tpu_custom_call.1} parent=31 // pred_check
          %p221 = pneg %p111
        $region42: #{tpu_custom_call.1} parent=31 // pred_check_branch
          %223 = sbr.rel (%p221) target = $region44
        $region43: #{tpu_custom_call.1} parent=31 // pred_region
          %224 = dma.done [#allocation6], 32
        $region44: #{tpu_custom_call.1} parent=31 // pred_fallthru
          _
        %p225 = pneg %p59
        %p226 = pneg %p56
        %p227 = pneg %p85
        %p228 = pneg %p82
        %p229 = pneg %p111
        %p230 = pneg %p108
        %p231 = pneg %p141
        %p232 = pneg %p138
        %s233 = sand.u32 %s128, 1
        %s234 = scalar_lea.sflag [#allocation4], %s233
        %s235 = sand.u32 %s128, 1
        %s236 = smul.addr %s235, 256
        %s237 = scalar_lea.vmem [#allocation8], %s236
        %s238 = smul.u32 2, %s25
        %s239 = smul.u32 2, %s25
        %s240 = smul.u32 16, %s26
        %s241 = smul.u32 2, %s25
        %s243 = smul.u32 %s26, 128
        %s244 = sshra.s32 %s243, 3
        %s245 = sand.u32 %s243, 7
        %s246 = smul.addr %s244, 4
        %s247 = scalar_lea.vmem [#allocation2], %s246
        %v248 = vld [vmem:[%s247] sm:$0xf]
        %v249 = vld [vmem:[%s247 + $0x4] sm:$0xf]
        %v250 = vld [vmem:[%s247 + $0x8] sm:$0xf]
        %v251 = vld [vmem:[%s247 + $0xc] sm:$0xf]
        %v252 = vld [vmem:[%s247 + $0x10] sm:$0xf]
        %v253 = vld [vmem:[%s247 + $0x14] sm:$0xf]
        %v254 = vld [vmem:[%s247 + $0x18] sm:$0xf]
        %v255 = vld [vmem:[%s247 + $0x1c] sm:$0xf]
        %v256 = vld [vmem:[%s247 + $0x20] sm:$0xf]
        %v257 = vld [vmem:[%s247 + $0x24] sm:$0xf]
        %v258 = vld [vmem:[%s247 + $0x28] sm:$0xf]
        %v259 = vld [vmem:[%s247 + $0x2c] sm:$0xf]
        %v260 = vld [vmem:[%s247 + $0x30] sm:$0xf]
        %v261 = vld [vmem:[%s247 + $0x34] sm:$0xf]
        %v262 = vld [vmem:[%s247 + $0x38] sm:$0xf]
        %v263 = vld [vmem:[%s247 + $0x3c] sm:$0xf]
        %v264 = vld [vmem:[%s247 + $0x40] sm:$0xf]
        %v265 = vld [vmem:[#allocation5] sm:$0xff]
        %v266 = vld [vmem:[#allocation5 + $0x8] sm:$0xff]
        %v267 = vld [vmem:[#allocation5 + $0x10] sm:$0xff]
        %v268 = vld [vmem:[#allocation5 + $0x18] sm:$0xff]
        %v269 = vld [vmem:[#allocation5 + $0x20] sm:$0xff]
        %v270 = vld [vmem:[#allocation5 + $0x28] sm:$0xff]
        %v271 = vld [vmem:[#allocation5 + $0x30] sm:$0xff]
        %v272 = vld [vmem:[#allocation5 + $0x38] sm:$0xff]
        %v273 = vld [vmem:[#allocation5 + $0x40] sm:$0xff]
        %v274 = vld [vmem:[#allocation5 + $0x48] sm:$0xff]
        %v275 = vld [vmem:[#allocation5 + $0x50] sm:$0xff]
        %v276 = vld [vmem:[#allocation5 + $0x58] sm:$0xff]
        %v277 = vld [vmem:[#allocation5 + $0x60] sm:$0xff]
        %v278 = vld [vmem:[#allocation5 + $0x68] sm:$0xff]
        %v279 = vld [vmem:[#allocation5 + $0x70] sm:$0xff]
        %v280 = vld [vmem:[#allocation5 + $0x78] sm:$0xff]
        %v298 = vunpack.c.l.b16 %v248
        %v299 = vunpack.c.l.b16 %v249
        %v300 = vunpack.c.l.b16 %v250
        %v301 = vunpack.c.l.b16 %v251
        %v302 = vunpack.c.l.b16 %v252
        %v303 = vunpack.c.l.b16 %v253
        %v304 = vunpack.c.l.b16 %v254
        %v305 = vunpack.c.l.b16 %v255
        %v306 = vunpack.c.l.b16 %v256
        %v307 = vunpack.c.l.b16 %v257
        %v308 = vunpack.c.l.b16 %v258
        %v309 = vunpack.c.l.b16 %v259
        %v310 = vunpack.c.l.b16 %v260
        %v311 = vunpack.c.l.b16 %v261
        %v312 = vunpack.c.l.b16 %v262
        %v313 = vunpack.c.l.b16 %v263
        %v314 = vunpack.c.l.b16 %v264
        %v315 = vpack.c.b16 %v299, %v298
        %v316 = vpack.c.b16 %v301, %v300
        %v317 = vpack.c.b16 %v303, %v302
        %v318 = vpack.c.b16 %v305, %v304
        %v319 = vpack.c.b16 %v307, %v306
        %v320 = vpack.c.b16 %v309, %v308
        %v321 = vpack.c.b16 %v311, %v310
        %v322 = vpack.c.b16 %v313, %v312
        %v323 = vpack.c.b16 %v314, %v314
        %v349 = vunpack.c.l.b16 %v265
        %v350 = vunpack.c.h.b16 %v265
        %v351 = vunpack.c.l.b16 %v266
        %v352 = vunpack.c.h.b16 %v266
        %v353 = vunpack.c.l.b16 %v267
        %v354 = vunpack.c.h.b16 %v267
        %v355 = vunpack.c.l.b16 %v268
        %v356 = vunpack.c.h.b16 %v268
        %v357 = vunpack.c.l.b16 %v269
        %v358 = vunpack.c.h.b16 %v269
        %v359 = vunpack.c.l.b16 %v270
        %v360 = vunpack.c.h.b16 %v270
        %v361 = vunpack.c.l.b16 %v271
        %v362 = vunpack.c.h.b16 %v271
        %v363 = vunpack.c.l.b16 %v272
        %v364 = vunpack.c.h.b16 %v272
        %v365 = vunpack.c.l.b16 %v273
        %v366 = vunpack.c.h.b16 %v273
        %v367 = vunpack.c.l.b16 %v274
        %v368 = vunpack.c.h.b16 %v274
        %v369 = vunpack.c.l.b16 %v275
        %v370 = vunpack.c.h.b16 %v275
        %v371 = vunpack.c.l.b16 %v276
        %v372 = vunpack.c.h.b16 %v276
        %v373 = vunpack.c.l.b16 %v277
        %v374 = vunpack.c.h.b16 %v277
        %v375 = vunpack.c.l.b16 %v278
        %v376 = vunpack.c.h.b16 %v278
        %v377 = vunpack.c.l.b16 %v279
        %v378 = vunpack.c.h.b16 %v279
        %v379 = vunpack.c.l.b16 %v280
        %v380 = vunpack.c.h.b16 %v280
        %v381 = vpack.c.b16 %v351, %v349
        %v382 = vpack.c.b16 %v352, %v350
        %v383 = vpack.c.b16 %v355, %v353
        %v384 = vpack.c.b16 %v356, %v354
        %v385 = vpack.c.b16 %v359, %v357
        %v386 = vpack.c.b16 %v360, %v358
        %v387 = vpack.c.b16 %v363, %v361
        %v388 = vpack.c.b16 %v364, %v362
        %v389 = vpack.c.b16 %v367, %v365
        %v390 = vpack.c.b16 %v368, %v366
        %v391 = vpack.c.b16 %v371, %v369
        %v392 = vpack.c.b16 %v372, %v370
        %v393 = vpack.c.b16 %v375, %v373
        %v394 = vpack.c.b16 %v376, %v374
        %v395 = vpack.c.b16 %v379, %v377
        %v396 = vpack.c.b16 %v380, %v378
        %413 = vmatprep.subr.bf16.mxu0 %v382
        %414 = vmatpush1.bf16.msra.mxu0 %v381
        %415 = vmatprep.subr.bf16.mxu0 %v384
        %416 = vmatpush1.bf16.msra.mxu0 %v383
        %417 = vmatprep.subr.bf16.mxu0 %v386
        %418 = vmatpush1.bf16.msra.mxu0 %v385
        %419 = vmatprep.subr.bf16.mxu0 %v388
        %420 = vmatpush1.bf16.msra.mxu0 %v387
        %421 = vmatprep.subr.bf16.mxu0 %v390
        %422 = vmatpush1.bf16.msra.mxu0 %v389
        %423 = vmatprep.subr.bf16.mxu0 %v392
        %424 = vmatpush1.bf16.msra.mxu0 %v391
        %425 = vmatprep.subr.bf16.mxu0 %v394
        %426 = vmatpush1.bf16.msra.mxu0 %v393
        %427 = vmatprep.subr.bf16.mxu0 %v396
        %428 = vmatpush1.bf16.msra.mxu0 %v395
        %429 = vmatprep.subr.bf16.mxu0 0
        %430 = vmatpush1.bf16.msra.mxu0 0
        %431 = vmatprep.subr.bf16.mxu0 0
        %432 = vmatpush1.bf16.msra.mxu0 0
        %433 = vmatprep.subr.bf16.mxu0 0
        %434 = vmatpush1.bf16.msra.mxu0 0
        %435 = vmatprep.subr.bf16.mxu0 0
        %436 = vmatpush1.bf16.msra.mxu0 0
        %437 = vmatprep.subr.bf16.mxu0 0
        %438 = vmatpush1.bf16.msra.mxu0 0
        %439 = vmatprep.subr.bf16.mxu0 0
        %440 = vmatpush1.bf16.msra.mxu0 0
        %441 = vmatprep.subr.bf16.mxu0 0
        %442 = vmatpush1.bf16.msra.mxu0 0
        %443 = vmatprep.subr.bf16.mxu0 0
        %444 = vmatpush1.bf16.msra.mxu0 0
        %445 = vmatprep.mubr.bf16.mxu0 0
        %446 = vmatmul.mubr.bf16.gmra.mrb[0].mxu0 %v315
        %v447 = vpop.f32.mrb[0].mxu0
        %v448 = vadd.f32 0.0, %v447
        %v449 = vpop.f32.mrb[0].mxu0
        %v450 = vadd.f32 0.0, %v449
        %v451 = vpop.f32.mrb[0].mxu0
        %v452 = vadd.f32 0.0, %v451
        %v453 = vpop.f32.mrb[0].mxu0
        %v454 = vadd.f32 0.0, %v453
        %455 = vmatprep.mubr.bf16.mxu0 0
        %456 = vmatmul.mubr.bf16.gmra.mrb[0].mxu0 %v316
        %v457 = vpop.f32.mrb[0].mxu0
        %v458 = vadd.f32 0.0, %v457
        %v459 = vpop.f32.mrb[0].mxu0
        %v460 = vadd.f32 0.0, %v459
        %v461 = vpop.f32.mrb[0].mxu0
        %v462 = vadd.f32 0.0, %v461
        %v463 = vpop.f32.mrb[0].mxu0
        %v464 = vadd.f32 0.0, %v463
        %465 = vmatprep.mubr.bf16.mxu0 0
        %466 = vmatmul.mubr.bf16.gmra.mrb[0].mxu0 %v317
        %v467 = vpop.f32.mrb[0].mxu0
        %v468 = vadd.f32 0.0, %v467
        %v469 = vpop.f32.mrb[0].mxu0
        %v470 = vadd.f32 0.0, %v469
        %v471 = vpop.f32.mrb[0].mxu0
        %v472 = vadd.f32 0.0, %v471
        %v473 = vpop.f32.mrb[0].mxu0
        %v474 = vadd.f32 0.0, %v473
        %475 = vmatprep.mubr.bf16.mxu0 0
        %476 = vmatmul.mubr.bf16.gmra.mrb[0].mxu0 %v318
        %v477 = vpop.f32.mrb[0].mxu0
        %v478 = vadd.f32 0.0, %v477
        %v479 = vpop.f32.mrb[0].mxu0
        %v480 = vadd.f32 0.0, %v479
        %v481 = vpop.f32.mrb[0].mxu0
        %v482 = vadd.f32 0.0, %v481
        %v483 = vpop.f32.mrb[0].mxu0
        %v484 = vadd.f32 0.0, %v483
        %485 = vmatprep.mubr.bf16.mxu0 0
        %486 = vmatmul.mubr.bf16.gmra.mrb[0].mxu0 %v319
        %v487 = vpop.f32.mrb[0].mxu0
        %v488 = vadd.f32 0.0, %v487
        %v489 = vpop.f32.mrb[0].mxu0
        %v490 = vadd.f32 0.0, %v489
        %v491 = vpop.f32.mrb[0].mxu0
        %v492 = vadd.f32 0.0, %v491
        %v493 = vpop.f32.mrb[0].mxu0
        %v494 = vadd.f32 0.0, %v493
        %495 = vmatprep.mubr.bf16.mxu0 0
        %496 = vmatmul.mubr.bf16.gmra.mrb[0].mxu0 %v320
        %v497 = vpop.f32.mrb[0].mxu0
        %v498 = vadd.f32 0.0, %v497
        %v499 = vpop.f32.mrb[0].mxu0
        %v500 = vadd.f32 0.0, %v499
        %v501 = vpop.f32.mrb[0].mxu0
        %v502 = vadd.f32 0.0, %v501
        %v503 = vpop.f32.mrb[0].mxu0
        %v504 = vadd.f32 0.0, %v503
        %505 = vmatprep.mubr.bf16.mxu0 0
        %506 = vmatmul.mubr.bf16.gmra.mrb[0].mxu0 %v321
        %v507 = vpop.f32.mrb[0].mxu0
        %v508 = vadd.f32 0.0, %v507
        %v509 = vpop.f32.mrb[0].mxu0
        %v510 = vadd.f32 0.0, %v509
        %v511 = vpop.f32.mrb[0].mxu0
        %v512 = vadd.f32 0.0, %v511
        %v513 = vpop.f32.mrb[0].mxu0
        %v514 = vadd.f32 0.0, %v513
        %515 = vmatprep.mubr.bf16.mxu0 0
        %516 = vmatmul.mubr.bf16.gmra.mrb[0].mxu0 %v322
        %v517 = vpop.f32.mrb[0].mxu0
        %v518 = vadd.f32 0.0, %v517
        %v519 = vpop.f32.mrb[0].mxu0
        %v520 = vadd.f32 0.0, %v519
        %v521 = vpop.f32.mrb[0].mxu0
        %v522 = vadd.f32 0.0, %v521
        %v523 = vpop.f32.mrb[0].mxu0
        %v524 = vadd.f32 0.0, %v523
        %525 = vmatprep.mubr.bf16.mxu0 0
        %526 = vmatmul.mubr.bf16.gmra.mrb[0].mxu0 %v323
        %v527 = vpop.f32.mrb[0].mxu0
        %v528 = vpop.f32.mrb[0].mxu0
        %v529 = vpop.f32.mrb[0].mxu0
        %v530 = vpop.f32.mrb[0].mxu0
        %531 = vdwg.mxu0
        %s532 = scalar_lea.vmem [#allocation5], 128
        %v533 = vld [vmem:[%s532] sm:$0xff]
        %v534 = vld [vmem:[%s532 + $0x8] sm:$0xff]
        %v535 = vld [vmem:[%s532 + $0x10] sm:$0xff]
        %v536 = vld [vmem:[%s532 + $0x18] sm:$0xff]
        %v537 = vld [vmem:[%s532 + $0x20] sm:$0xff]
        %v538 = vld [vmem:[%s532 + $0x28] sm:$0xff]
        %v539 = vld [vmem:[%s532 + $0x30] sm:$0xff]
        %v540 = vld [vmem:[%s532 + $0x38] sm:$0xff]
        %v541 = vld [vmem:[%s532 + $0x40] sm:$0xff]
        %v542 = vld [vmem:[%s532 + $0x48] sm:$0xff]
        %v543 = vld [vmem:[%s532 + $0x50] sm:$0xff]
        %v544 = vld [vmem:[%s532 + $0x58] sm:$0xff]
        %v545 = vld [vmem:[%s532 + $0x60] sm:$0xff]
        %v546 = vld [vmem:[%s532 + $0x68] sm:$0xff]
        %v547 = vld [vmem:[%s532 + $0x70] sm:$0xff]
        %v548 = vld [vmem:[%s532 + $0x78] sm:$0xff]
        %v565 = vunpack.c.l.b16 %v533
        %v566 = vunpack.c.h.b16 %v533
        %v567 = vunpack.c.l.b16 %v534
        %v568 = vunpack.c.h.b16 %v534
        %v569 = vunpack.c.l.b16 %v535
        %v570 = vunpack.c.h.b16 %v535
        %v571 = vunpack.c.l.b16 %v536
        %v572 = vunpack.c.h.b16 %v536
        %v573 = vunpack.c.l.b16 %v537
        %v574 = vunpack.c.h.b16 %v537
        %v575 = vunpack.c.l.b16 %v538
        %v576 = vunpack.c.h.b16 %v538
        %v577 = vunpack.c.l.b16 %v539
        %v578 = vunpack.c.h.b16 %v539
        %v579 = vunpack.c.l.b16 %v540
        %v580 = vunpack.c.h.b16 %v540
        %v581 = vunpack.c.l.b16 %v541
        %v582 = vunpack.c.h.b16 %v541
        %v583 = vunpack.c.l.b16 %v542
        %v584 = vunpack.c.h.b16 %v542
        %v585 = vunpack.c.l.b16 %v543
        %v586 = vunpack.c.h.b16 %v543
        %v587 = vunpack.c.l.b16 %v544
        %v588 = vunpack.c.h.b16 %v544
        %v589 = vunpack.c.l.b16 %v545
        %v590 = vunpack.c.h.b16 %v545
        %v591 = vunpack.c.l.b16 %v546
        %v592 = vunpack.c.h.b16 %v546
        %v593 = vunpack.c.l.b16 %v547
        %v594 = vunpack.c.h.b16 %v547
        %v595 = vunpack.c.l.b16 %v548
        %v596 = vunpack.c.h.b16 %v548
        %v597 = vpack.c.b16 %v567, %v565
        %v598 = vpack.c.b16 %v568, %v566
        %v599 = vpack.c.b16 %v571, %v569
        %v600 = vpack.c.b16 %v572, %v570
        %v601 = vpack.c.b16 %v575, %v573
        %v602 = vpack.c.b16 %v576, %v574
        %v603 = vpack.c.b16 %v579, %v577
        %v604 = vpack.c.b16 %v580, %v578
        %v605 = vpack.c.b16 %v583, %v581
        %v606 = vpack.c.b16 %v584, %v582
        %v607 = vpack.c.b16 %v587, %v585
        %v608 = vpack.c.b16 %v588, %v586
        %v609 = vpack.c.b16 %v591, %v589
        %v610 = vpack.c.b16 %v592, %v590
        %v611 = vpack.c.b16 %v595, %v593
        %v612 = vpack.c.b16 %v596, %v594
        %629 = vmatprep.subr.bf16.mxu0 %v598
        %630 = vmatpush1.bf16.msra.mxu0 %v597
        %631 = vmatprep.subr.bf16.mxu0 %v600
        %632 = vmatpush1.bf16.msra.mxu0 %v599
        %633 = vmatprep.subr.bf16.mxu0 %v602
        %634 = vmatpush1.bf16.msra.mxu0 %v601
        %635 = vmatprep.subr.bf16.mxu0 %v604
        %636 = vmatpush1.bf16.msra.mxu0 %v603
        %637 = vmatprep.subr.bf16.mxu0 %v606
        %638 = vmatpush1.bf16.msra.mxu0 %v605
        %639 = vmatprep.subr.bf16.mxu0 %v608
        %640 = vmatpush1.bf16.msra.mxu0 %v607
        %641 = vmatprep.subr.bf16.mxu0 %v610
        %642 = vmatpush1.bf16.msra.mxu0 %v609
        %643 = vmatprep.subr.bf16.mxu0 %v612
        %644 = vmatpush1.bf16.msra.mxu0 %v611
        %645 = vmatprep.subr.bf16.mxu0 0
        %646 = vmatpush1.bf16.msra.mxu0 0
        %647 = vmatprep.subr.bf16.mxu0 0
        %648 = vmatpush1.bf16.msra.mxu0 0
        %649 = vmatprep.subr.bf16.mxu0 0
        %650 = vmatpush1.bf16.msra.mxu0 0
        %651 = vmatprep.subr.bf16.mxu0 0
        %652 = vmatpush1.bf16.msra.mxu0 0
        %653 = vmatprep.subr.bf16.mxu0 0
        %654 = vmatpush1.bf16.msra.mxu0 0
        %655 = vmatprep.subr.bf16.mxu0 0
        %656 = vmatpush1.bf16.msra.mxu0 0
        %657 = vmatprep.subr.bf16.mxu0 0
        %658 = vmatpush1.bf16.msra.mxu0 0
        %659 = vmatprep.subr.bf16.mxu0 0
        %660 = vmatpush1.bf16.msra.mxu0 0
        %661 = vmatprep.mubr.bf16.mxu0 0
        %662 = vmatmul.mubr.bf16.gmra.mrb[0].mxu0 %v315
        %v663 = vpop.f32.mrb[0].mxu0
        %v664 = vadd.f32 0.0, %v663
        %v665 = vpop.f32.mrb[0].mxu0
        %v666 = vadd.f32 0.0, %v665
        %v667 = vpop.f32.mrb[0].mxu0
        %v668 = vadd.f32 0.0, %v667
        %v669 = vpop.f32.mrb[0].mxu0
        %v670 = vadd.f32 0.0, %v669
        %671 = vmatprep.mubr.bf16.mxu0 0
        %672 = vmatmul.mubr.bf16.gmra.mrb[0].mxu0 %v316
        %v673 = vpop.f32.mrb[0].mxu0
        %v674 = vadd.f32 0.0, %v673
        %v675 = vpop.f32.mrb[0].mxu0
        %v676 = vadd.f32 0.0, %v675
        %v677 = vpop.f32.mrb[0].mxu0
        %v678 = vadd.f32 0.0, %v677
        %v679 = vpop.f32.mrb[0].mxu0
        %v680 = vadd.f32 0.0, %v679
        %681 = vmatprep.mubr.bf16.mxu0 0
        %682 = vmatmul.mubr.bf16.gmra.mrb[0].mxu0 %v317
        %v683 = vpop.f32.mrb[0].mxu0
        %v684 = vadd.f32 0.0, %v683
        %v685 = vpop.f32.mrb[0].mxu0
        %v686 = vadd.f32 0.0, %v685
        %v687 = vpop.f32.mrb[0].mxu0
        %v688 = vadd.f32 0.0, %v687
        %v689 = vpop.f32.mrb[0].mxu0
        %v690 = vadd.f32 0.0, %v689
        %691 = vmatprep.mubr.bf16.mxu0 0
        %692 = vmatmul.mubr.bf16.gmra.mrb[0].mxu0 %v318
        %v693 = vpop.f32.mrb[0].mxu0
        %v694 = vadd.f32 0.0, %v693
        %v695 = vpop.f32.mrb[0].mxu0
        %v696 = vadd.f32 0.0, %v695
        %v697 = vpop.f32.mrb[0].mxu0
        %v698 = vadd.f32 0.0, %v697
        %v699 = vpop.f32.mrb[0].mxu0
        %v700 = vadd.f32 0.0, %v699
        %701 = vmatprep.mubr.bf16.mxu0 0
        %702 = vmatmul.mubr.bf16.gmra.mrb[0].mxu0 %v319
        %v703 = vpop.f32.mrb[0].mxu0
        %v704 = vadd.f32 0.0, %v703
        %v705 = vpop.f32.mrb[0].mxu0
        %v706 = vadd.f32 0.0, %v705
        %v707 = vpop.f32.mrb[0].mxu0
        %v708 = vadd.f32 0.0, %v707
        %v709 = vpop.f32.mrb[0].mxu0
        %v710 = vadd.f32 0.0, %v709
        %711 = vmatprep.mubr.bf16.mxu0 0
        %712 = vmatmul.mubr.bf16.gmra.mrb[0].mxu0 %v320
        %v713 = vpop.f32.mrb[0].mxu0
        %v714 = vadd.f32 0.0, %v713
        %v715 = vpop.f32.mrb[0].mxu0
        %v716 = vadd.f32 0.0, %v715
        %v717 = vpop.f32.mrb[0].mxu0
        %v718 = vadd.f32 0.0, %v717
        %v719 = vpop.f32.mrb[0].mxu0
        %v720 = vadd.f32 0.0, %v719
        %721 = vmatprep.mubr.bf16.mxu0 0
        %722 = vmatmul.mubr.bf16.gmra.mrb[0].mxu0 %v321
        %v723 = vpop.f32.mrb[0].mxu0
        %v724 = vadd.f32 0.0, %v723
        %v725 = vpop.f32.mrb[0].mxu0
        %v726 = vadd.f32 0.0, %v725
        %v727 = vpop.f32.mrb[0].mxu0
        %v728 = vadd.f32 0.0, %v727
        %v729 = vpop.f32.mrb[0].mxu0
        %v730 = vadd.f32 0.0, %v729
        %731 = vmatprep.mubr.bf16.mxu0 0
        %732 = vmatmul.mubr.bf16.gmra.mrb[0].mxu0 %v322
        %v733 = vpop.f32.mrb[0].mxu0
        %v734 = vadd.f32 0.0, %v733
        %v735 = vpop.f32.mrb[0].mxu0
        %v736 = vadd.f32 0.0, %v735
        %v737 = vpop.f32.mrb[0].mxu0
        %v738 = vadd.f32 0.0, %v737
        %v739 = vpop.f32.mrb[0].mxu0
        %v740 = vadd.f32 0.0, %v739
        %741 = vmatprep.mubr.bf16.mxu0 0
        %742 = vmatmul.mubr.bf16.gmra.mrb[0].mxu0 %v323
        %v743 = vpop.f32.mrb[0].mxu0
        %v744 = vadd.f32 0.0, %v743
        %v745 = vpop.f32.mrb[0].mxu0
        %v746 = vadd.f32 0.0, %v745
        %v747 = vpop.f32.mrb[0].mxu0
        %v748 = vpop.f32.mrb[0].mxu0
        %749 = vdwg.mxu0
        %vm784 = vcmask 1046528
        %v785 = vrot.slane %v664, 1
        %v786 = vrot.slane %v668, 1
        %v787 = vsel %vm784, %v785, %v786
        %v788 = vrot.slane %v666, 1
        %v789 = vrot.slane %v670, 1
        %v790 = vsel %vm784, %v788, %v789
        %v791 = vrot.slane %v674, 1
        %v792 = vsel %vm784, %v786, %v791
        %v793 = vrot.slane %v676, 1
        %v794 = vsel %vm784, %v789, %v793
        %v795 = vrot.slane %v678, 1
        %v796 = vsel %vm784, %v791, %v795
        %v797 = vrot.slane %v680, 1
        %v798 = vsel %vm784, %v793, %v797
        %v799 = vrot.slane %v684, 1
        %v800 = vsel %vm784, %v795, %v799
        %v801 = vrot.slane %v686, 1
        %v802 = vsel %vm784, %v797, %v801
        %v803 = vrot.slane %v688, 1
        %v804 = vsel %vm784, %v799, %v803
        %v805 = vrot.slane %v690, 1
        %v806 = vsel %vm784, %v801, %v805
        %v807 = vrot.slane %v694, 1
        %v808 = vsel %vm784, %v803, %v807
        %v809 = vrot.slane %v696, 1
        %v810 = vsel %vm784, %v805, %v809
        %v811 = vrot.slane %v698, 1
        %v812 = vsel %vm784, %v807, %v811
        %v813 = vrot.slane %v700, 1
        %v814 = vsel %vm784, %v809, %v813
        %v815 = vrot.slane %v704, 1
        %v816 = vsel %vm784, %v811, %v815
        %v817 = vrot.slane %v706, 1
        %v818 = vsel %vm784, %v813, %v817
        %v819 = vrot.slane %v708, 1
        %v820 = vsel %vm784, %v815, %v819
        %v821 = vrot.slane %v710, 1
        %v822 = vsel %vm784, %v817, %v821
        %v823 = vrot.slane %v714, 1
        %v824 = vsel %vm784, %v819, %v823
        %v825 = vrot.slane %v716, 1
        %v826 = vsel %vm784, %v821, %v825
        %v827 = vrot.slane %v718, 1
        %v828 = vsel %vm784, %v823, %v827
        %v829 = vrot.slane %v720, 1
        %v830 = vsel %vm784, %v825, %v829
        %v831 = vrot.slane %v724, 1
        %v832 = vsel %vm784, %v827, %v831
        %v833 = vrot.slane %v726, 1
        %v834 = vsel %vm784, %v829, %v833
        %v835 = vrot.slane %v728, 1
        %v836 = vsel %vm784, %v831, %v835
        %v837 = vrot.slane %v730, 1
        %v838 = vsel %vm784, %v833, %v837
        %v839 = vrot.slane %v734, 1
        %v840 = vsel %vm784, %v835, %v839
        %v841 = vrot.slane %v736, 1
        %v842 = vsel %vm784, %v837, %v841
        %v843 = vrot.slane %v738, 1
        %v844 = vsel %vm784, %v839, %v843
        %v845 = vrot.slane %v740, 1
        %v846 = vsel %vm784, %v841, %v845
        %v847 = vrot.slane %v744, 1
        %v848 = vsel %vm784, %v843, %v847
        %v849 = vrot.slane %v746, 1
        %v850 = vsel %vm784, %v845, %v849
        %v883 = vadd.f32 %v448, %v787
        %v884 = vadd.f32 %v450, %v790
        %v885 = vadd.f32 %v452, %v792
        %v886 = vadd.f32 %v454, %v794
        %v887 = vadd.f32 %v458, %v796
        %v888 = vadd.f32 %v460, %v798
        %v889 = vadd.f32 %v462, %v800
        %v890 = vadd.f32 %v464, %v802
        %v891 = vadd.f32 %v468, %v804
        %v892 = vadd.f32 %v470, %v806
        %v893 = vadd.f32 %v472, %v808
        %v894 = vadd.f32 %v474, %v810
        %v895 = vadd.f32 %v478, %v812
        %v896 = vadd.f32 %v480, %v814
        %v897 = vadd.f32 %v482, %v816
        %v898 = vadd.f32 %v484, %v818
        %v899 = vadd.f32 %v488, %v820
        %v900 = vadd.f32 %v490, %v822
        %v901 = vadd.f32 %v492, %v824
        %v902 = vadd.f32 %v494, %v826
        %v903 = vadd.f32 %v498, %v828
        %v904 = vadd.f32 %v500, %v830
        %v905 = vadd.f32 %v502, %v832
        %v906 = vadd.f32 %v504, %v834
        %v907 = vadd.f32 %v508, %v836
        %v908 = vadd.f32 %v510, %v838
        %v909 = vadd.f32 %v512, %v840
        %v910 = vadd.f32 %v514, %v842
        %v911 = vadd.f32 %v518, %v844
        %v912 = vadd.f32 %v520, %v846
        %v913 = vadd.f32 %v522, %v848
        %v914 = vadd.f32 %v524, %v850
        %s915 = scalar_lea.vmem [#allocation5], 256
        %v916 = vld [vmem:[%s915] sm:$0xff]
        %v917 = vld [vmem:[%s915 + $0x8] sm:$0xff]
        %v918 = vld [vmem:[%s915 + $0x10] sm:$0xff]
        %v919 = vld [vmem:[%s915 + $0x18] sm:$0xff]
        %v920 = vld [vmem:[%s915 + $0x20] sm:$0xff]
        %v921 = vld [vmem:[%s915 + $0x28] sm:$0xff]
        %v922 = vld [vmem:[%s915 + $0x30] sm:$0xff]
        %v923 = vld [vmem:[%s915 + $0x38] sm:$0xff]
        %v924 = vld [vmem:[%s915 + $0x40] sm:$0xff]
        %v925 = vld [vmem:[%s915 + $0x48] sm:$0xff]
        %v926 = vld [vmem:[%s915 + $0x50] sm:$0xff]
        %v927 = vld [vmem:[%s915 + $0x58] sm:$0xff]
        %v928 = vld [vmem:[%s915 + $0x60] sm:$0xff]
        %v929 = vld [vmem:[%s915 + $0x68] sm:$0xff]
        %v930 = vld [vmem:[%s915 + $0x70] sm:$0xff]
        %v931 = vld [vmem:[%s915 + $0x78] sm:$0xff]
        %v948 = vunpack.c.l.b16 %v916
        %v949 = vunpack.c.h.b16 %v916
        %v950 = vunpack.c.l.b16 %v917
        %v951 = vunpack.c.h.b16 %v917
        %v952 = vunpack.c.l.b16 %v918
        %v953 = vunpack.c.h.b16 %v918
        %v954 = vunpack.c.l.b16 %v919
        %v955 = vunpack.c.h.b16 %v919
        %v956 = vunpack.c.l.b16 %v920
        %v957 = vunpack.c.h.b16 %v920
        %v958 = vunpack.c.l.b16 %v921
        %v959 = vunpack.c.h.b16 %v921
        %v960 = vunpack.c.l.b16 %v922
        %v961 = vunpack.c.h.b16 %v922
        %v962 = vunpack.c.l.b16 %v923
        %v963 = vunpack.c.h.b16 %v923
        %v964 = vunpack.c.l.b16 %v924
        %v965 = vunpack.c.h.b16 %v924
        %v966 = vunpack.c.l.b16 %v925
        %v967 = vunpack.c.h.b16 %v925
        %v968 = vunpack.c.l.b16 %v926
        %v969 = vunpack.c.h.b16 %v926
        %v970 = vunpack.c.l.b16 %v927
        %v971 = vunpack.c.h.b16 %v927
        %v972 = vunpack.c.l.b16 %v928
        %v973 = vunpack.c.h.b16 %v928
        %v974 = vunpack.c.l.b16 %v929
        %v975 = vunpack.c.h.b16 %v929
        %v976 = vunpack.c.l.b16 %v930
        %v977 = vunpack.c.h.b16 %v930
        %v978 = vunpack.c.l.b16 %v931
        %v979 = vunpack.c.h.b16 %v931
        %v980 = vpack.c.b16 %v950, %v948
        %v981 = vpack.c.b16 %v951, %v949
        %v982 = vpack.c.b16 %v954, %v952
        %v983 = vpack.c.b16 %v955, %v953
        %v984 = vpack.c.b16 %v958, %v956
        %v985 = vpack.c.b16 %v959, %v957
        %v986 = vpack.c.b16 %v962, %v960
        %v987 = vpack.c.b16 %v963, %v961
        %v988 = vpack.c.b16 %v966, %v964
        %v989 = vpack.c.b16 %v967, %v965
        %v990 = vpack.c.b16 %v970, %v968
        %v991 = vpack.c.b16 %v971, %v969
        %v992 = vpack.c.b16 %v974, %v972
        %v993 = vpack.c.b16 %v975, %v973
        %v994 = vpack.c.b16 %v978, %v976
        %v995 = vpack.c.b16 %v979, %v977
        %1012 = vmatprep.subr.bf16.mxu0 %v981
        %1013 = vmatpush1.bf16.msra.mxu0 %v980
        %1014 = vmatprep.subr.bf16.mxu0 %v983
        %1015 = vmatpush1.bf16.msra.mxu0 %v982
        %1016 = vmatprep.subr.bf16.mxu0 %v985
        %1017 = vmatpush1.bf16.msra.mxu0 %v984
        %1018 = vmatprep.subr.bf16.mxu0 %v987
        %1019 = vmatpush1.bf16.msra.mxu0 %v986
        %1020 = vmatprep.subr.bf16.mxu0 %v989
        %1021 = vmatpush1.bf16.msra.mxu0 %v988
        %1022 = vmatprep.subr.bf16.mxu0 %v991
        %1023 = vmatpush1.bf16.msra.mxu0 %v990
        %1024 = vmatprep.subr.bf16.mxu0 %v993
        %1025 = vmatpush1.bf16.msra.mxu0 %v992
        %1026 = vmatprep.subr.bf16.mxu0 %v995
        %1027 = vmatpush1.bf16.msra.mxu0 %v994
        %1028 = vmatprep.subr.bf16.mxu0 0
        %1029 = vmatpush1.bf16.msra.mxu0 0
        %1030 = vmatprep.subr.bf16.mxu0 0
        %1031 = vmatpush1.bf16.msra.mxu0 0
        %1032 = vmatprep.subr.bf16.mxu0 0
        %1033 = vmatpush1.bf16.msra.mxu0 0
        %1034 = vmatprep.subr.bf16.mxu0 0
        %1035 = vmatpush1.bf16.msra.mxu0 0
        %1036 = vmatprep.subr.bf16.mxu0 0
        %1037 = vmatpush1.bf16.msra.mxu0 0
        %1038 = vmatprep.subr.bf16.mxu0 0
        %1039 = vmatpush1.bf16.msra.mxu0 0
        %1040 = vmatprep.subr.bf16.mxu0 0
        %1041 = vmatpush1.bf16.msra.mxu0 0
        %1042 = vmatprep.subr.bf16.mxu0 0
        %1043 = vmatpush1.bf16.msra.mxu0 0
        %1044 = vmatprep.mubr.bf16.mxu0 0
        %1045 = vmatmul.mubr.bf16.gmra.mrb[0].mxu0 %v315
        %v1046 = vpop.f32.mrb[0].mxu0
        %v1047 = vadd.f32 0.0, %v1046
        %v1048 = vpop.f32.mrb[0].mxu0
        %v1049 = vadd.f32 0.0, %v1048
        %v1050 = vpop.f32.mrb[0].mxu0
        %v1051 = vadd.f32 0.0, %v1050
        %v1052 = vpop.f32.mrb[0].mxu0
        %v1053 = vadd.f32 0.0, %v1052
        %1054 = vmatprep.mubr.bf16.mxu0 0
        %1055 = vmatmul.mubr.bf16.gmra.mrb[0].mxu0 %v316
        %v1056 = vpop.f32.mrb[0].mxu0
        %v1057 = vadd.f32 0.0, %v1056
        %v1058 = vpop.f32.mrb[0].mxu0
        %v1059 = vadd.f32 0.0, %v1058
        %v1060 = vpop.f32.mrb[0].mxu0
        %v1061 = vadd.f32 0.0, %v1060
        %v1062 = vpop.f32.mrb[0].mxu0
        %v1063 = vadd.f32 0.0, %v1062
        %1064 = vmatprep.mubr.bf16.mxu0 0
        %1065 = vmatmul.mubr.bf16.gmra.mrb[0].mxu0 %v317
        %v1066 = vpop.f32.mrb[0].mxu0
        %v1067 = vadd.f32 0.0, %v1066
        %v1068 = vpop.f32.mrb[0].mxu0
        %v1069 = vadd.f32 0.0, %v1068
        %v1070 = vpop.f32.mrb[0].mxu0
        %v1071 = vadd.f32 0.0, %v1070
        %v1072 = vpop.f32.mrb[0].mxu0
        %v1073 = vadd.f32 0.0, %v1072
        %1074 = vmatprep.mubr.bf16.mxu0 0
        %1075 = vmatmul.mubr.bf16.gmra.mrb[0].mxu0 %v318
        %v1076 = vpop.f32.mrb[0].mxu0
        %v1077 = vadd.f32 0.0, %v1076
        %v1078 = vpop.f32.mrb[0].mxu0
        %v1079 = vadd.f32 0.0, %v1078
        %v1080 = vpop.f32.mrb[0].mxu0
        %v1081 = vadd.f32 0.0, %v1080
        %v1082 = vpop.f32.mrb[0].mxu0
        %v1083 = vadd.f32 0.0, %v1082
        %1084 = vmatprep.mubr.bf16.mxu0 0
        %1085 = vmatmul.mubr.bf16.gmra.mrb[0].mxu0 %v319
        %v1086 = vpop.f32.mrb[0].mxu0
        %v1087 = vadd.f32 0.0, %v1086
        %v1088 = vpop.f32.mrb[0].mxu0
        %v1089 = vadd.f32 0.0, %v1088
        %v1090 = vpop.f32.mrb[0].mxu0
        %v1091 = vadd.f32 0.0, %v1090
        %v1092 = vpop.f32.mrb[0].mxu0
        %v1093 = vadd.f32 0.0, %v1092
        %1094 = vmatprep.mubr.bf16.mxu0 0
        %1095 = vmatmul.mubr.bf16.gmra.mrb[0].mxu0 %v320
        %v1096 = vpop.f32.mrb[0].mxu0
        %v1097 = vadd.f32 0.0, %v1096
        %v1098 = vpop.f32.mrb[0].mxu0
        %v1099 = vadd.f32 0.0, %v1098
        %v1100 = vpop.f32.mrb[0].mxu0
        %v1101 = vadd.f32 0.0, %v1100
        %v1102 = vpop.f32.mrb[0].mxu0
        %v1103 = vadd.f32 0.0, %v1102
        %1104 = vmatprep.mubr.bf16.mxu0 0
        %1105 = vmatmul.mubr.bf16.gmra.mrb[0].mxu0 %v321
        %v1106 = vpop.f32.mrb[0].mxu0
        %v1107 = vadd.f32 0.0, %v1106
        %v1108 = vpop.f32.mrb[0].mxu0
        %v1109 = vadd.f32 0.0, %v1108
        %v1110 = vpop.f32.mrb[0].mxu0
        %v1111 = vadd.f32 0.0, %v1110
        %v1112 = vpop.f32.mrb[0].mxu0
        %v1113 = vadd.f32 0.0, %v1112
        %1114 = vmatprep.mubr.bf16.mxu0 0
        %1115 = vmatmul.mubr.bf16.gmra.mrb[0].mxu0 %v322
        %v1116 = vpop.f32.mrb[0].mxu0
        %v1117 = vadd.f32 0.0, %v1116
        %v1118 = vpop.f32.mrb[0].mxu0
        %v1119 = vadd.f32 0.0, %v1118
        %v1120 = vpop.f32.mrb[0].mxu0
        %v1121 = vadd.f32 0.0, %v1120
        %v1122 = vpop.f32.mrb[0].mxu0
        %v1123 = vadd.f32 0.0, %v1122
        %1124 = vmatprep.mubr.bf16.mxu0 0
        %1125 = vmatmul.mubr.bf16.gmra.mrb[0].mxu0 %v323
        %v1126 = vpop.f32.mrb[0].mxu0
        %v1127 = vadd.f32 0.0, %v1126
        %v1128 = vpop.f32.mrb[0].mxu0
        %v1129 = vadd.f32 0.0, %v1128
        %v1130 = vpop.f32.mrb[0].mxu0
        %v1131 = vpop.f32.mrb[0].mxu0
        %1132 = vdwg.mxu0
        %vm1167 = vcmask 1045504
        %v1168 = vrot.slane %v1047, 2
        %v1169 = vrot.slane %v1051, 2
        %v1170 = vsel %vm1167, %v1168, %v1169
        %v1171 = vrot.slane %v1049, 2
        %v1172 = vrot.slane %v1053, 2
        %v1173 = vsel %vm1167, %v1171, %v1172
        %v1174 = vrot.slane %v1057, 2
        %v1175 = vsel %vm1167, %v1169, %v1174
        %v1176 = vrot.slane %v1059, 2
        %v1177 = vsel %vm1167, %v1172, %v1176
        %v1178 = vrot.slane %v1061, 2
        %v1179 = vsel %vm1167, %v1174, %v1178
        %v1180 = vrot.slane %v1063, 2
        %v1181 = vsel %vm1167, %v1176, %v1180
        %v1182 = vrot.slane %v1067, 2
        %v1183 = vsel %vm1167, %v1178, %v1182
        %v1184 = vrot.slane %v1069, 2
        %v1185 = vsel %vm1167, %v1180, %v1184
        %v1186 = vrot.slane %v1071, 2
        %v1187 = vsel %vm1167, %v1182, %v1186
        %v1188 = vrot.slane %v1073, 2
        %v1189 = vsel %vm1167, %v1184, %v1188
        %v1190 = vrot.slane %v1077, 2
        %v1191 = vsel %vm1167, %v1186, %v1190
        %v1192 = vrot.slane %v1079, 2
        %v1193 = vsel %vm1167, %v1188, %v1192
        %v1194 = vrot.slane %v1081, 2
        %v1195 = vsel %vm1167, %v1190, %v1194
        %v1196 = vrot.slane %v1083, 2
        %v1197 = vsel %vm1167, %v1192, %v1196
        %v1198 = vrot.slane %v1087, 2
        %v1199 = vsel %vm1167, %v1194, %v1198
        %v1200 = vrot.slane %v1089, 2
        %v1201 = vsel %vm1167, %v1196, %v1200
        %v1202 = vrot.slane %v1091, 2
        %v1203 = vsel %vm1167, %v1198, %v1202
        %v1204 = vrot.slane %v1093, 2
        %v1205 = vsel %vm1167, %v1200, %v1204
        %v1206 = vrot.slane %v1097, 2
        %v1207 = vsel %vm1167, %v1202, %v1206
        %v1208 = vrot.slane %v1099, 2
        %v1209 = vsel %vm1167, %v1204, %v1208
        %v1210 = vrot.slane %v1101, 2
        %v1211 = vsel %vm1167, %v1206, %v1210
        %v1212 = vrot.slane %v1103, 2
        %v1213 = vsel %vm1167, %v1208, %v1212
        %v1214 = vrot.slane %v1107, 2
        %v1215 = vsel %vm1167, %v1210, %v1214
        %v1216 = vrot.slane %v1109, 2
        %v1217 = vsel %vm1167, %v1212, %v1216
        %v1218 = vrot.slane %v1111, 2
        %v1219 = vsel %vm1167, %v1214, %v1218
        %v1220 = vrot.slane %v1113, 2
        %v1221 = vsel %vm1167, %v1216, %v1220
        %v1222 = vrot.slane %v1117, 2
        %v1223 = vsel %vm1167, %v1218, %v1222
        %v1224 = vrot.slane %v1119, 2
        %v1225 = vsel %vm1167, %v1220, %v1224
        %v1226 = vrot.slane %v1121, 2
        %v1227 = vsel %vm1167, %v1222, %v1226
        %v1228 = vrot.slane %v1123, 2
        %v1229 = vsel %vm1167, %v1224, %v1228
        %v1230 = vrot.slane %v1127, 2
        %v1231 = vsel %vm1167, %v1226, %v1230
        %v1232 = vrot.slane %v1129, 2
        %v1233 = vsel %vm1167, %v1228, %v1232
        %v1266 = vadd.f32 %v883, %v1170
        %v1267 = vadd.f32 %v884, %v1173
        %v1268 = vadd.f32 %v885, %v1175
        %v1269 = vadd.f32 %v886, %v1177
        %v1270 = vadd.f32 %v887, %v1179
        %v1271 = vadd.f32 %v888, %v1181
        %v1272 = vadd.f32 %v889, %v1183
        %v1273 = vadd.f32 %v890, %v1185
        %v1274 = vadd.f32 %v891, %v1187
        %v1275 = vadd.f32 %v892, %v1189
        %v1276 = vadd.f32 %v893, %v1191
        %v1277 = vadd.f32 %v894, %v1193
        %v1278 = vadd.f32 %v895, %v1195
        %v1279 = vadd.f32 %v896, %v1197
        %v1280 = vadd.f32 %v897, %v1199
        %v1281 = vadd.f32 %v898, %v1201
        %v1282 = vadd.f32 %v899, %v1203
        %v1283 = vadd.f32 %v900, %v1205
        %v1284 = vadd.f32 %v901, %v1207
        %v1285 = vadd.f32 %v902, %v1209
        %v1286 = vadd.f32 %v903, %v1211
        %v1287 = vadd.f32 %v904, %v1213
        %v1288 = vadd.f32 %v905, %v1215
        %v1289 = vadd.f32 %v906, %v1217
        %v1290 = vadd.f32 %v907, %v1219
        %v1291 = vadd.f32 %v908, %v1221
        %v1292 = vadd.f32 %v909, %v1223
        %v1293 = vadd.f32 %v910, %v1225
        %v1294 = vadd.f32 %v911, %v1227
        %v1295 = vadd.f32 %v912, %v1229
        %v1296 = vadd.f32 %v913, %v1231
        %v1297 = vadd.f32 %v914, %v1233
        %s1298 = sadd.s32 %s243, 24
        %s1299 = sshra.s32 %s1298, 3
        %s1300 = sand.u32 %s1298, 7
        %s1301 = smul.addr %s1299, 4
        %s1302 = scalar_lea.vmem [#allocation2], %s1301
        %v1303 = vld [vmem:[%s1302] sm:$0xf]
        %v1304 = vld [vmem:[%s1302 + $0x4] sm:$0xf]
        %v1305 = vld [vmem:[%s1302 + $0x8] sm:$0xf]
        %v1306 = vld [vmem:[%s1302 + $0xc] sm:$0xf]
        %v1307 = vld [vmem:[%s1302 + $0x10] sm:$0xf]
        %v1308 = vld [vmem:[%s1302 + $0x14] sm:$0xf]
        %v1309 = vld [vmem:[%s1302 + $0x18] sm:$0xf]
        %v1310 = vld [vmem:[%s1302 + $0x1c] sm:$0xf]
        %v1311 = vld [vmem:[%s1302 + $0x20] sm:$0xf]
        %v1312 = vld [vmem:[%s1302 + $0x24] sm:$0xf]
        %v1313 = vld [vmem:[%s1302 + $0x28] sm:$0xf]
        %v1314 = vld [vmem:[%s1302 + $0x2c] sm:$0xf]
        %v1315 = vld [vmem:[%s1302 + $0x30] sm:$0xf]
        %v1316 = vld [vmem:[%s1302 + $0x34] sm:$0xf]
        %v1317 = vld [vmem:[%s1302 + $0x38] sm:$0xf]
        %v1318 = vld [vmem:[%s1302 + $0x3c] sm:$0xf]
        %v1319 = vld [vmem:[%s1302 + $0x40] sm:$0xf]
        %s1320 = scalar_lea.vmem [#allocation5], 384
        %v1321 = vld [vmem:[%s1320] sm:$0xff]
        %v1322 = vld [vmem:[%s1320 + $0x8] sm:$0xff]
        %v1323 = vld [vmem:[%s1320 + $0x10] sm:$0xff]
        %v1324 = vld [vmem:[%s1320 + $0x18] sm:$0xff]
        %v1325 = vld [vmem:[%s1320 + $0x20] sm:$0xff]
        %v1326 = vld [vmem:[%s1320 + $0x28] sm:$0xff]
        %v1327 = vld [vmem:[%s1320 + $0x30] sm:$0xff]
        %v1328 = vld [vmem:[%s1320 + $0x38] sm:$0xff]
        %v1329 = vld [vmem:[%s1320 + $0x40] sm:$0xff]
        %v1330 = vld [vmem:[%s1320 + $0x48] sm:$0xff]
        %v1331 = vld [vmem:[%s1320 + $0x50] sm:$0xff]
        %v1332 = vld [vmem:[%s1320 + $0x58] sm:$0xff]
        %v1333 = vld [vmem:[%s1320 + $0x60] sm:$0xff]
        %v1334 = vld [vmem:[%s1320 + $0x68] sm:$0xff]
        %v1335 = vld [vmem:[%s1320 + $0x70] sm:$0xff]
        %v1336 = vld [vmem:[%s1320 + $0x78] sm:$0xff]
        %v1354 = vunpack.c.l.b16 %v1303
        %v1355 = vunpack.c.l.b16 %v1304
        %v1356 = vunpack.c.l.b16 %v1305
        %v1357 = vunpack.c.l.b16 %v1306
        %v1358 = vunpack.c.l.b16 %v1307
        %v1359 = vunpack.c.l.b16 %v1308
        %v1360 = vunpack.c.l.b16 %v1309
        %v1361 = vunpack.c.l.b16 %v1310
        %v1362 = vunpack.c.l.b16 %v1311
        %v1363 = vunpack.c.l.b16 %v1312
        %v1364 = vunpack.c.l.b16 %v1313
        %v1365 = vunpack.c.l.b16 %v1314
        %v1366 = vunpack.c.l.b16 %v1315
        %v1367 = vunpack.c.l.b16 %v1316
        %v1368 = vunpack.c.l.b16 %v1317
        %v1369 = vunpack.c.l.b16 %v1318
        %v1370 = vunpack.c.l.b16 %v1319
        %v1371 = vpack.c.b16 %v1355, %v1354
        %v1372 = vpack.c.b16 %v1357, %v1356
        %v1373 = vpack.c.b16 %v1359, %v1358
        %v1374 = vpack.c.b16 %v1361, %v1360
        %v1375 = vpack.c.b16 %v1363, %v1362
        %v1376 = vpack.c.b16 %v1365, %v1364
        %v1377 = vpack.c.b16 %v1367, %v1366
        %v1378 = vpack.c.b16 %v1369, %v1368
        %v1379 = vpack.c.b16 %v1370, %v1370
        %v1405 = vunpack.c.l.b16 %v1321
        %v1406 = vunpack.c.h.b16 %v1321
        %v1407 = vunpack.c.l.b16 %v1322
        %v1408 = vunpack.c.h.b16 %v1322
        %v1409 = vunpack.c.l.b16 %v1323
        %v1410 = vunpack.c.h.b16 %v1323
        %v1411 = vunpack.c.l.b16 %v1324
        %v1412 = vunpack.c.h.b16 %v1324
        %v1413 = vunpack.c.l.b16 %v1325
        %v1414 = vunpack.c.h.b16 %v1325
        %v1415 = vunpack.c.l.b16 %v1326
        %v1416 = vunpack.c.h.b16 %v1326
        %v1417 = vunpack.c.l.b16 %v1327
        %v1418 = vunpack.c.h.b16 %v1327
        %v1419 = vunpack.c.l.b16 %v1328
        %v1420 = vunpack.c.h.b16 %v1328
        %v1421 = vunpack.c.l.b16 %v1329
        %v1422 = vunpack.c.h.b16 %v1329
        %v1423 = vunpack.c.l.b16 %v1330
        %v1424 = vunpack.c.h.b16 %v1330
        %v1425 = vunpack.c.l.b16 %v1331
        %v1426 = vunpack.c.h.b16 %v1331
        %v1427 = vunpack.c.l.b16 %v1332
        %v1428 = vunpack.c.h.b16 %v1332
        %v1429 = vunpack.c.l.b16 %v1333
        %v1430 = vunpack.c.h.b16 %v1333
        %v1431 = vunpack.c.l.b16 %v1334
        %v1432 = vunpack.c.h.b16 %v1334
        %v1433 = vunpack.c.l.b16 %v1335
        %v1434 = vunpack.c.h.b16 %v1335
        %v1435 = vunpack.c.l.b16 %v1336
        %v1436 = vunpack.c.h.b16 %v1336
        %v1437 = vpack.c.b16 %v1407, %v1405
        %v1438 = vpack.c.b16 %v1408, %v1406
        %v1439 = vpack.c.b16 %v1411, %v1409
        %v1440 = vpack.c.b16 %v1412, %v1410
        %v1441 = vpack.c.b16 %v1415, %v1413
        %v1442 = vpack.c.b16 %v1416, %v1414
        %v1443 = vpack.c.b16 %v1419, %v1417
        %v1444 = vpack.c.b16 %v1420, %v1418
        %v1445 = vpack.c.b16 %v1423, %v1421
        %v1446 = vpack.c.b16 %v1424, %v1422
        %v1447 = vpack.c.b16 %v1427, %v1425
        %v1448 = vpack.c.b16 %v1428, %v1426
        %v1449 = vpack.c.b16 %v1431, %v1429
        %v1450 = vpack.c.b16 %v1432, %v1430
        %v1451 = vpack.c.b16 %v1435, %v1433
        %v1452 = vpack.c.b16 %v1436, %v1434
        %1469 = vmatprep.subr.bf16.mxu0 %v1438
        %1470 = vmatpush1.bf16.msra.mxu0 %v1437
        %1471 = vmatprep.subr.bf16.mxu0 %v1440
        %1472 = vmatpush1.bf16.msra.mxu0 %v1439
        %1473 = vmatprep.subr.bf16.mxu0 %v1442
        %1474 = vmatpush1.bf16.msra.mxu0 %v1441
        %1475 = vmatprep.subr.bf16.mxu0 %v1444
        %1476 = vmatpush1.bf16.msra.mxu0 %v1443
        %1477 = vmatprep.subr.bf16.mxu0 %v1446
        %1478 = vmatpush1.bf16.msra.mxu0 %v1445
        %1479 = vmatprep.subr.bf16.mxu0 %v1448
        %1480 = vmatpush1.bf16.msra.mxu0 %v1447
        %1481 = vmatprep.subr.bf16.mxu0 %v1450
        %1482 = vmatpush1.bf16.msra.mxu0 %v1449
        %1483 = vmatprep.subr.bf16.mxu0 %v1452
        %1484 = vmatpush1.bf16.msra.mxu0 %v1451
        %1485 = vmatprep.subr.bf16.mxu0 0
        %1486 = vmatpush1.bf16.msra.mxu0 0
        %1487 = vmatprep.subr.bf16.mxu0 0
        %1488 = vmatpush1.bf16.msra.mxu0 0
        %1489 = vmatprep.subr.bf16.mxu0 0
        %1490 = vmatpush1.bf16.msra.mxu0 0
        %1491 = vmatprep.subr.bf16.mxu0 0
        %1492 = vmatpush1.bf16.msra.mxu0 0
        %1493 = vmatprep.subr.bf16.mxu0 0
        %1494 = vmatpush1.bf16.msra.mxu0 0
        %1495 = vmatprep.subr.bf16.mxu0 0
        %1496 = vmatpush1.bf16.msra.mxu0 0
        %1497 = vmatprep.subr.bf16.mxu0 0
        %1498 = vmatpush1.bf16.msra.mxu0 0
        %1499 = vmatprep.subr.bf16.mxu0 0
        %1500 = vmatpush1.bf16.msra.mxu0 0
        %1501 = vmatprep.mubr.bf16.mxu0 0
        %1502 = vmatmul.mubr.bf16.gmra.mrb[0].mxu0 %v1371
        %v1503 = vpop.f32.mrb[0].mxu0
        %v1504 = vadd.f32 0.0, %v1503
        %v1505 = vpop.f32.mrb[0].mxu0
        %v1506 = vadd.f32 0.0, %v1505
        %v1507 = vpop.f32.mrb[0].mxu0
        %v1508 = vadd.f32 0.0, %v1507
        %v1509 = vpop.f32.mrb[0].mxu0
        %v1510 = vadd.f32 0.0, %v1509
        %1511 = vmatprep.mubr.bf16.mxu0 0
        %1512 = vmatmul.mubr.bf16.gmra.mrb[0].mxu0 %v1372
        %v1513 = vpop.f32.mrb[0].mxu0
        %v1514 = vadd.f32 0.0, %v1513
        %v1515 = vpop.f32.mrb[0].mxu0
        %v1516 = vadd.f32 0.0, %v1515
        %v1517 = vpop.f32.mrb[0].mxu0
        %v1518 = vadd.f32 0.0, %v1517
        %v1519 = vpop.f32.mrb[0].mxu0
        %v1520 = vadd.f32 0.0, %v1519
        %1521 = vmatprep.mubr.bf16.mxu0 0
        %1522 = vmatmul.mubr.bf16.gmra.mrb[0].mxu0 %v1373
        %v1523 = vpop.f32.mrb[0].mxu0
        %v1524 = vadd.f32 0.0, %v1523
        %v1525 = vpop.f32.mrb[0].mxu0
        %v1526 = vadd.f32 0.0, %v1525
        %v1527 = vpop.f32.mrb[0].mxu0
        %v1528 = vadd.f32 0.0, %v1527
        %v1529 = vpop.f32.mrb[0].mxu0
        %v1530 = vadd.f32 0.0, %v1529
        %1531 = vmatprep.mubr.bf16.mxu0 0
        %1532 = vmatmul.mubr.bf16.gmra.mrb[0].mxu0 %v1374
        %v1533 = vpop.f32.mrb[0].mxu0
        %v1534 = vadd.f32 0.0, %v1533
        %v1535 = vpop.f32.mrb[0].mxu0
        %v1536 = vadd.f32 0.0, %v1535
        %v1537 = vpop.f32.mrb[0].mxu0
        %v1538 = vadd.f32 0.0, %v1537
        %v1539 = vpop.f32.mrb[0].mxu0
        %v1540 = vadd.f32 0.0, %v1539
        %1541 = vmatprep.mubr.bf16.mxu0 0
        %1542 = vmatmul.mubr.bf16.gmra.mrb[0].mxu0 %v1375
        %v1543 = vpop.f32.mrb[0].mxu0
        %v1544 = vadd.f32 0.0, %v1543
        %v1545 = vpop.f32.mrb[0].mxu0
        %v1546 = vadd.f32 0.0, %v1545
        %v1547 = vpop.f32.mrb[0].mxu0
        %v1548 = vadd.f32 0.0, %v1547
        %v1549 = vpop.f32.mrb[0].mxu0
        %v1550 = vadd.f32 0.0, %v1549
        %1551 = vmatprep.mubr.bf16.mxu0 0
        %1552 = vmatmul.mubr.bf16.gmra.mrb[0].mxu0 %v1376
        %v1553 = vpop.f32.mrb[0].mxu0
        %v1554 = vadd.f32 0.0, %v1553
        %v1555 = vpop.f32.mrb[0].mxu0
        %v1556 = vadd.f32 0.0, %v1555
        %v1557 = vpop.f32.mrb[0].mxu0
        %v1558 = vadd.f32 0.0, %v1557
        %v1559 = vpop.f32.mrb[0].mxu0
        %v1560 = vadd.f32 0.0, %v1559
        %1561 = vmatprep.mubr.bf16.mxu0 0
        %1562 = vmatmul.mubr.bf16.gmra.mrb[0].mxu0 %v1377
        %v1563 = vpop.f32.mrb[0].mxu0
        %v1564 = vadd.f32 0.0, %v1563
        %v1565 = vpop.f32.mrb[0].mxu0
        %v1566 = vadd.f32 0.0, %v1565
        %v1567 = vpop.f32.mrb[0].mxu0
        %v1568 = vadd.f32 0.0, %v1567
        %v1569 = vpop.f32.mrb[0].mxu0
        %v1570 = vadd.f32 0.0, %v1569
        %1571 = vmatprep.mubr.bf16.mxu0 0
        %1572 = vmatmul.mubr.bf16.gmra.mrb[0].mxu0 %v1378
        %v1573 = vpop.f32.mrb[0].mxu0
        %v1574 = vadd.f32 0.0, %v1573
        %v1575 = vpop.f32.mrb[0].mxu0
        %v1576 = vadd.f32 0.0, %v1575
        %v1577 = vpop.f32.mrb[0].mxu0
        %v1578 = vadd.f32 0.0, %v1577
        %v1579 = vpop.f32.mrb[0].mxu0
        %v1580 = vadd.f32 0.0, %v1579
        %1581 = vmatprep.mubr.bf16.mxu0 0
        %1582 = vmatmul.mubr.bf16.gmra.mrb[0].mxu0 %v1379
        %v1583 = vpop.f32.mrb[0].mxu0
        %v1584 = vpop.f32.mrb[0].mxu0
        %v1585 = vpop.f32.mrb[0].mxu0
        %v1586 = vpop.f32.mrb[0].mxu0
        %1587 = vdwg.mxu0
        %v1588 = vadd.f32 %v1266, %v1504
        %v1589 = vadd.f32 %v1267, %v1506
        %v1590 = vadd.f32 %v1268, %v1508
        %v1591 = vadd.f32 %v1269, %v1510
        %v1592 = vadd.f32 %v1270, %v1514
        %v1593 = vadd.f32 %v1271, %v1516
        %v1594 = vadd.f32 %v1272, %v1518
        %v1595 = vadd.f32 %v1273, %v1520
        %v1596 = vadd.f32 %v1274, %v1524
        %v1597 = vadd.f32 %v1275, %v1526
        %v1598 = vadd.f32 %v1276, %v1528
        %v1599 = vadd.f32 %v1277, %v1530
        %v1600 = vadd.f32 %v1278, %v1534
        %v1601 = vadd.f32 %v1279, %v1536
        %v1602 = vadd.f32 %v1280, %v1538
        %v1603 = vadd.f32 %v1281, %v1540
        %v1604 = vadd.f32 %v1282, %v1544
        %v1605 = vadd.f32 %v1283, %v1546
        %v1606 = vadd.f32 %v1284, %v1548
        %v1607 = vadd.f32 %v1285, %v1550
        %v1608 = vadd.f32 %v1286, %v1554
        %v1609 = vadd.f32 %v1287, %v1556
        %v1610 = vadd.f32 %v1288, %v1558
        %v1611 = vadd.f32 %v1289, %v1560
        %v1612 = vadd.f32 %v1290, %v1564
        %v1613 = vadd.f32 %v1291, %v1566
        %v1614 = vadd.f32 %v1292, %v1568
        %v1615 = vadd.f32 %v1293, %v1570
        %v1616 = vadd.f32 %v1294, %v1574
        %v1617 = vadd.f32 %v1295, %v1576
        %v1618 = vadd.f32 %v1296, %v1578
        %v1619 = vadd.f32 %v1297, %v1580
        %s1620 = scalar_lea.vmem [#allocation5], 512
        %v1621 = vld [vmem:[%s1620] sm:$0xff]
        %v1622 = vld [vmem:[%s1620 + $0x8] sm:$0xff]
        %v1623 = vld [vmem:[%s1620 + $0x10] sm:$0xff]
        %v1624 = vld [vmem:[%s1620 + $0x18] sm:$0xff]
        %v1625 = vld [vmem:[%s1620 + $0x20] sm:$0xff]
        %v1626 = vld [vmem:[%s1620 + $0x28] sm:$0xff]
        %v1627 = vld [vmem:[%s1620 + $0x30] sm:$0xff]
        %v1628 = vld [vmem:[%s1620 + $0x38] sm:$0xff]
        %v1629 = vld [vmem:[%s1620 + $0x40] sm:$0xff]
        %v1630 = vld [vmem:[%s1620 + $0x48] sm:$0xff]
        %v1631 = vld [vmem:[%s1620 + $0x50] sm:$0xff]
        %v1632 = vld [vmem:[%s1620 + $0x58] sm:$0xff]
        %v1633 = vld [vmem:[%s1620 + $0x60] sm:$0xff]
        %v1634 = vld [vmem:[%s1620 + $0x68] sm:$0xff]
        %v1635 = vld [vmem:[%s1620 + $0x70] sm:$0xff]
        %v1636 = vld [vmem:[%s1620 + $0x78] sm:$0xff]
        %v1653 = vunpack.c.l.b16 %v1621
        %v1654 = vunpack.c.h.b16 %v1621
        %v1655 = vunpack.c.l.b16 %v1622
        %v1656 = vunpack.c.h.b16 %v1622
        %v1657 = vunpack.c.l.b16 %v1623
        %v1658 = vunpack.c.h.b16 %v1623
        %v1659 = vunpack.c.l.b16 %v1624
        %v1660 = vunpack.c.h.b16 %v1624
        %v1661 = vunpack.c.l.b16 %v1625
        %v1662 = vunpack.c.h.b16 %v1625
        %v1663 = vunpack.c.l.b16 %v1626
        %v1664 = vunpack.c.h.b16 %v1626
        %v1665 = vunpack.c.l.b16 %v1627
        %v1666 = vunpack.c.h.b16 %v1627
        %v1667 = vunpack.c.l.b16 %v1628
        %v1668 = vunpack.c.h.b16 %v1628
        %v1669 = vunpack.c.l.b16 %v1629
        %v1670 = vunpack.c.h.b16 %v1629
        %v1671 = vunpack.c.l.b16 %v1630
        %v1672 = vunpack.c.h.b16 %v1630
        %v1673 = vunpack.c.l.b16 %v1631
        %v1674 = vunpack.c.h.b16 %v1631
        %v1675 = vunpack.c.l.b16 %v1632
        %v1676 = vunpack.c.h.b16 %v1632
        %v1677 = vunpack.c.l.b16 %v1633
        %v1678 = vunpack.c.h.b16 %v1633
        %v1679 = vunpack.c.l.b16 %v1634
        %v1680 = vunpack.c.h.b16 %v1634
        %v1681 = vunpack.c.l.b16 %v1635
        %v1682 = vunpack.c.h.b16 %v1635
        %v1683 = vunpack.c.l.b16 %v1636
        %v1684 = vunpack.c.h.b16 %v1636
        %v1685 = vpack.c.b16 %v1655, %v1653
        %v1686 = vpack.c.b16 %v1656, %v1654
        %v1687 = vpack.c.b16 %v1659, %v1657
        %v1688 = vpack.c.b16 %v1660, %v1658
        %v1689 = vpack.c.b16 %v1663, %v1661
        %v1690 = vpack.c.b16 %v1664, %v1662
        %v1691 = vpack.c.b16 %v1667, %v1665
        %v1692 = vpack.c.b16 %v1668, %v1666
        %v1693 = vpack.c.b16 %v1671, %v1669
        %v1694 = vpack.c.b16 %v1672, %v1670
        %v1695 = vpack.c.b16 %v1675, %v1673
        %v1696 = vpack.c.b16 %v1676, %v1674
        %v1697 = vpack.c.b16 %v1679, %v1677
        %v1698 = vpack.c.b16 %v1680, %v1678
        %v1699 = vpack.c.b16 %v1683, %v1681
        %v1700 = vpack.c.b16 %v1684, %v1682
        %1717 = vmatprep.subr.bf16.mxu0 %v1686
        %1718 = vmatpush1.bf16.msra.mxu0 %v1685
        %1719 = vmatprep.subr.bf16.mxu0 %v1688
        %1720 = vmatpush1.bf16.msra.mxu0 %v1687
        %1721 = vmatprep.subr.bf16.mxu0 %v1690
        %1722 = vmatpush1.bf16.msra.mxu0 %v1689
        %1723 = vmatprep.subr.bf16.mxu0 %v1692
        %1724 = vmatpush1.bf16.msra.mxu0 %v1691
        %1725 = vmatprep.subr.bf16.mxu0 %v1694
        %1726 = vmatpush1.bf16.msra.mxu0 %v1693
        %1727 = vmatprep.subr.bf16.mxu0 %v1696
        %1728 = vmatpush1.bf16.msra.mxu0 %v1695
        %1729 = vmatprep.subr.bf16.mxu0 %v1698
        %1730 = vmatpush1.bf16.msra.mxu0 %v1697
        %1731 = vmatprep.subr.bf16.mxu0 %v1700
        %1732 = vmatpush1.bf16.msra.mxu0 %v1699
        %1733 = vmatprep.subr.bf16.mxu0 0
        %1734 = vmatpush1.bf16.msra.mxu0 0
        %1735 = vmatprep.subr.bf16.mxu0 0
        %1736 = vmatpush1.bf16.msra.mxu0 0
        %1737 = vmatprep.subr.bf16.mxu0 0
        %1738 = vmatpush1.bf16.msra.mxu0 0
        %1739 = vmatprep.subr.bf16.mxu0 0
        %1740 = vmatpush1.bf16.msra.mxu0 0
        %1741 = vmatprep.subr.bf16.mxu0 0
        %1742 = vmatpush1.bf16.msra.mxu0 0
        %1743 = vmatprep.subr.bf16.mxu0 0
        %1744 = vmatpush1.bf16.msra.mxu0 0
        %1745 = vmatprep.subr.bf16.mxu0 0
        %1746 = vmatpush1.bf16.msra.mxu0 0
        %1747 = vmatprep.subr.bf16.mxu0 0
        %1748 = vmatpush1.bf16.msra.mxu0 0
        %1749 = vmatprep.mubr.bf16.mxu0 0
        %1750 = vmatmul.mubr.bf16.gmra.mrb[0].mxu0 %v1371
        %v1751 = vpop.f32.mrb[0].mxu0
        %v1752 = vadd.f32 0.0, %v1751
        %v1753 = vpop.f32.mrb[0].mxu0
        %v1754 = vadd.f32 0.0, %v1753
        %v1755 = vpop.f32.mrb[0].mxu0
        %v1756 = vadd.f32 0.0, %v1755
        %v1757 = vpop.f32.mrb[0].mxu0
        %v1758 = vadd.f32 0.0, %v1757
        %1759 = vmatprep.mubr.bf16.mxu0 0
        %1760 = vmatmul.mubr.bf16.gmra.mrb[0].mxu0 %v1372
        %v1761 = vpop.f32.mrb[0].mxu0
        %v1762 = vadd.f32 0.0, %v1761
        %v1763 = vpop.f32.mrb[0].mxu0
        %v1764 = vadd.f32 0.0, %v1763
        %v1765 = vpop.f32.mrb[0].mxu0
        %v1766 = vadd.f32 0.0, %v1765
        %v1767 = vpop.f32.mrb[0].mxu0
        %v1768 = vadd.f32 0.0, %v1767
        %1769 = vmatprep.mubr.bf16.mxu0 0
        %1770 = vmatmul.mubr.bf16.gmra.mrb[0].mxu0 %v1373
        %v1771 = vpop.f32.mrb[0].mxu0
        %v1772 = vadd.f32 0.0, %v1771
        %v1773 = vpop.f32.mrb[0].mxu0
        %v1774 = vadd.f32 0.0, %v1773
        %v1775 = vpop.f32.mrb[0].mxu0
        %v1776 = vadd.f32 0.0, %v1775
        %v1777 = vpop.f32.mrb[0].mxu0
        %v1778 = vadd.f32 0.0, %v1777
        %1779 = vmatprep.mubr.bf16.mxu0 0
        %1780 = vmatmul.mubr.bf16.gmra.mrb[0].mxu0 %v1374
        %v1781 = vpop.f32.mrb[0].mxu0
        %v1782 = vadd.f32 0.0, %v1781
        %v1783 = vpop.f32.mrb[0].mxu0
        %v1784 = vadd.f32 0.0, %v1783
        %v1785 = vpop.f32.mrb[0].mxu0
        %v1786 = vadd.f32 0.0, %v1785
        %v1787 = vpop.f32.mrb[0].mxu0
        %v1788 = vadd.f32 0.0, %v1787
        %1789 = vmatprep.mubr.bf16.mxu0 0
        %1790 = vmatmul.mubr.bf16.gmra.mrb[0].mxu0 %v1375
        %v1791 = vpop.f32.mrb[0].mxu0
        %v1792 = vadd.f32 0.0, %v1791
        %v1793 = vpop.f32.mrb[0].mxu0
        %v1794 = vadd.f32 0.0, %v1793
        %v1795 = vpop.f32.mrb[0].mxu0
        %v1796 = vadd.f32 0.0, %v1795
        %v1797 = vpop.f32.mrb[0].mxu0
        %v1798 = vadd.f32 0.0, %v1797
        %1799 = vmatprep.mubr.bf16.mxu0 0
        %1800 = vmatmul.mubr.bf16.gmra.mrb[0].mxu0 %v1376
        %v1801 = vpop.f32.mrb[0].mxu0
        %v1802 = vadd.f32 0.0, %v1801
        %v1803 = vpop.f32.mrb[0].mxu0
        %v1804 = vadd.f32 0.0, %v1803
        %v1805 = vpop.f32.mrb[0].mxu0
        %v1806 = vadd.f32 0.0, %v1805
        %v1807 = vpop.f32.mrb[0].mxu0
        %v1808 = vadd.f32 0.0, %v1807
        %1809 = vmatprep.mubr.bf16.mxu0 0
        %1810 = vmatmul.mubr.bf16.gmra.mrb[0].mxu0 %v1377
        %v1811 = vpop.f32.mrb[0].mxu0
        %v1812 = vadd.f32 0.0, %v1811
        %v1813 = vpop.f32.mrb[0].mxu0
        %v1814 = vadd.f32 0.0, %v1813
        %v1815 = vpop.f32.mrb[0].mxu0
        %v1816 = vadd.f32 0.0, %v1815
        %v1817 = vpop.f32.mrb[0].mxu0
        %v1818 = vadd.f32 0.0, %v1817
        %1819 = vmatprep.mubr.bf16.mxu0 0
        %1820 = vmatmul.mubr.bf16.gmra.mrb[0].mxu0 %v1378
        %v1821 = vpop.f32.mrb[0].mxu0
        %v1822 = vadd.f32 0.0, %v1821
        %v1823 = vpop.f32.mrb[0].mxu0
        %v1824 = vadd.f32 0.0, %v1823
        %v1825 = vpop.f32.mrb[0].mxu0
        %v1826 = vadd.f32 0.0, %v1825
        %v1827 = vpop.f32.mrb[0].mxu0
        %v1828 = vadd.f32 0.0, %v1827
        %1829 = vmatprep.mubr.bf16.mxu0 0
        %1830 = vmatmul.mubr.bf16.gmra.mrb[0].mxu0 %v1379
        %v1831 = vpop.f32.mrb[0].mxu0
        %v1832 = vadd.f32 0.0, %v1831
        %v1833 = vpop.f32.mrb[0].mxu0
        %v1834 = vadd.f32 0.0, %v1833
        %v1835 = vpop.f32.mrb[0].mxu0
        %v1836 = vpop.f32.mrb[0].mxu0
        %1837 = vdwg.mxu0
        %v1872 = vrot.slane %v1752, 1
        %v1873 = vrot.slane %v1756, 1
        %v1874 = vsel %vm784, %v1872, %v1873
        %v1875 = vrot.slane %v1754, 1
        %v1876 = vrot.slane %v1758, 1
        %v1877 = vsel %vm784, %v1875, %v1876
        %v1878 = vrot.slane %v1762, 1
        %v1879 = vsel %vm784, %v1873, %v1878
        %v1880 = vrot.slane %v1764, 1
        %v1881 = vsel %vm784, %v1876, %v1880
        %v1882 = vrot.slane %v1766, 1
        %v1883 = vsel %vm784, %v1878, %v1882
        %v1884 = vrot.slane %v1768, 1
        %v1885 = vsel %vm784, %v1880, %v1884
        %v1886 = vrot.slane %v1772, 1
        %v1887 = vsel %vm784, %v1882, %v1886
        %v1888 = vrot.slane %v1774, 1
        %v1889 = vsel %vm784, %v1884, %v1888
        %v1890 = vrot.slane %v1776, 1
        %v1891 = vsel %vm784, %v1886, %v1890
        %v1892 = vrot.slane %v1778, 1
        %v1893 = vsel %vm784, %v1888, %v1892
        %v1894 = vrot.slane %v1782, 1
        %v1895 = vsel %vm784, %v1890, %v1894
        %v1896 = vrot.slane %v1784, 1
        %v1897 = vsel %vm784, %v1892, %v1896
        %v1898 = vrot.slane %v1786, 1
        %v1899 = vsel %vm784, %v1894, %v1898
        %v1900 = vrot.slane %v1788, 1
        %v1901 = vsel %vm784, %v1896, %v1900
        %v1902 = vrot.slane %v1792, 1
        %v1903 = vsel %vm784, %v1898, %v1902
        %v1904 = vrot.slane %v1794, 1
        %v1905 = vsel %vm784, %v1900, %v1904
        %v1906 = vrot.slane %v1796, 1
        %v1907 = vsel %vm784, %v1902, %v1906
        %v1908 = vrot.slane %v1798, 1
        %v1909 = vsel %vm784, %v1904, %v1908
        %v1910 = vrot.slane %v1802, 1
        %v1911 = vsel %vm784, %v1906, %v1910
        %v1912 = vrot.slane %v1804, 1
        %v1913 = vsel %vm784, %v1908, %v1912
        %v1914 = vrot.slane %v1806, 1
        %v1915 = vsel %vm784, %v1910, %v1914
        %v1916 = vrot.slane %v1808, 1
        %v1917 = vsel %vm784, %v1912, %v1916
        %v1918 = vrot.slane %v1812, 1
        %v1919 = vsel %vm784, %v1914, %v1918
        %v1920 = vrot.slane %v1814, 1
        %v1921 = vsel %vm784, %v1916, %v1920
        %v1922 = vrot.slane %v1816, 1
        %v1923 = vsel %vm784, %v1918, %v1922
        %v1924 = vrot.slane %v1818, 1
        %v1925 = vsel %vm784, %v1920, %v1924
        %v1926 = vrot.slane %v1822, 1
        %v1927 = vsel %vm784, %v1922, %v1926
        %v1928 = vrot.slane %v1824, 1
        %v1929 = vsel %vm784, %v1924, %v1928
        %v1930 = vrot.slane %v1826, 1
        %v1931 = vsel %vm784, %v1926, %v1930
        %v1932 = vrot.slane %v1828, 1
        %v1933 = vsel %vm784, %v1928, %v1932
        %v1934 = vrot.slane %v1832, 1
        %v1935 = vsel %vm784, %v1930, %v1934
        %v1936 = vrot.slane %v1834, 1
        %v1937 = vsel %vm784, %v1932, %v1936
        %v1970 = vadd.f32 %v1588, %v1874
        %v1971 = vadd.f32 %v1589, %v1877
        %v1972 = vadd.f32 %v1590, %v1879
        %v1973 = vadd.f32 %v1591, %v1881
        %v1974 = vadd.f32 %v1592, %v1883
        %v1975 = vadd.f32 %v1593, %v1885
        %v1976 = vadd.f32 %v1594, %v1887
        %v1977 = vadd.f32 %v1595, %v1889
        %v1978 = vadd.f32 %v1596, %v1891
        %v1979 = vadd.f32 %v1597, %v1893
        %v1980 = vadd.f32 %v1598, %v1895
        %v1981 = vadd.f32 %v1599, %v1897
        %v1982 = vadd.f32 %v1600, %v1899
        %v1983 = vadd.f32 %v1601, %v1901
        %v1984 = vadd.f32 %v1602, %v1903
        %v1985 = vadd.f32 %v1603, %v1905
        %v1986 = vadd.f32 %v1604, %v1907
        %v1987 = vadd.f32 %v1605, %v1909
        %v1988 = vadd.f32 %v1606, %v1911
        %v1989 = vadd.f32 %v1607, %v1913
        %v1990 = vadd.f32 %v1608, %v1915
        %v1991 = vadd.f32 %v1609, %v1917
        %v1992 = vadd.f32 %v1610, %v1919
        %v1993 = vadd.f32 %v1611, %v1921
        %v1994 = vadd.f32 %v1612, %v1923
        %v1995 = vadd.f32 %v1613, %v1925
        %v1996 = vadd.f32 %v1614, %v1927
        %v1997 = vadd.f32 %v1615, %v1929
        %v1998 = vadd.f32 %v1616, %v1931
        %v1999 = vadd.f32 %v1617, %v1933
        %v2000 = vadd.f32 %v1618, %v1935
        %v2001 = vadd.f32 %v1619, %v1937
        %s2002 = scalar_lea.vmem [#allocation5], 640
        %v2003 = vld [vmem:[%s2002] sm:$0xff]
        %v2004 = vld [vmem:[%s2002 + $0x8] sm:$0xff]
        %v2005 = vld [vmem:[%s2002 + $0x10] sm:$0xff]
        %v2006 = vld [vmem:[%s2002 + $0x18] sm:$0xff]
        %v2007 = vld [vmem:[%s2002 + $0x20] sm:$0xff]
        %v2008 = vld [vmem:[%s2002 + $0x28] sm:$0xff]
        %v2009 = vld [vmem:[%s2002 + $0x30] sm:$0xff]
        %v2010 = vld [vmem:[%s2002 + $0x38] sm:$0xff]
        %v2011 = vld [vmem:[%s2002 + $0x40] sm:$0xff]
        %v2012 = vld [vmem:[%s2002 + $0x48] sm:$0xff]
        %v2013 = vld [vmem:[%s2002 + $0x50] sm:$0xff]
        %v2014 = vld [vmem:[%s2002 + $0x58] sm:$0xff]
        %v2015 = vld [vmem:[%s2002 + $0x60] sm:$0xff]
        %v2016 = vld [vmem:[%s2002 + $0x68] sm:$0xff]
        %v2017 = vld [vmem:[%s2002 + $0x70] sm:$0xff]
        %v2018 = vld [vmem:[%s2002 + $0x78] sm:$0xff]
        %v2035 = vunpack.c.l.b16 %v2003
        %v2036 = vunpack.c.h.b16 %v2003
        %v2037 = vunpack.c.l.b16 %v2004
        %v2038 = vunpack.c.h.b16 %v2004
        %v2039 = vunpack.c.l.b16 %v2005
        %v2040 = vunpack.c.h.b16 %v2005
        %v2041 = vunpack.c.l.b16 %v2006
        %v2042 = vunpack.c.h.b16 %v2006
        %v2043 = vunpack.c.l.b16 %v2007
        %v2044 = vunpack.c.h.b16 %v2007
        %v2045 = vunpack.c.l.b16 %v2008
        %v2046 = vunpack.c.h.b16 %v2008
        %v2047 = vunpack.c.l.b16 %v2009
        %v2048 = vunpack.c.h.b16 %v2009
        %v2049 = vunpack.c.l.b16 %v2010
        %v2050 = vunpack.c.h.b16 %v2010
        %v2051 = vunpack.c.l.b16 %v2011
        %v2052 = vunpack.c.h.b16 %v2011
        %v2053 = vunpack.c.l.b16 %v2012
        %v2054 = vunpack.c.h.b16 %v2012
        %v2055 = vunpack.c.l.b16 %v2013
        %v2056 = vunpack.c.h.b16 %v2013
        %v2057 = vunpack.c.l.b16 %v2014
        %v2058 = vunpack.c.h.b16 %v2014
        %v2059 = vunpack.c.l.b16 %v2015
        %v2060 = vunpack.c.h.b16 %v2015
        %v2061 = vunpack.c.l.b16 %v2016
        %v2062 = vunpack.c.h.b16 %v2016
        %v2063 = vunpack.c.l.b16 %v2017
        %v2064 = vunpack.c.h.b16 %v2017
        %v2065 = vunpack.c.l.b16 %v2018
        %v2066 = vunpack.c.h.b16 %v2018
        %v2067 = vpack.c.b16 %v2037, %v2035
        %v2068 = vpack.c.b16 %v2038, %v2036
        %v2069 = vpack.c.b16 %v2041, %v2039
        %v2070 = vpack.c.b16 %v2042, %v2040
        %v2071 = vpack.c.b16 %v2045, %v2043
        %v2072 = vpack.c.b16 %v2046, %v2044
        %v2073 = vpack.c.b16 %v2049, %v2047
        %v2074 = vpack.c.b16 %v2050, %v2048
        %v2075 = vpack.c.b16 %v2053, %v2051
        %v2076 = vpack.c.b16 %v2054, %v2052
        %v2077 = vpack.c.b16 %v2057, %v2055
        %v2078 = vpack.c.b16 %v2058, %v2056
        %v2079 = vpack.c.b16 %v2061, %v2059
        %v2080 = vpack.c.b16 %v2062, %v2060
        %v2081 = vpack.c.b16 %v2065, %v2063
        %v2082 = vpack.c.b16 %v2066, %v2064
        %2099 = vmatprep.subr.bf16.mxu0 %v2068
        %2100 = vmatpush1.bf16.msra.mxu0 %v2067
        %2101 = vmatprep.subr.bf16.mxu0 %v2070
        %2102 = vmatpush1.bf16.msra.mxu0 %v2069
        %2103 = vmatprep.subr.bf16.mxu0 %v2072
        %2104 = vmatpush1.bf16.msra.mxu0 %v2071
        %2105 = vmatprep.subr.bf16.mxu0 %v2074
        %2106 = vmatpush1.bf16.msra.mxu0 %v2073
        %2107 = vmatprep.subr.bf16.mxu0 %v2076
        %2108 = vmatpush1.bf16.msra.mxu0 %v2075
        %2109 = vmatprep.subr.bf16.mxu0 %v2078
        %2110 = vmatpush1.bf16.msra.mxu0 %v2077
        %2111 = vmatprep.subr.bf16.mxu0 %v2080
        %2112 = vmatpush1.bf16.msra.mxu0 %v2079
        %2113 = vmatprep.subr.bf16.mxu0 %v2082
        %2114 = vmatpush1.bf16.msra.mxu0 %v2081
        %2115 = vmatprep.subr.bf16.mxu0 0
        %2116 = vmatpush1.bf16.msra.mxu0 0
        %2117 = vmatprep.subr.bf16.mxu0 0
        %2118 = vmatpush1.bf16.msra.mxu0 0
        %2119 = vmatprep.subr.bf16.mxu0 0
        %2120 = vmatpush1.bf16.msra.mxu0 0
        %2121 = vmatprep.subr.bf16.mxu0 0
        %2122 = vmatpush1.bf16.msra.mxu0 0
        %2123 = vmatprep.subr.bf16.mxu0 0
        %2124 = vmatpush1.bf16.msra.mxu0 0
        %2125 = vmatprep.subr.bf16.mxu0 0
        %2126 = vmatpush1.bf16.msra.mxu0 0
        %2127 = vmatprep.subr.bf16.mxu0 0
        %2128 = vmatpush1.bf16.msra.mxu0 0
        %2129 = vmatprep.subr.bf16.mxu0 0
        %2130 = vmatpush1.bf16.msra.mxu0 0
        %2131 = vmatprep.mubr.bf16.mxu0 0
        %2132 = vmatmul.mubr.bf16.gmra.mrb[0].mxu0 %v1371
        %v2133 = vpop.f32.mrb[0].mxu0
        %v2134 = vadd.f32 0.0, %v2133
        %v2135 = vpop.f32.mrb[0].mxu0
        %v2136 = vadd.f32 0.0, %v2135
        %v2137 = vpop.f32.mrb[0].mxu0
        %v2138 = vadd.f32 0.0, %v2137
        %v2139 = vpop.f32.mrb[0].mxu0
        %v2140 = vadd.f32 0.0, %v2139
        %2141 = vmatprep.mubr.bf16.mxu0 0
        %2142 = vmatmul.mubr.bf16.gmra.mrb[0].mxu0 %v1372
        %v2143 = vpop.f32.mrb[0].mxu0
        %v2144 = vadd.f32 0.0, %v2143
        %v2145 = vpop.f32.mrb[0].mxu0
        %v2146 = vadd.f32 0.0, %v2145
        %v2147 = vpop.f32.mrb[0].mxu0
        %v2148 = vadd.f32 0.0, %v2147
        %v2149 = vpop.f32.mrb[0].mxu0
        %v2150 = vadd.f32 0.0, %v2149
        %2151 = vmatprep.mubr.bf16.mxu0 0
        %2152 = vmatmul.mubr.bf16.gmra.mrb[0].mxu0 %v1373
        %v2153 = vpop.f32.mrb[0].mxu0
        %v2154 = vadd.f32 0.0, %v2153
        %v2155 = vpop.f32.mrb[0].mxu0
        %v2156 = vadd.f32 0.0, %v2155
        %v2157 = vpop.f32.mrb[0].mxu0
        %v2158 = vadd.f32 0.0, %v2157
        %v2159 = vpop.f32.mrb[0].mxu0
        %v2160 = vadd.f32 0.0, %v2159
        %2161 = vmatprep.mubr.bf16.mxu0 0
        %2162 = vmatmul.mubr.bf16.gmra.mrb[0].mxu0 %v1374
        %v2163 = vpop.f32.mrb[0].mxu0
        %v2164 = vadd.f32 0.0, %v2163
        %v2165 = vpop.f32.mrb[0].mxu0
        %v2166 = vadd.f32 0.0, %v2165
        %v2167 = vpop.f32.mrb[0].mxu0
        %v2168 = vadd.f32 0.0, %v2167
        %v2169 = vpop.f32.mrb[0].mxu0
        %v2170 = vadd.f32 0.0, %v2169
        %2171 = vmatprep.mubr.bf16.mxu0 0
        %2172 = vmatmul.mubr.bf16.gmra.mrb[0].mxu0 %v1375
        %v2173 = vpop.f32.mrb[0].mxu0
        %v2174 = vadd.f32 0.0, %v2173
        %v2175 = vpop.f32.mrb[0].mxu0
        %v2176 = vadd.f32 0.0, %v2175
        %v2177 = vpop.f32.mrb[0].mxu0
        %v2178 = vadd.f32 0.0, %v2177
        %v2179 = vpop.f32.mrb[0].mxu0
        %v2180 = vadd.f32 0.0, %v2179
        %2181 = vmatprep.mubr.bf16.mxu0 0
        %2182 = vmatmul.mubr.bf16.gmra.mrb[0].mxu0 %v1376
        %v2183 = vpop.f32.mrb[0].mxu0
        %v2184 = vadd.f32 0.0, %v2183
        %v2185 = vpop.f32.mrb[0].mxu0
        %v2186 = vadd.f32 0.0, %v2185
        %v2187 = vpop.f32.mrb[0].mxu0
        %v2188 = vadd.f32 0.0, %v2187
        %v2189 = vpop.f32.mrb[0].mxu0
        %v2190 = vadd.f32 0.0, %v2189
        %2191 = vmatprep.mubr.bf16.mxu0 0
        %2192 = vmatmul.mubr.bf16.gmra.mrb[0].mxu0 %v1377
        %v2193 = vpop.f32.mrb[0].mxu0
        %v2194 = vadd.f32 0.0, %v2193
        %v2195 = vpop.f32.mrb[0].mxu0
        %v2196 = vadd.f32 0.0, %v2195
        %v2197 = vpop.f32.mrb[0].mxu0
        %v2198 = vadd.f32 0.0, %v2197
        %v2199 = vpop.f32.mrb[0].mxu0
        %v2200 = vadd.f32 0.0, %v2199
        %2201 = vmatprep.mubr.bf16.mxu0 0
        %2202 = vmatmul.mubr.bf16.gmra.mrb[0].mxu0 %v1378
        %v2203 = vpop.f32.mrb[0].mxu0
        %v2204 = vadd.f32 0.0, %v2203
        %v2205 = vpop.f32.mrb[0].mxu0
        %v2206 = vadd.f32 0.0, %v2205
        %v2207 = vpop.f32.mrb[0].mxu0
        %v2208 = vadd.f32 0.0, %v2207
        %v2209 = vpop.f32.mrb[0].mxu0
        %v2210 = vadd.f32 0.0, %v2209
        %2211 = vmatprep.mubr.bf16.mxu0 0
        %2212 = vmatmul.mubr.bf16.gmra.mrb[0].mxu0 %v1379
        %v2213 = vpop.f32.mrb[0].mxu0
        %v2214 = vadd.f32 0.0, %v2213
        %v2215 = vpop.f32.mrb[0].mxu0
        %v2216 = vadd.f32 0.0, %v2215
        %v2217 = vpop.f32.mrb[0].mxu0
        %v2218 = vpop.f32.mrb[0].mxu0
        %2219 = vdwg.mxu0
        %v2254 = vrot.slane %v2134, 2
        %v2255 = vrot.slane %v2138, 2
        %v2256 = vsel %vm1167, %v2254, %v2255
        %v2257 = vrot.slane %v2136, 2
        %v2258 = vrot.slane %v2140, 2
        %v2259 = vsel %vm1167, %v2257, %v2258
        %v2260 = vrot.slane %v2144, 2
        %v2261 = vsel %vm1167, %v2255, %v2260
        %v2262 = vrot.slane %v2146, 2
        %v2263 = vsel %vm1167, %v2258, %v2262
        %v2264 = vrot.slane %v2148, 2
        %v2265 = vsel %vm1167, %v2260, %v2264
        %v2266 = vrot.slane %v2150, 2
        %v2267 = vsel %vm1167, %v2262, %v2266
        %v2268 = vrot.slane %v2154, 2
        %v2269 = vsel %vm1167, %v2264, %v2268
        %v2270 = vrot.slane %v2156, 2
        %v2271 = vsel %vm1167, %v2266, %v2270
        %v2272 = vrot.slane %v2158, 2
        %v2273 = vsel %vm1167, %v2268, %v2272
        %v2274 = vrot.slane %v2160, 2
        %v2275 = vsel %vm1167, %v2270, %v2274
        %v2276 = vrot.slane %v2164, 2
        %v2277 = vsel %vm1167, %v2272, %v2276
        %v2278 = vrot.slane %v2166, 2
        %v2279 = vsel %vm1167, %v2274, %v2278
        %v2280 = vrot.slane %v2168, 2
        %v2281 = vsel %vm1167, %v2276, %v2280
        %v2282 = vrot.slane %v2170, 2
        %v2283 = vsel %vm1167, %v2278, %v2282
        %v2284 = vrot.slane %v2174, 2
        %v2285 = vsel %vm1167, %v2280, %v2284
        %v2286 = vrot.slane %v2176, 2
        %v2287 = vsel %vm1167, %v2282, %v2286
        %v2288 = vrot.slane %v2178, 2
        %v2289 = vsel %vm1167, %v2284, %v2288
        %v2290 = vrot.slane %v2180, 2
        %v2291 = vsel %vm1167, %v2286, %v2290
        %v2292 = vrot.slane %v2184, 2
        %v2293 = vsel %vm1167, %v2288, %v2292
        %v2294 = vrot.slane %v2186, 2
        %v2295 = vsel %vm1167, %v2290, %v2294
        %v2296 = vrot.slane %v2188, 2
        %v2297 = vsel %vm1167, %v2292, %v2296
        %v2298 = vrot.slane %v2190, 2
        %v2299 = vsel %vm1167, %v2294, %v2298
        %v2300 = vrot.slane %v2194, 2
        %v2301 = vsel %vm1167, %v2296, %v2300
        %v2302 = vrot.slane %v2196, 2
        %v2303 = vsel %vm1167, %v2298, %v2302
        %v2304 = vrot.slane %v2198, 2
        %v2305 = vsel %vm1167, %v2300, %v2304
        %v2306 = vrot.slane %v2200, 2
        %v2307 = vsel %vm1167, %v2302, %v2306
        %v2308 = vrot.slane %v2204, 2
        %v2309 = vsel %vm1167, %v2304, %v2308
        %v2310 = vrot.slane %v2206, 2
        %v2311 = vsel %vm1167, %v2306, %v2310
        %v2312 = vrot.slane %v2208, 2
        %v2313 = vsel %vm1167, %v2308, %v2312
        %v2314 = vrot.slane %v2210, 2
        %v2315 = vsel %vm1167, %v2310, %v2314
        %v2316 = vrot.slane %v2214, 2
        %v2317 = vsel %vm1167, %v2312, %v2316
        %v2318 = vrot.slane %v2216, 2
        %v2319 = vsel %vm1167, %v2314, %v2318
        %v2352 = vadd.f32 %v1970, %v2256
        %v2353 = vadd.f32 %v1971, %v2259
        %v2354 = vadd.f32 %v1972, %v2261
        %v2355 = vadd.f32 %v1973, %v2263
        %v2356 = vadd.f32 %v1974, %v2265
        %v2357 = vadd.f32 %v1975, %v2267
        %v2358 = vadd.f32 %v1976, %v2269
        %v2359 = vadd.f32 %v1977, %v2271
        %v2360 = vadd.f32 %v1978, %v2273
        %v2361 = vadd.f32 %v1979, %v2275
        %v2362 = vadd.f32 %v1980, %v2277
        %v2363 = vadd.f32 %v1981, %v2279
        %v2364 = vadd.f32 %v1982, %v2281
        %v2365 = vadd.f32 %v1983, %v2283
        %v2366 = vadd.f32 %v1984, %v2285
        %v2367 = vadd.f32 %v1985, %v2287
        %v2368 = vadd.f32 %v1986, %v2289
        %v2369 = vadd.f32 %v1987, %v2291
        %v2370 = vadd.f32 %v1988, %v2293
        %v2371 = vadd.f32 %v1989, %v2295
        %v2372 = vadd.f32 %v1990, %v2297
        %v2373 = vadd.f32 %v1991, %v2299
        %v2374 = vadd.f32 %v1992, %v2301
        %v2375 = vadd.f32 %v1993, %v2303
        %v2376 = vadd.f32 %v1994, %v2305
        %v2377 = vadd.f32 %v1995, %v2307
        %v2378 = vadd.f32 %v1996, %v2309
        %v2379 = vadd.f32 %v1997, %v2311
        %v2380 = vadd.f32 %v1998, %v2313
        %v2381 = vadd.f32 %v1999, %v2315
        %v2382 = vadd.f32 %v2000, %v2317
        %v2383 = vadd.f32 %v2001, %v2319
        %s2384 = sadd.s32 %s243, 48
        %s2385 = sshra.s32 %s2384, 3
        %s2386 = sand.u32 %s2384, 7
        %s2387 = smul.addr %s2385, 4
        %s2388 = scalar_lea.vmem [#allocation2], %s2387
        %v2389 = vld [vmem:[%s2388] sm:$0xf]
        %v2390 = vld [vmem:[%s2388 + $0x4] sm:$0xf]
        %v2391 = vld [vmem:[%s2388 + $0x8] sm:$0xf]
        %v2392 = vld [vmem:[%s2388 + $0xc] sm:$0xf]
        %v2393 = vld [vmem:[%s2388 + $0x10] sm:$0xf]
        %v2394 = vld [vmem:[%s2388 + $0x14] sm:$0xf]
        %v2395 = vld [vmem:[%s2388 + $0x18] sm:$0xf]
        %v2396 = vld [vmem:[%s2388 + $0x1c] sm:$0xf]
        %v2397 = vld [vmem:[%s2388 + $0x20] sm:$0xf]
        %v2398 = vld [vmem:[%s2388 + $0x24] sm:$0xf]
        %v2399 = vld [vmem:[%s2388 + $0x28] sm:$0xf]
        %v2400 = vld [vmem:[%s2388 + $0x2c] sm:$0xf]
        %v2401 = vld [vmem:[%s2388 + $0x30] sm:$0xf]
        %v2402 = vld [vmem:[%s2388 + $0x34] sm:$0xf]
        %v2403 = vld [vmem:[%s2388 + $0x38] sm:$0xf]
        %v2404 = vld [vmem:[%s2388 + $0x3c] sm:$0xf]
        %v2405 = vld [vmem:[%s2388 + $0x40] sm:$0xf]
        %s2406 = scalar_lea.vmem [#allocation5], 768
        %v2407 = vld [vmem:[%s2406] sm:$0xff]
        %v2408 = vld [vmem:[%s2406 + $0x8] sm:$0xff]
        %v2409 = vld [vmem:[%s2406 + $0x10] sm:$0xff]
        %v2410 = vld [vmem:[%s2406 + $0x18] sm:$0xff]
        %v2411 = vld [vmem:[%s2406 + $0x20] sm:$0xff]
        %v2412 = vld [vmem:[%s2406 + $0x28] sm:$0xff]
        %v2413 = vld [vmem:[%s2406 + $0x30] sm:$0xff]
        %v2414 = vld [vmem:[%s2406 + $0x38] sm:$0xff]
        %v2415 = vld [vmem:[%s2406 + $0x40] sm:$0xff]
        %v2416 = vld [vmem:[%s2406 + $0x48] sm:$0xff]
        %v2417 = vld [vmem:[%s2406 + $0x50] sm:$0xff]
        %v2418 = vld [vmem:[%s2406 + $0x58] sm:$0xff]
        %v2419 = vld [vmem:[%s2406 + $0x60] sm:$0xff]
        %v2420 = vld [vmem:[%s2406 + $0x68] sm:$0xff]
        %v2421 = vld [vmem:[%s2406 + $0x70] sm:$0xff]
        %v2422 = vld [vmem:[%s2406 + $0x78] sm:$0xff]
        %v2440 = vunpack.c.l.b16 %v2389
        %v2441 = vunpack.c.l.b16 %v2390
        %v2442 = vunpack.c.l.b16 %v2391
        %v2443 = vunpack.c.l.b16 %v2392
        %v2444 = vunpack.c.l.b16 %v2393
        %v2445 = vunpack.c.l.b16 %v2394
        %v2446 = vunpack.c.l.b16 %v2395
        %v2447 = vunpack.c.l.b16 %v2396
        %v2448 = vunpack.c.l.b16 %v2397
        %v2449 = vunpack.c.l.b16 %v2398
        %v2450 = vunpack.c.l.b16 %v2399
        %v2451 = vunpack.c.l.b16 %v2400
        %v2452 = vunpack.c.l.b16 %v2401
        %v2453 = vunpack.c.l.b16 %v2402
        %v2454 = vunpack.c.l.b16 %v2403
        %v2455 = vunpack.c.l.b16 %v2404
        %v2456 = vunpack.c.l.b16 %v2405
        %v2457 = vpack.c.b16 %v2441, %v2440
        %v2458 = vpack.c.b16 %v2443, %v2442
        %v2459 = vpack.c.b16 %v2445, %v2444
        %v2460 = vpack.c.b16 %v2447, %v2446
        %v2461 = vpack.c.b16 %v2449, %v2448
        %v2462 = vpack.c.b16 %v2451, %v2450
        %v2463 = vpack.c.b16 %v2453, %v2452
        %v2464 = vpack.c.b16 %v2455, %v2454
        %v2465 = vpack.c.b16 %v2456, %v2456
        %v2491 = vunpack.c.l.b16 %v2407
        %v2492 = vunpack.c.h.b16 %v2407
        %v2493 = vunpack.c.l.b16 %v2408
        %v2494 = vunpack.c.h.b16 %v2408
        %v2495 = vunpack.c.l.b16 %v2409
        %v2496 = vunpack.c.h.b16 %v2409
        %v2497 = vunpack.c.l.b16 %v2410
        %v2498 = vunpack.c.h.b16 %v2410
        %v2499 = vunpack.c.l.b16 %v2411
        %v2500 = vunpack.c.h.b16 %v2411
        %v2501 = vunpack.c.l.b16 %v2412
        %v2502 = vunpack.c.h.b16 %v2412
        %v2503 = vunpack.c.l.b16 %v2413
        %v2504 = vunpack.c.h.b16 %v2413
        %v2505 = vunpack.c.l.b16 %v2414
        %v2506 = vunpack.c.h.b16 %v2414
        %v2507 = vunpack.c.l.b16 %v2415
        %v2508 = vunpack.c.h.b16 %v2415
        %v2509 = vunpack.c.l.b16 %v2416
        %v2510 = vunpack.c.h.b16 %v2416
        %v2511 = vunpack.c.l.b16 %v2417
        %v2512 = vunpack.c.h.b16 %v2417
        %v2513 = vunpack.c.l.b16 %v2418
        %v2514 = vunpack.c.h.b16 %v2418
        %v2515 = vunpack.c.l.b16 %v2419
        %v2516 = vunpack.c.h.b16 %v2419
        %v2517 = vunpack.c.l.b16 %v2420
        %v2518 = vunpack.c.h.b16 %v2420
        %v2519 = vunpack.c.l.b16 %v2421
        %v2520 = vunpack.c.h.b16 %v2421
        %v2521 = vunpack.c.l.b16 %v2422
        %v2522 = vunpack.c.h.b16 %v2422
        %v2523 = vpack.c.b16 %v2493, %v2491
        %v2524 = vpack.c.b16 %v2494, %v2492
        %v2525 = vpack.c.b16 %v2497, %v2495
        %v2526 = vpack.c.b16 %v2498, %v2496
        %v2527 = vpack.c.b16 %v2501, %v2499
        %v2528 = vpack.c.b16 %v2502, %v2500
        %v2529 = vpack.c.b16 %v2505, %v2503
        %v2530 = vpack.c.b16 %v2506, %v2504
        %v2531 = vpack.c.b16 %v2509, %v2507
        %v2532 = vpack.c.b16 %v2510, %v2508
        %v2533 = vpack.c.b16 %v2513, %v2511
        %v2534 = vpack.c.b16 %v2514, %v2512
        %v2535 = vpack.c.b16 %v2517, %v2515
        %v2536 = vpack.c.b16 %v2518, %v2516
        %v2537 = vpack.c.b16 %v2521, %v2519
        %v2538 = vpack.c.b16 %v2522, %v2520
        %2555 = vmatprep.subr.bf16.mxu0 %v2524
        %2556 = vmatpush1.bf16.msra.mxu0 %v2523
        %2557 = vmatprep.subr.bf16.mxu0 %v2526
        %2558 = vmatpush1.bf16.msra.mxu0 %v2525
        %2559 = vmatprep.subr.bf16.mxu0 %v2528
        %2560 = vmatpush1.bf16.msra.mxu0 %v2527
        %2561 = vmatprep.subr.bf16.mxu0 %v2530
        %2562 = vmatpush1.bf16.msra.mxu0 %v2529
        %2563 = vmatprep.subr.bf16.mxu0 %v2532
        %2564 = vmatpush1.bf16.msra.mxu0 %v2531
        %2565 = vmatprep.subr.bf16.mxu0 %v2534
        %2566 = vmatpush1.bf16.msra.mxu0 %v2533
        %2567 = vmatprep.subr.bf16.mxu0 %v2536
        %2568 = vmatpush1.bf16.msra.mxu0 %v2535
        %2569 = vmatprep.subr.bf16.mxu0 %v2538
        %2570 = vmatpush1.bf16.msra.mxu0 %v2537
        %2571 = vmatprep.subr.bf16.mxu0 0
        %2572 = vmatpush1.bf16.msra.mxu0 0
        %2573 = vmatprep.subr.bf16.mxu0 0
        %2574 = vmatpush1.bf16.msra.mxu0 0
        %2575 = vmatprep.subr.bf16.mxu0 0
        %2576 = vmatpush1.bf16.msra.mxu0 0
        %2577 = vmatprep.subr.bf16.mxu0 0
        %2578 = vmatpush1.bf16.msra.mxu0 0
        %2579 = vmatprep.subr.bf16.mxu0 0
        %2580 = vmatpush1.bf16.msra.mxu0 0
        %2581 = vmatprep.subr.bf16.mxu0 0
        %2582 = vmatpush1.bf16.msra.mxu0 0
        %2583 = vmatprep.subr.bf16.mxu0 0
        %2584 = vmatpush1.bf16.msra.mxu0 0
        %2585 = vmatprep.subr.bf16.mxu0 0
        %2586 = vmatpush1.bf16.msra.mxu0 0
        %2587 = vmatprep.mubr.bf16.mxu0 0
        %2588 = vmatmul.mubr.bf16.gmra.mrb[0].mxu0 %v2457
        %v2589 = vpop.f32.mrb[0].mxu0
        %v2590 = vadd.f32 0.0, %v2589
        %v2591 = vpop.f32.mrb[0].mxu0
        %v2592 = vadd.f32 0.0, %v2591
        %v2593 = vpop.f32.mrb[0].mxu0
        %v2594 = vadd.f32 0.0, %v2593
        %v2595 = vpop.f32.mrb[0].mxu0
        %v2596 = vadd.f32 0.0, %v2595
        %2597 = vmatprep.mubr.bf16.mxu0 0
        %2598 = vmatmul.mubr.bf16.gmra.mrb[0].mxu0 %v2458
        %v2599 = vpop.f32.mrb[0].mxu0
        %v2600 = vadd.f32 0.0, %v2599
        %v2601 = vpop.f32.mrb[0].mxu0
        %v2602 = vadd.f32 0.0, %v2601
        %v2603 = vpop.f32.mrb[0].mxu0
        %v2604 = vadd.f32 0.0, %v2603
        %v2605 = vpop.f32.mrb[0].mxu0
        %v2606 = vadd.f32 0.0, %v2605
        %2607 = vmatprep.mubr.bf16.mxu0 0
        %2608 = vmatmul.mubr.bf16.gmra.mrb[0].mxu0 %v2459
        %v2609 = vpop.f32.mrb[0].mxu0
        %v2610 = vadd.f32 0.0, %v2609
        %v2611 = vpop.f32.mrb[0].mxu0
        %v2612 = vadd.f32 0.0, %v2611
        %v2613 = vpop.f32.mrb[0].mxu0
        %v2614 = vadd.f32 0.0, %v2613
        %v2615 = vpop.f32.mrb[0].mxu0
        %v2616 = vadd.f32 0.0, %v2615
        %2617 = vmatprep.mubr.bf16.mxu0 0
        %2618 = vmatmul.mubr.bf16.gmra.mrb[0].mxu0 %v2460
        %v2619 = vpop.f32.mrb[0].mxu0
        %v2620 = vadd.f32 0.0, %v2619
        %v2621 = vpop.f32.mrb[0].mxu0
        %v2622 = vadd.f32 0.0, %v2621
        %v2623 = vpop.f32.mrb[0].mxu0
        %v2624 = vadd.f32 0.0, %v2623
        %v2625 = vpop.f32.mrb[0].mxu0
        %v2626 = vadd.f32 0.0, %v2625
        %2627 = vmatprep.mubr.bf16.mxu0 0
        %2628 = vmatmul.mubr.bf16.gmra.mrb[0].mxu0 %v2461
        %v2629 = vpop.f32.mrb[0].mxu0
        %v2630 = vadd.f32 0.0, %v2629
        %v2631 = vpop.f32.mrb[0].mxu0
        %v2632 = vadd.f32 0.0, %v2631
        %v2633 = vpop.f32.mrb[0].mxu0
        %v2634 = vadd.f32 0.0, %v2633
        %v2635 = vpop.f32.mrb[0].mxu0
        %v2636 = vadd.f32 0.0, %v2635
        %2637 = vmatprep.mubr.bf16.mxu0 0
        %2638 = vmatmul.mubr.bf16.gmra.mrb[0].mxu0 %v2462
        %v2639 = vpop.f32.mrb[0].mxu0
        %v2640 = vadd.f32 0.0, %v2639
        %v2641 = vpop.f32.mrb[0].mxu0
        %v2642 = vadd.f32 0.0, %v2641
        %v2643 = vpop.f32.mrb[0].mxu0
        %v2644 = vadd.f32 0.0, %v2643
        %v2645 = vpop.f32.mrb[0].mxu0
        %v2646 = vadd.f32 0.0, %v2645
        %2647 = vmatprep.mubr.bf16.mxu0 0
        %2648 = vmatmul.mubr.bf16.gmra.mrb[0].mxu0 %v2463
        %v2649 = vpop.f32.mrb[0].mxu0
        %v2650 = vadd.f32 0.0, %v2649
        %v2651 = vpop.f32.mrb[0].mxu0
        %v2652 = vadd.f32 0.0, %v2651
        %v2653 = vpop.f32.mrb[0].mxu0
        %v2654 = vadd.f32 0.0, %v2653
        %v2655 = vpop.f32.mrb[0].mxu0
        %v2656 = vadd.f32 0.0, %v2655
        %2657 = vmatprep.mubr.bf16.mxu0 0
        %2658 = vmatmul.mubr.bf16.gmra.mrb[0].mxu0 %v2464
        %v2659 = vpop.f32.mrb[0].mxu0
        %v2660 = vadd.f32 0.0, %v2659
        %v2661 = vpop.f32.mrb[0].mxu0
        %v2662 = vadd.f32 0.0, %v2661
        %v2663 = vpop.f32.mrb[0].mxu0
        %v2664 = vadd.f32 0.0, %v2663
        %v2665 = vpop.f32.mrb[0].mxu0
        %v2666 = vadd.f32 0.0, %v2665
        %2667 = vmatprep.mubr.bf16.mxu0 0
        %2668 = vmatmul.mubr.bf16.gmra.mrb[0].mxu0 %v2465
        %v2669 = vpop.f32.mrb[0].mxu0
        %v2670 = vpop.f32.mrb[0].mxu0
        %v2671 = vpop.f32.mrb[0].mxu0
        %v2672 = vpop.f32.mrb[0].mxu0
        %2673 = vdwg.mxu0
        %v2674 = vadd.f32 %v2352, %v2590
        %v2675 = vadd.f32 %v2353, %v2592
        %v2676 = vadd.f32 %v2354, %v2594
        %v2677 = vadd.f32 %v2355, %v2596
        %v2678 = vadd.f32 %v2356, %v2600
        %v2679 = vadd.f32 %v2357, %v2602
        %v2680 = vadd.f32 %v2358, %v2604
        %v2681 = vadd.f32 %v2359, %v2606
        %v2682 = vadd.f32 %v2360, %v2610
        %v2683 = vadd.f32 %v2361, %v2612
        %v2684 = vadd.f32 %v2362, %v2614
        %v2685 = vadd.f32 %v2363, %v2616
        %v2686 = vadd.f32 %v2364, %v2620
        %v2687 = vadd.f32 %v2365, %v2622
        %v2688 = vadd.f32 %v2366, %v2624
        %v2689 = vadd.f32 %v2367, %v2626
        %v2690 = vadd.f32 %v2368, %v2630
        %v2691 = vadd.f32 %v2369, %v2632
        %v2692 = vadd.f32 %v2370, %v2634
        %v2693 = vadd.f32 %v2371, %v2636
        %v2694 = vadd.f32 %v2372, %v2640
        %v2695 = vadd.f32 %v2373, %v2642
        %v2696 = vadd.f32 %v2374, %v2644
        %v2697 = vadd.f32 %v2375, %v2646
        %v2698 = vadd.f32 %v2376, %v2650
        %v2699 = vadd.f32 %v2377, %v2652
        %v2700 = vadd.f32 %v2378, %v2654
        %v2701 = vadd.f32 %v2379, %v2656
        %v2702 = vadd.f32 %v2380, %v2660
        %v2703 = vadd.f32 %v2381, %v2662
        %v2704 = vadd.f32 %v2382, %v2664
        %v2705 = vadd.f32 %v2383, %v2666
        %s2706 = scalar_lea.vmem [#allocation5], 896
        %v2707 = vld [vmem:[%s2706] sm:$0xff]
        %v2708 = vld [vmem:[%s2706 + $0x8] sm:$0xff]
        %v2709 = vld [vmem:[%s2706 + $0x10] sm:$0xff]
        %v2710 = vld [vmem:[%s2706 + $0x18] sm:$0xff]
        %v2711 = vld [vmem:[%s2706 + $0x20] sm:$0xff]
        %v2712 = vld [vmem:[%s2706 + $0x28] sm:$0xff]
        %v2713 = vld [vmem:[%s2706 + $0x30] sm:$0xff]
        %v2714 = vld [vmem:[%s2706 + $0x38] sm:$0xff]
        %v2715 = vld [vmem:[%s2706 + $0x40] sm:$0xff]
        %v2716 = vld [vmem:[%s2706 + $0x48] sm:$0xff]
        %v2717 = vld [vmem:[%s2706 + $0x50] sm:$0xff]
        %v2718 = vld [vmem:[%s2706 + $0x58] sm:$0xff]
        %v2719 = vld [vmem:[%s2706 + $0x60] sm:$0xff]
        %v2720 = vld [vmem:[%s2706 + $0x68] sm:$0xff]
        %v2721 = vld [vmem:[%s2706 + $0x70] sm:$0xff]
        %v2722 = vld [vmem:[%s2706 + $0x78] sm:$0xff]
        %v2739 = vunpack.c.l.b16 %v2707
        %v2740 = vunpack.c.h.b16 %v2707
        %v2741 = vunpack.c.l.b16 %v2708
        %v2742 = vunpack.c.h.b16 %v2708
        %v2743 = vunpack.c.l.b16 %v2709
        %v2744 = vunpack.c.h.b16 %v2709
        %v2745 = vunpack.c.l.b16 %v2710
        %v2746 = vunpack.c.h.b16 %v2710
        %v2747 = vunpack.c.l.b16 %v2711
        %v2748 = vunpack.c.h.b16 %v2711
        %v2749 = vunpack.c.l.b16 %v2712
        %v2750 = vunpack.c.h.b16 %v2712
        %v2751 = vunpack.c.l.b16 %v2713
        %v2752 = vunpack.c.h.b16 %v2713
        %v2753 = vunpack.c.l.b16 %v2714
        %v2754 = vunpack.c.h.b16 %v2714
        %v2755 = vunpack.c.l.b16 %v2715
        %v2756 = vunpack.c.h.b16 %v2715
        %v2757 = vunpack.c.l.b16 %v2716
        %v2758 = vunpack.c.h.b16 %v2716
        %v2759 = vunpack.c.l.b16 %v2717
        %v2760 = vunpack.c.h.b16 %v2717
        %v2761 = vunpack.c.l.b16 %v2718
        %v2762 = vunpack.c.h.b16 %v2718
        %v2763 = vunpack.c.l.b16 %v2719
        %v2764 = vunpack.c.h.b16 %v2719
        %v2765 = vunpack.c.l.b16 %v2720
        %v2766 = vunpack.c.h.b16 %v2720
        %v2767 = vunpack.c.l.b16 %v2721
        %v2768 = vunpack.c.h.b16 %v2721
        %v2769 = vunpack.c.l.b16 %v2722
        %v2770 = vunpack.c.h.b16 %v2722
        %v2771 = vpack.c.b16 %v2741, %v2739
        %v2772 = vpack.c.b16 %v2742, %v2740
        %v2773 = vpack.c.b16 %v2745, %v2743
        %v2774 = vpack.c.b16 %v2746, %v2744
        %v2775 = vpack.c.b16 %v2749, %v2747
        %v2776 = vpack.c.b16 %v2750, %v2748
        %v2777 = vpack.c.b16 %v2753, %v2751
        %v2778 = vpack.c.b16 %v2754, %v2752
        %v2779 = vpack.c.b16 %v2757, %v2755
        %v2780 = vpack.c.b16 %v2758, %v2756
        %v2781 = vpack.c.b16 %v2761, %v2759
        %v2782 = vpack.c.b16 %v2762, %v2760
        %v2783 = vpack.c.b16 %v2765, %v2763
        %v2784 = vpack.c.b16 %v2766, %v2764
        %v2785 = vpack.c.b16 %v2769, %v2767
        %v2786 = vpack.c.b16 %v2770, %v2768
        %2803 = vmatprep.subr.bf16.mxu0 %v2772
        %2804 = vmatpush1.bf16.msra.mxu0 %v2771
        %2805 = vmatprep.subr.bf16.mxu0 %v2774
        %2806 = vmatpush1.bf16.msra.mxu0 %v2773
        %2807 = vmatprep.subr.bf16.mxu0 %v2776
        %2808 = vmatpush1.bf16.msra.mxu0 %v2775
        %2809 = vmatprep.subr.bf16.mxu0 %v2778
        %2810 = vmatpush1.bf16.msra.mxu0 %v2777
        %2811 = vmatprep.subr.bf16.mxu0 %v2780
        %2812 = vmatpush1.bf16.msra.mxu0 %v2779
        %2813 = vmatprep.subr.bf16.mxu0 %v2782
        %2814 = vmatpush1.bf16.msra.mxu0 %v2781
        %2815 = vmatprep.subr.bf16.mxu0 %v2784
        %2816 = vmatpush1.bf16.msra.mxu0 %v2783
        %2817 = vmatprep.subr.bf16.mxu0 %v2786
        %2818 = vmatpush1.bf16.msra.mxu0 %v2785
        %2819 = vmatprep.subr.bf16.mxu0 0
        %2820 = vmatpush1.bf16.msra.mxu0 0
        %2821 = vmatprep.subr.bf16.mxu0 0
        %2822 = vmatpush1.bf16.msra.mxu0 0
        %2823 = vmatprep.subr.bf16.mxu0 0
        %2824 = vmatpush1.bf16.msra.mxu0 0
        %2825 = vmatprep.subr.bf16.mxu0 0
        %2826 = vmatpush1.bf16.msra.mxu0 0
        %2827 = vmatprep.subr.bf16.mxu0 0
        %2828 = vmatpush1.bf16.msra.mxu0 0
        %2829 = vmatprep.subr.bf16.mxu0 0
        %2830 = vmatpush1.bf16.msra.mxu0 0
        %2831 = vmatprep.subr.bf16.mxu0 0
        %2832 = vmatpush1.bf16.msra.mxu0 0
        %2833 = vmatprep.subr.bf16.mxu0 0
        %2834 = vmatpush1.bf16.msra.mxu0 0
        %2835 = vmatprep.mubr.bf16.mxu0 0
        %2836 = vmatmul.mubr.bf16.gmra.mrb[0].mxu0 %v2457
        %v2837 = vpop.f32.mrb[0].mxu0
        %v2838 = vadd.f32 0.0, %v2837
        %v2839 = vpop.f32.mrb[0].mxu0
        %v2840 = vadd.f32 0.0, %v2839
        %v2841 = vpop.f32.mrb[0].mxu0
        %v2842 = vadd.f32 0.0, %v2841
        %v2843 = vpop.f32.mrb[0].mxu0
        %v2844 = vadd.f32 0.0, %v2843
        %2845 = vmatprep.mubr.bf16.mxu0 0
        %2846 = vmatmul.mubr.bf16.gmra.mrb[0].mxu0 %v2458
        %v2847 = vpop.f32.mrb[0].mxu0
        %v2848 = vadd.f32 0.0, %v2847
        %v2849 = vpop.f32.mrb[0].mxu0
        %v2850 = vadd.f32 0.0, %v2849
        %v2851 = vpop.f32.mrb[0].mxu0
        %v2852 = vadd.f32 0.0, %v2851
        %v2853 = vpop.f32.mrb[0].mxu0
        %v2854 = vadd.f32 0.0, %v2853
        %2855 = vmatprep.mubr.bf16.mxu0 0
        %2856 = vmatmul.mubr.bf16.gmra.mrb[0].mxu0 %v2459
        %v2857 = vpop.f32.mrb[0].mxu0
        %v2858 = vadd.f32 0.0, %v2857
        %v2859 = vpop.f32.mrb[0].mxu0
        %v2860 = vadd.f32 0.0, %v2859
        %v2861 = vpop.f32.mrb[0].mxu0
        %v2862 = vadd.f32 0.0, %v2861
        %v2863 = vpop.f32.mrb[0].mxu0
        %v2864 = vadd.f32 0.0, %v2863
        %2865 = vmatprep.mubr.bf16.mxu0 0
        %2866 = vmatmul.mubr.bf16.gmra.mrb[0].mxu0 %v2460
        %v2867 = vpop.f32.mrb[0].mxu0
        %v2868 = vadd.f32 0.0, %v2867
        %v2869 = vpop.f32.mrb[0].mxu0
        %v2870 = vadd.f32 0.0, %v2869
        %v2871 = vpop.f32.mrb[0].mxu0
        %v2872 = vadd.f32 0.0, %v2871
        %v2873 = vpop.f32.mrb[0].mxu0
        %v2874 = vadd.f32 0.0, %v2873
        %2875 = vmatprep.mubr.bf16.mxu0 0
        %2876 = vmatmul.mubr.bf16.gmra.mrb[0].mxu0 %v2461
        %v2877 = vpop.f32.mrb[0].mxu0
        %v2878 = vadd.f32 0.0, %v2877
        %v2879 = vpop.f32.mrb[0].mxu0
        %v2880 = vadd.f32 0.0, %v2879
        %v2881 = vpop.f32.mrb[0].mxu0
        %v2882 = vadd.f32 0.0, %v2881
        %v2883 = vpop.f32.mrb[0].mxu0
        %v2884 = vadd.f32 0.0, %v2883
        %2885 = vmatprep.mubr.bf16.mxu0 0
        %2886 = vmatmul.mubr.bf16.gmra.mrb[0].mxu0 %v2462
        %v2887 = vpop.f32.mrb[0].mxu0
        %v2888 = vadd.f32 0.0, %v2887
        %v2889 = vpop.f32.mrb[0].mxu0
        %v2890 = vadd.f32 0.0, %v2889
        %v2891 = vpop.f32.mrb[0].mxu0
        %v2892 = vadd.f32 0.0, %v2891
        %v2893 = vpop.f32.mrb[0].mxu0
        %v2894 = vadd.f32 0.0, %v2893
        %2895 = vmatprep.mubr.bf16.mxu0 0
        %2896 = vmatmul.mubr.bf16.gmra.mrb[0].mxu0 %v2463
        %v2897 = vpop.f32.mrb[0].mxu0
        %v2898 = vadd.f32 0.0, %v2897
        %v2899 = vpop.f32.mrb[0].mxu0
        %v2900 = vadd.f32 0.0, %v2899
        %v2901 = vpop.f32.mrb[0].mxu0
        %v2902 = vadd.f32 0.0, %v2901
        %v2903 = vpop.f32.mrb[0].mxu0
        %v2904 = vadd.f32 0.0, %v2903
        %2905 = vmatprep.mubr.bf16.mxu0 0
        %2906 = vmatmul.mubr.bf16.gmra.mrb[0].mxu0 %v2464
        %v2907 = vpop.f32.mrb[0].mxu0
        %v2908 = vadd.f32 0.0, %v2907
        %v2909 = vpop.f32.mrb[0].mxu0
        %v2910 = vadd.f32 0.0, %v2909
        %v2911 = vpop.f32.mrb[0].mxu0
        %v2912 = vadd.f32 0.0, %v2911
        %v2913 = vpop.f32.mrb[0].mxu0
        %v2914 = vadd.f32 0.0, %v2913
        %2915 = vmatprep.mubr.bf16.mxu0 0
        %2916 = vmatmul.mubr.bf16.gmra.mrb[0].mxu0 %v2465
        %v2917 = vpop.f32.mrb[0].mxu0
        %v2918 = vadd.f32 0.0, %v2917
        %v2919 = vpop.f32.mrb[0].mxu0
        %v2920 = vadd.f32 0.0, %v2919
        %v2921 = vpop.f32.mrb[0].mxu0
        %v2922 = vpop.f32.mrb[0].mxu0
        %2923 = vdwg.mxu0
        %v2958 = vrot.slane %v2838, 1
        %v2959 = vrot.slane %v2842, 1
        %v2960 = vsel %vm784, %v2958, %v2959
        %v2961 = vrot.slane %v2840, 1
        %v2962 = vrot.slane %v2844, 1
        %v2963 = vsel %vm784, %v2961, %v2962
        %v2964 = vrot.slane %v2848, 1
        %v2965 = vsel %vm784, %v2959, %v2964
        %v2966 = vrot.slane %v2850, 1
        %v2967 = vsel %vm784, %v2962, %v2966
        %v2968 = vrot.slane %v2852, 1
        %v2969 = vsel %vm784, %v2964, %v2968
        %v2970 = vrot.slane %v2854, 1
        %v2971 = vsel %vm784, %v2966, %v2970
        %v2972 = vrot.slane %v2858, 1
        %v2973 = vsel %vm784, %v2968, %v2972
        %v2974 = vrot.slane %v2860, 1
        %v2975 = vsel %vm784, %v2970, %v2974
        %v2976 = vrot.slane %v2862, 1
        %v2977 = vsel %vm784, %v2972, %v2976
        %v2978 = vrot.slane %v2864, 1
        %v2979 = vsel %vm784, %v2974, %v2978
        %v2980 = vrot.slane %v2868, 1
        %v2981 = vsel %vm784, %v2976, %v2980
        %v2982 = vrot.slane %v2870, 1
        %v2983 = vsel %vm784, %v2978, %v2982
        %v2984 = vrot.slane %v2872, 1
        %v2985 = vsel %vm784, %v2980, %v2984
        %v2986 = vrot.slane %v2874, 1
        %v2987 = vsel %vm784, %v2982, %v2986
        %v2988 = vrot.slane %v2878, 1
        %v2989 = vsel %vm784, %v2984, %v2988
        %v2990 = vrot.slane %v2880, 1
        %v2991 = vsel %vm784, %v2986, %v2990
        %v2992 = vrot.slane %v2882, 1
        %v2993 = vsel %vm784, %v2988, %v2992
        %v2994 = vrot.slane %v2884, 1
        %v2995 = vsel %vm784, %v2990, %v2994
        %v2996 = vrot.slane %v2888, 1
        %v2997 = vsel %vm784, %v2992, %v2996
        %v2998 = vrot.slane %v2890, 1
        %v2999 = vsel %vm784, %v2994, %v2998
        %v3000 = vrot.slane %v2892, 1
        %v3001 = vsel %vm784, %v2996, %v3000
        %v3002 = vrot.slane %v2894, 1
        %v3003 = vsel %vm784, %v2998, %v3002
        %v3004 = vrot.slane %v2898, 1
        %v3005 = vsel %vm784, %v3000, %v3004
        %v3006 = vrot.slane %v2900, 1
        %v3007 = vsel %vm784, %v3002, %v3006
        %v3008 = vrot.slane %v2902, 1
        %v3009 = vsel %vm784, %v3004, %v3008
        %v3010 = vrot.slane %v2904, 1
        %v3011 = vsel %vm784, %v3006, %v3010
        %v3012 = vrot.slane %v2908, 1
        %v3013 = vsel %vm784, %v3008, %v3012
        %v3014 = vrot.slane %v2910, 1
        %v3015 = vsel %vm784, %v3010, %v3014
        %v3016 = vrot.slane %v2912, 1
        %v3017 = vsel %vm784, %v3012, %v3016
        %v3018 = vrot.slane %v2914, 1
        %v3019 = vsel %vm784, %v3014, %v3018
        %v3020 = vrot.slane %v2918, 1
        %v3021 = vsel %vm784, %v3016, %v3020
        %v3022 = vrot.slane %v2920, 1
        %v3023 = vsel %vm784, %v3018, %v3022
        %v3056 = vadd.f32 %v2674, %v2960
        %v3057 = vadd.f32 %v2675, %v2963
        %v3058 = vadd.f32 %v2676, %v2965
        %v3059 = vadd.f32 %v2677, %v2967
        %v3060 = vadd.f32 %v2678, %v2969
        %v3061 = vadd.f32 %v2679, %v2971
        %v3062 = vadd.f32 %v2680, %v2973
        %v3063 = vadd.f32 %v2681, %v2975
        %v3064 = vadd.f32 %v2682, %v2977
        %v3065 = vadd.f32 %v2683, %v2979
        %v3066 = vadd.f32 %v2684, %v2981
        %v3067 = vadd.f32 %v2685, %v2983
        %v3068 = vadd.f32 %v2686, %v2985
        %v3069 = vadd.f32 %v2687, %v2987
        %v3070 = vadd.f32 %v2688, %v2989
        %v3071 = vadd.f32 %v2689, %v2991
        %v3072 = vadd.f32 %v2690, %v2993
        %v3073 = vadd.f32 %v2691, %v2995
        %v3074 = vadd.f32 %v2692, %v2997
        %v3075 = vadd.f32 %v2693, %v2999
        %v3076 = vadd.f32 %v2694, %v3001
        %v3077 = vadd.f32 %v2695, %v3003
        %v3078 = vadd.f32 %v2696, %v3005
        %v3079 = vadd.f32 %v2697, %v3007
        %v3080 = vadd.f32 %v2698, %v3009
        %v3081 = vadd.f32 %v2699, %v3011
        %v3082 = vadd.f32 %v2700, %v3013
        %v3083 = vadd.f32 %v2701, %v3015
        %v3084 = vadd.f32 %v2702, %v3017
        %v3085 = vadd.f32 %v2703, %v3019
        %v3086 = vadd.f32 %v2704, %v3021
        %v3087 = vadd.f32 %v2705, %v3023
        %s3088 = scalar_lea.vmem [#allocation5], 1024
        %v3089 = vld [vmem:[%s3088] sm:$0xff]
        %v3090 = vld [vmem:[%s3088 + $0x8] sm:$0xff]
        %v3091 = vld [vmem:[%s3088 + $0x10] sm:$0xff]
        %v3092 = vld [vmem:[%s3088 + $0x18] sm:$0xff]
        %v3093 = vld [vmem:[%s3088 + $0x20] sm:$0xff]
        %v3094 = vld [vmem:[%s3088 + $0x28] sm:$0xff]
        %v3095 = vld [vmem:[%s3088 + $0x30] sm:$0xff]
        %v3096 = vld [vmem:[%s3088 + $0x38] sm:$0xff]
        %v3097 = vld [vmem:[%s3088 + $0x40] sm:$0xff]
        %v3098 = vld [vmem:[%s3088 + $0x48] sm:$0xff]
        %v3099 = vld [vmem:[%s3088 + $0x50] sm:$0xff]
        %v3100 = vld [vmem:[%s3088 + $0x58] sm:$0xff]
        %v3101 = vld [vmem:[%s3088 + $0x60] sm:$0xff]
        %v3102 = vld [vmem:[%s3088 + $0x68] sm:$0xff]
        %v3103 = vld [vmem:[%s3088 + $0x70] sm:$0xff]
        %v3104 = vld [vmem:[%s3088 + $0x78] sm:$0xff]
        %v3121 = vunpack.c.l.b16 %v3089
        %v3122 = vunpack.c.h.b16 %v3089
        %v3123 = vunpack.c.l.b16 %v3090
        %v3124 = vunpack.c.h.b16 %v3090
        %v3125 = vunpack.c.l.b16 %v3091
        %v3126 = vunpack.c.h.b16 %v3091
        %v3127 = vunpack.c.l.b16 %v3092
        %v3128 = vunpack.c.h.b16 %v3092
        %v3129 = vunpack.c.l.b16 %v3093
        %v3130 = vunpack.c.h.b16 %v3093
        %v3131 = vunpack.c.l.b16 %v3094
        %v3132 = vunpack.c.h.b16 %v3094
        %v3133 = vunpack.c.l.b16 %v3095
        %v3134 = vunpack.c.h.b16 %v3095
        %v3135 = vunpack.c.l.b16 %v3096
        %v3136 = vunpack.c.h.b16 %v3096
        %v3137 = vunpack.c.l.b16 %v3097
        %v3138 = vunpack.c.h.b16 %v3097
        %v3139 = vunpack.c.l.b16 %v3098
        %v3140 = vunpack.c.h.b16 %v3098
        %v3141 = vunpack.c.l.b16 %v3099
        %v3142 = vunpack.c.h.b16 %v3099
        %v3143 = vunpack.c.l.b16 %v3100
        %v3144 = vunpack.c.h.b16 %v3100
        %v3145 = vunpack.c.l.b16 %v3101
        %v3146 = vunpack.c.h.b16 %v3101
        %v3147 = vunpack.c.l.b16 %v3102
        %v3148 = vunpack.c.h.b16 %v3102
        %v3149 = vunpack.c.l.b16 %v3103
        %v3150 = vunpack.c.h.b16 %v3103
        %v3151 = vunpack.c.l.b16 %v3104
        %v3152 = vunpack.c.h.b16 %v3104
        %v3153 = vpack.c.b16 %v3123, %v3121
        %v3154 = vpack.c.b16 %v3124, %v3122
        %v3155 = vpack.c.b16 %v3127, %v3125
        %v3156 = vpack.c.b16 %v3128, %v3126
        %v3157 = vpack.c.b16 %v3131, %v3129
        %v3158 = vpack.c.b16 %v3132, %v3130
        %v3159 = vpack.c.b16 %v3135, %v3133
        %v3160 = vpack.c.b16 %v3136, %v3134
        %v3161 = vpack.c.b16 %v3139, %v3137
        %v3162 = vpack.c.b16 %v3140, %v3138
        %v3163 = vpack.c.b16 %v3143, %v3141
        %v3164 = vpack.c.b16 %v3144, %v3142
        %v3165 = vpack.c.b16 %v3147, %v3145
        %v3166 = vpack.c.b16 %v3148, %v3146
        %v3167 = vpack.c.b16 %v3151, %v3149
        %v3168 = vpack.c.b16 %v3152, %v3150
        %3185 = vmatprep.subr.bf16.mxu0 %v3154
        %3186 = vmatpush1.bf16.msra.mxu0 %v3153
        %3187 = vmatprep.subr.bf16.mxu0 %v3156
        %3188 = vmatpush1.bf16.msra.mxu0 %v3155
        %3189 = vmatprep.subr.bf16.mxu0 %v3158
        %3190 = vmatpush1.bf16.msra.mxu0 %v3157
        %3191 = vmatprep.subr.bf16.mxu0 %v3160
        %3192 = vmatpush1.bf16.msra.mxu0 %v3159
        %3193 = vmatprep.subr.bf16.mxu0 %v3162
        %3194 = vmatpush1.bf16.msra.mxu0 %v3161
        %3195 = vmatprep.subr.bf16.mxu0 %v3164
        %3196 = vmatpush1.bf16.msra.mxu0 %v3163
        %3197 = vmatprep.subr.bf16.mxu0 %v3166
        %3198 = vmatpush1.bf16.msra.mxu0 %v3165
        %3199 = vmatprep.subr.bf16.mxu0 %v3168
        %3200 = vmatpush1.bf16.msra.mxu0 %v3167
        %3201 = vmatprep.subr.bf16.mxu0 0
        %3202 = vmatpush1.bf16.msra.mxu0 0
        %3203 = vmatprep.subr.bf16.mxu0 0
        %3204 = vmatpush1.bf16.msra.mxu0 0
        %3205 = vmatprep.subr.bf16.mxu0 0
        %3206 = vmatpush1.bf16.msra.mxu0 0
        %3207 = vmatprep.subr.bf16.mxu0 0
        %3208 = vmatpush1.bf16.msra.mxu0 0
        %3209 = vmatprep.subr.bf16.mxu0 0
        %3210 = vmatpush1.bf16.msra.mxu0 0
        %3211 = vmatprep.subr.bf16.mxu0 0
        %3212 = vmatpush1.bf16.msra.mxu0 0
        %3213 = vmatprep.subr.bf16.mxu0 0
        %3214 = vmatpush1.bf16.msra.mxu0 0
        %3215 = vmatprep.subr.bf16.mxu0 0
        %3216 = vmatpush1.bf16.msra.mxu0 0
        %3217 = vmatprep.mubr.bf16.mxu0 0
        %3218 = vmatmul.mubr.bf16.gmra.mrb[0].mxu0 %v2457
        %v3219 = vpop.f32.mrb[0].mxu0
        %v3220 = vadd.f32 0.0, %v3219
        %v3221 = vpop.f32.mrb[0].mxu0
        %v3222 = vadd.f32 0.0, %v3221
        %v3223 = vpop.f32.mrb[0].mxu0
        %v3224 = vadd.f32 0.0, %v3223
        %v3225 = vpop.f32.mrb[0].mxu0
        %v3226 = vadd.f32 0.0, %v3225
        %3227 = vmatprep.mubr.bf16.mxu0 0
        %3228 = vmatmul.mubr.bf16.gmra.mrb[0].mxu0 %v2458
        %v3229 = vpop.f32.mrb[0].mxu0
        %v3230 = vadd.f32 0.0, %v3229
        %v3231 = vpop.f32.mrb[0].mxu0
        %v3232 = vadd.f32 0.0, %v3231
        %v3233 = vpop.f32.mrb[0].mxu0
        %v3234 = vadd.f32 0.0, %v3233
        %v3235 = vpop.f32.mrb[0].mxu0
        %v3236 = vadd.f32 0.0, %v3235
        %3237 = vmatprep.mubr.bf16.mxu0 0
        %3238 = vmatmul.mubr.bf16.gmra.mrb[0].mxu0 %v2459
        %v3239 = vpop.f32.mrb[0].mxu0
        %v3240 = vadd.f32 0.0, %v3239
        %v3241 = vpop.f32.mrb[0].mxu0
        %v3242 = vadd.f32 0.0, %v3241
        %v3243 = vpop.f32.mrb[0].mxu0
        %v3244 = vadd.f32 0.0, %v3243
        %v3245 = vpop.f32.mrb[0].mxu0
        %v3246 = vadd.f32 0.0, %v3245
        %3247 = vmatprep.mubr.bf16.mxu0 0
        %3248 = vmatmul.mubr.bf16.gmra.mrb[0].mxu0 %v2460
        %v3249 = vpop.f32.mrb[0].mxu0
        %v3250 = vadd.f32 0.0, %v3249
        %v3251 = vpop.f32.mrb[0].mxu0
        %v3252 = vadd.f32 0.0, %v3251
        %v3253 = vpop.f32.mrb[0].mxu0
        %v3254 = vadd.f32 0.0, %v3253
        %v3255 = vpop.f32.mrb[0].mxu0
        %v3256 = vadd.f32 0.0, %v3255
        %3257 = vmatprep.mubr.bf16.mxu0 0
        %3258 = vmatmul.mubr.bf16.gmra.mrb[0].mxu0 %v2461
        %v3259 = vpop.f32.mrb[0].mxu0
        %v3260 = vadd.f32 0.0, %v3259
        %v3261 = vpop.f32.mrb[0].mxu0
        %v3262 = vadd.f32 0.0, %v3261
        %v3263 = vpop.f32.mrb[0].mxu0
        %v3264 = vadd.f32 0.0, %v3263
        %v3265 = vpop.f32.mrb[0].mxu0
        %v3266 = vadd.f32 0.0, %v3265
        %3267 = vmatprep.mubr.bf16.mxu0 0
        %3268 = vmatmul.mubr.bf16.gmra.mrb[0].mxu0 %v2462
        %v3269 = vpop.f32.mrb[0].mxu0
        %v3270 = vadd.f32 0.0, %v3269
        %v3271 = vpop.f32.mrb[0].mxu0
        %v3272 = vadd.f32 0.0, %v3271
        %v3273 = vpop.f32.mrb[0].mxu0
        %v3274 = vadd.f32 0.0, %v3273
        %v3275 = vpop.f32.mrb[0].mxu0
        %v3276 = vadd.f32 0.0, %v3275
        %3277 = vmatprep.mubr.bf16.mxu0 0
        %3278 = vmatmul.mubr.bf16.gmra.mrb[0].mxu0 %v2463
        %v3279 = vpop.f32.mrb[0].mxu0
        %v3280 = vadd.f32 0.0, %v3279
        %v3281 = vpop.f32.mrb[0].mxu0
        %v3282 = vadd.f32 0.0, %v3281
        %v3283 = vpop.f32.mrb[0].mxu0
        %v3284 = vadd.f32 0.0, %v3283
        %v3285 = vpop.f32.mrb[0].mxu0
        %v3286 = vadd.f32 0.0, %v3285
        %3287 = vmatprep.mubr.bf16.mxu0 0
        %3288 = vmatmul.mubr.bf16.gmra.mrb[0].mxu0 %v2464
        %v3289 = vpop.f32.mrb[0].mxu0
        %v3290 = vadd.f32 0.0, %v3289
        %v3291 = vpop.f32.mrb[0].mxu0
        %v3292 = vadd.f32 0.0, %v3291
        %v3293 = vpop.f32.mrb[0].mxu0
        %v3294 = vadd.f32 0.0, %v3293
        %v3295 = vpop.f32.mrb[0].mxu0
        %v3296 = vadd.f32 0.0, %v3295
        %3297 = vmatprep.mubr.bf16.mxu0 0
        %3298 = vmatmul.mubr.bf16.gmra.mrb[0].mxu0 %v2465
        %v3299 = vpop.f32.mrb[0].mxu0
        %v3300 = vadd.f32 0.0, %v3299
        %v3301 = vpop.f32.mrb[0].mxu0
        %v3302 = vadd.f32 0.0, %v3301
        %v3303 = vpop.f32.mrb[0].mxu0
        %v3304 = vpop.f32.mrb[0].mxu0
        %3305 = vdwg.mxu0
        %v3340 = vrot.slane %v3220, 2
        %v3341 = vrot.slane %v3224, 2
        %v3342 = vsel %vm1167, %v3340, %v3341
        %v3343 = vrot.slane %v3222, 2
        %v3344 = vrot.slane %v3226, 2
        %v3345 = vsel %vm1167, %v3343, %v3344
        %v3346 = vrot.slane %v3230, 2
        %v3347 = vsel %vm1167, %v3341, %v3346
        %v3348 = vrot.slane %v3232, 2
        %v3349 = vsel %vm1167, %v3344, %v3348
        %v3350 = vrot.slane %v3234, 2
        %v3351 = vsel %vm1167, %v3346, %v3350
        %v3352 = vrot.slane %v3236, 2
        %v3353 = vsel %vm1167, %v3348, %v3352
        %v3354 = vrot.slane %v3240, 2
        %v3355 = vsel %vm1167, %v3350, %v3354
        %v3356 = vrot.slane %v3242, 2
        %v3357 = vsel %vm1167, %v3352, %v3356
        %v3358 = vrot.slane %v3244, 2
        %v3359 = vsel %vm1167, %v3354, %v3358
        %v3360 = vrot.slane %v3246, 2
        %v3361 = vsel %vm1167, %v3356, %v3360
        %v3362 = vrot.slane %v3250, 2
        %v3363 = vsel %vm1167, %v3358, %v3362
        %v3364 = vrot.slane %v3252, 2
        %v3365 = vsel %vm1167, %v3360, %v3364
        %v3366 = vrot.slane %v3254, 2
        %v3367 = vsel %vm1167, %v3362, %v3366
        %v3368 = vrot.slane %v3256, 2
        %v3369 = vsel %vm1167, %v3364, %v3368
        %v3370 = vrot.slane %v3260, 2
        %v3371 = vsel %vm1167, %v3366, %v3370
        %v3372 = vrot.slane %v3262, 2
        %v3373 = vsel %vm1167, %v3368, %v3372
        %v3374 = vrot.slane %v3264, 2
        %v3375 = vsel %vm1167, %v3370, %v3374
        %v3376 = vrot.slane %v3266, 2
        %v3377 = vsel %vm1167, %v3372, %v3376
        %v3378 = vrot.slane %v3270, 2
        %v3379 = vsel %vm1167, %v3374, %v3378
        %v3380 = vrot.slane %v3272, 2
        %v3381 = vsel %vm1167, %v3376, %v3380
        %v3382 = vrot.slane %v3274, 2
        %v3383 = vsel %vm1167, %v3378, %v3382
        %v3384 = vrot.slane %v3276, 2
        %v3385 = vsel %vm1167, %v3380, %v3384
        %v3386 = vrot.slane %v3280, 2
        %v3387 = vsel %vm1167, %v3382, %v3386
        %v3388 = vrot.slane %v3282, 2
        %v3389 = vsel %vm1167, %v3384, %v3388
        %v3390 = vrot.slane %v3284, 2
        %v3391 = vsel %vm1167, %v3386, %v3390
        %v3392 = vrot.slane %v3286, 2
        %v3393 = vsel %vm1167, %v3388, %v3392
        %v3394 = vrot.slane %v3290, 2
        %v3395 = vsel %vm1167, %v3390, %v3394
        %v3396 = vrot.slane %v3292, 2
        %v3397 = vsel %vm1167, %v3392, %v3396
        %v3398 = vrot.slane %v3294, 2
        %v3399 = vsel %vm1167, %v3394, %v3398
        %v3400 = vrot.slane %v3296, 2
        %v3401 = vsel %vm1167, %v3396, %v3400
        %v3402 = vrot.slane %v3300, 2
        %v3403 = vsel %vm1167, %v3398, %v3402
        %v3404 = vrot.slane %v3302, 2
        %v3405 = vsel %vm1167, %v3400, %v3404
        %v3438 = vadd.f32 %v3056, %v3342
        %v3439 = vadd.f32 %v3057, %v3345
        %v3440 = vadd.f32 %v3058, %v3347
        %v3441 = vadd.f32 %v3059, %v3349
        %v3442 = vadd.f32 %v3060, %v3351
        %v3443 = vadd.f32 %v3061, %v3353
        %v3444 = vadd.f32 %v3062, %v3355
        %v3445 = vadd.f32 %v3063, %v3357
        %v3446 = vadd.f32 %v3064, %v3359
        %v3447 = vadd.f32 %v3065, %v3361
        %v3448 = vadd.f32 %v3066, %v3363
        %v3449 = vadd.f32 %v3067, %v3365
        %v3450 = vadd.f32 %v3068, %v3367
        %v3451 = vadd.f32 %v3069, %v3369
        %v3452 = vadd.f32 %v3070, %v3371
        %v3453 = vadd.f32 %v3071, %v3373
        %v3454 = vadd.f32 %v3072, %v3375
        %v3455 = vadd.f32 %v3073, %v3377
        %v3456 = vadd.f32 %v3074, %v3379
        %v3457 = vadd.f32 %v3075, %v3381
        %v3458 = vadd.f32 %v3076, %v3383
        %v3459 = vadd.f32 %v3077, %v3385
        %v3460 = vadd.f32 %v3078, %v3387
        %v3461 = vadd.f32 %v3079, %v3389
        %v3462 = vadd.f32 %v3080, %v3391
        %v3463 = vadd.f32 %v3081, %v3393
        %v3464 = vadd.f32 %v3082, %v3395
        %v3465 = vadd.f32 %v3083, %v3397
        %v3466 = vadd.f32 %v3084, %v3399
        %v3467 = vadd.f32 %v3085, %v3401
        %v3468 = vadd.f32 %v3086, %v3403
        %v3469 = vadd.f32 %v3087, %v3405
        %v3470 = vld [vmem:[#allocation7] sm:$0x3]
        %v3472 = vlaneseq
        %v3473 = vshrl.u32 %v3472, 7
        %v3474 = vsub.s32 0, %v3473
        %v3475 = vrot.slane %v3470, %v3474
        %v3476 = vlaneseq
        %v3477 = vshrl.u32 %v3476, 7
        %v3478 = vsub.s32 1, %v3477
        %v3479 = vrot.slane %v3470, %v3478
        %v3482 = vadd.f32 %v3438, %v3475
        %v3483 = vadd.f32 %v3439, %v3479
        %v3484 = vadd.f32 %v3440, %v3475
        %v3485 = vadd.f32 %v3441, %v3479
        %v3486 = vadd.f32 %v3442, %v3475
        %v3487 = vadd.f32 %v3443, %v3479
        %v3488 = vadd.f32 %v3444, %v3475
        %v3489 = vadd.f32 %v3445, %v3479
        %v3490 = vadd.f32 %v3446, %v3475
        %v3491 = vadd.f32 %v3447, %v3479
        %v3492 = vadd.f32 %v3448, %v3475
        %v3493 = vadd.f32 %v3449, %v3479
        %v3494 = vadd.f32 %v3450, %v3475
        %v3495 = vadd.f32 %v3451, %v3479
        %v3496 = vadd.f32 %v3452, %v3475
        %v3497 = vadd.f32 %v3453, %v3479
        %v3498 = vadd.f32 %v3454, %v3475
        %v3499 = vadd.f32 %v3455, %v3479
        %v3500 = vadd.f32 %v3456, %v3475
        %v3501 = vadd.f32 %v3457, %v3479
        %v3502 = vadd.f32 %v3458, %v3475
        %v3503 = vadd.f32 %v3459, %v3479
        %v3504 = vadd.f32 %v3460, %v3475
        %v3505 = vadd.f32 %v3461, %v3479
        %v3506 = vadd.f32 %v3462, %v3475
        %v3507 = vadd.f32 %v3463, %v3479
        %v3508 = vadd.f32 %v3464, %v3475
        %v3509 = vadd.f32 %v3465, %v3479
        %v3510 = vadd.f32 %v3466, %v3475
        %v3511 = vadd.f32 %v3467, %v3479
        %v3512 = vadd.f32 %v3468, %v3475
        %v3513 = vadd.f32 %v3469, %v3479
        %v3514 = vmax.f32 %v3482, 0.0
        %v3515 = vmax.f32 %v3483, 0.0
        %v3516 = vmax.f32 %v3484, 0.0
        %v3517 = vmax.f32 %v3485, 0.0
        %v3518 = vmax.f32 %v3486, 0.0
        %v3519 = vmax.f32 %v3487, 0.0
        %v3520 = vmax.f32 %v3488, 0.0
        %v3521 = vmax.f32 %v3489, 0.0
        %v3522 = vmax.f32 %v3490, 0.0
        %v3523 = vmax.f32 %v3491, 0.0
        %v3524 = vmax.f32 %v3492, 0.0
        %v3525 = vmax.f32 %v3493, 0.0
        %v3526 = vmax.f32 %v3494, 0.0
        %v3527 = vmax.f32 %v3495, 0.0
        %v3528 = vmax.f32 %v3496, 0.0
        %v3529 = vmax.f32 %v3497, 0.0
        %v3530 = vmax.f32 %v3498, 0.0
        %v3531 = vmax.f32 %v3499, 0.0
        %v3532 = vmax.f32 %v3500, 0.0
        %v3533 = vmax.f32 %v3501, 0.0
        %v3534 = vmax.f32 %v3502, 0.0
        %v3535 = vmax.f32 %v3503, 0.0
        %v3536 = vmax.f32 %v3504, 0.0
        %v3537 = vmax.f32 %v3505, 0.0
        %v3538 = vmax.f32 %v3506, 0.0
        %v3539 = vmax.f32 %v3507, 0.0
        %v3540 = vmax.f32 %v3508, 0.0
        %v3541 = vmax.f32 %v3509, 0.0
        %v3542 = vmax.f32 %v3510, 0.0
        %v3543 = vmax.f32 %v3511, 0.0
        %v3544 = vmax.f32 %v3512, 0.0
        %v3545 = vmax.f32 %v3513, 0.0
        %3546 = vst [vmem:[%s237] sm:$0xff] %v3514
        %3547 = vst [vmem:[%s237 + $0x8] sm:$0xff] %v3515
        %3548 = vst [vmem:[%s237 + $0x10] sm:$0xff] %v3516
        %3549 = vst [vmem:[%s237 + $0x18] sm:$0xff] %v3517
        %3550 = vst [vmem:[%s237 + $0x20] sm:$0xff] %v3518
        %3551 = vst [vmem:[%s237 + $0x28] sm:$0xff] %v3519
        %3552 = vst [vmem:[%s237 + $0x30] sm:$0xff] %v3520
        %3553 = vst [vmem:[%s237 + $0x38] sm:$0xff] %v3521
        %3554 = vst [vmem:[%s237 + $0x40] sm:$0xff] %v3522
        %3555 = vst [vmem:[%s237 + $0x48] sm:$0xff] %v3523
        %3556 = vst [vmem:[%s237 + $0x50] sm:$0xff] %v3524
        %3557 = vst [vmem:[%s237 + $0x58] sm:$0xff] %v3525
        %3558 = vst [vmem:[%s237 + $0x60] sm:$0xff] %v3526
        %3559 = vst [vmem:[%s237 + $0x68] sm:$0xff] %v3527
        %3560 = vst [vmem:[%s237 + $0x70] sm:$0xff] %v3528
        %3561 = vst [vmem:[%s237 + $0x78] sm:$0xff] %v3529
        %3562 = vst [vmem:[%s237 + $0x80] sm:$0xff] %v3530
        %3563 = vst [vmem:[%s237 + $0x88] sm:$0xff] %v3531
        %3564 = vst [vmem:[%s237 + $0x90] sm:$0xff] %v3532
        %3565 = vst [vmem:[%s237 + $0x98] sm:$0xff] %v3533
        %3566 = vst [vmem:[%s237 + $0xa0] sm:$0xff] %v3534
        %3567 = vst [vmem:[%s237 + $0xa8] sm:$0xff] %v3535
        %3568 = vst [vmem:[%s237 + $0xb0] sm:$0xff] %v3536
        %3569 = vst [vmem:[%s237 + $0xb8] sm:$0xff] %v3537
        %3570 = vst [vmem:[%s237 + $0xc0] sm:$0xff] %v3538
        %3571 = vst [vmem:[%s237 + $0xc8] sm:$0xff] %v3539
        %3572 = vst [vmem:[%s237 + $0xd0] sm:$0xff] %v3540
        %3573 = vst [vmem:[%s237 + $0xd8] sm:$0xff] %v3541
        %3574 = vst [vmem:[%s237 + $0xe0] sm:$0xff] %v3542
        %3575 = vst [vmem:[%s237 + $0xe8] sm:$0xff] %v3543
        %3576 = vst [vmem:[%s237 + $0xf0] sm:$0xff] %v3544
        %3577 = vst [vmem:[%s237 + $0xf8] sm:$0xff] %v3545
        %s3578 = sand.u32 %s128, 1
        %s3579 = scalar_lea.sflag [#allocation4], %s3578
        %s3580 = sand.u32 %s128, 1
        %s3581 = smul.addr %s3580, 256
        %s3582 = scalar_lea.vmem [#allocation8], %s3581
        // Predicated region
        $region45: #{tpu_custom_call.1} parent=31 // pred_check
          %p3583 = pneg %p138
        $region46: #{tpu_custom_call.1} parent=31 // pred_check_branch
          %3585 = sbr.rel (%p3583) target = $region48
        $region47: #{tpu_custom_call.1} parent=31 // pred_region
          %s3586 = smul.u32 16, %s26
          %s3587 = smul.u32 2, %s25
          %s3589 = ssub.s32 4096, 4096
          %3590 = vsyncadd %s3579, %s3589
          %s3591 = smul.addr %s3586, 2
          %s3592 = sadd.s32 %s3587, %s3591
          %s3593 = smul.addr %s24, 96
          %s3594 = sadd.s32 %s3592, %s3593
          %s3595 = smul.addr %s3594, 128
          %s3596 = scalar_lea.hbm %s3, %s3595
          %s3597 = sshll.u32 %s3582, 4
          %s3598 = int_to_ptr.vmem [resolvable:$true] %s3597
          %3603 = dma.vmem_to_hbm [thread:$0]  %s3598, 4096, %s3596, %s3579, 256, 256, 16
        $region48: #{tpu_custom_call.1} parent=31 // pred_fallthru
          _
      $region32: #{tpu_custom_call.1} parent=5 // pred_fallthru
        _
      %p3604 = scmp.le.s32.totalorder 2, %s14
      // Predicated region
      $region49: #{tpu_custom_call.1} parent=5 // pred_check
        %p3605 = pneg %p3604
      $region50: #{tpu_custom_call.1} parent=5 // pred_check_branch
        %3607 = sbr.rel (%p3605) target = $region52
      $region51: #{tpu_custom_call.1} parent=5 // pred_region
        %s3608 = ssub.s32 %s14, 2
        // Predicated region
        $region53: #{tpu_custom_call.1} parent=51 // pred_check
          %p3609 = pneg %p144
        $region54: #{tpu_custom_call.1} parent=51 // pred_check_branch
          %3611 = sbr.rel (%p3609) target = $region56
        $region55: #{tpu_custom_call.1} parent=51 // pred_region
          %s3612 = sand.u32 %s129, 1
          %s3613 = scalar_lea.sflag [#allocation4], %s3612
          %s3614 = sand.u32 %s129, 1
          %s3615 = smul.addr %s3614, 256
          %s3616 = scalar_lea.vmem [#allocation8], %s3615
          %3617 = dma.done %s3613, 4096
        $region56: #{tpu_custom_call.1} parent=51 // pred_fallthru
          _
      $region52: #{tpu_custom_call.1} parent=5 // pred_fallthru
        _
    $region6: #{tpu_custom_call.1} parent=1 // loop_footer
      %s18 = sadd.s32 1, %s14
    $region7: #{tpu_custom_call.1} parent=1 // loop_footer_branch
      %13 = sbr.rel target = $region3
    $region8: #{tpu_custom_call.1} parent=1 // loop_exit
      _
    %3618 = vsyncpa [#allocation3], 1
    %s3619 = scalar_lea.sflag [#allocation3], 1
    %3620 = vsyncpa %s3619, 1
    %3621 = vsyncpa [#allocation6], 1
    %3622 = vsyncpa [#allocation4], 1
    %s3623 = scalar_lea.sflag [#allocation4], 1
    %3624 = vsyncpa %s3623, 1

</llo_original>
